<compile_context>
chip_gen: v7x
topology: tpu7x:2x2x1
jax: 0.10.0
libtpu: 0.0.40
codegen_flags: <defaults>
</compile_context>

<pallas_src>
import functools

import jax
import jax.numpy as jnp
import numpy as np
from jax.experimental import pallas as pl
from jax.experimental.pallas import tpu as pltpu

# ---------------- model hyperparameters (small, deterministic) --------------
BATCH = 2
SEQ = 8
D_MODEL = 32
N_HEADS = 4
HEAD_DIM = D_MODEL // N_HEADS
D_FF = 64
N_LAYERS = 2
LN_EPS = 1e-5
VEC_W = max(3 * D_MODEL, D_FF)   # lane width of the packed small-vector tensor


def _layer_norm(x, gamma, beta):
    # x: (R, D); gamma/beta: (1, D). Biased variance, matching nn.LayerNorm.
    mean = jnp.mean(x, axis=-1, keepdims=True)
    var = jnp.mean(jnp.square(x - mean), axis=-1, keepdims=True)
    inv = jax.lax.rsqrt(var + LN_EPS)
    return (x - mean) * inv * gamma + beta


def encoder_stack_kernel(
    x_ref, wqkv_ref, wo_ref, w1_ref, w2_ref, vec_ref, out_ref,
    *, n_layers, n_heads, head_dim, batch, seq, d_model, d_ff,
):
    # ---- load shared parameters ONCE (layers share weights via deepcopy) ----
    wqkv = wqkv_ref[...]                                    # (D, 3D)
    wo = wo_ref[...]                                        # (D, D)
    w1 = w1_ref[...]                                        # (D, D_FF)
    w2 = w2_ref[...]                                        # (D_FF, D)
    bqkv = vec_ref[0:1, 0:3 * d_model]                      # (1, 3D)
    b1 = vec_ref[1:2, 0:d_ff]                               # (1, D_FF)
    bo = vec_ref[2:3, 0:d_model]
    g1 = vec_ref[3:4, 0:d_model]
    be1 = vec_ref[4:5, 0:d_model]
    b2 = vec_ref[5:6, 0:d_model]
    g2 = vec_ref[6:7, 0:d_model]
    be2 = vec_ref[7:8, 0:d_model]

    # Per-head slabs of the output projection, hoisted out of all loops.
    wo_heads = [wo[h * head_dim:(h + 1) * head_dim, :] for h in range(n_heads)]

    scale = 1.0 / float(np.sqrt(head_dim))

    h = x_ref[...].astype(jnp.float32)                      # (B*S, D)

    for _ in range(n_layers):                               # static unroll
        # ---- fused QKV projection on the whole (B*S, D) slab ----
        qkv = jnp.dot(h, wqkv, preferred_element_type=jnp.float32) + bqkv

        # ---- multi-head self-attention (scores are per batch element) ----
        attn_rows = []
        for b in range(batch):
            rows = qkv[b * seq:(b + 1) * seq, :]            # (S, 3D)
            acc = jnp.zeros((seq, d_model), jnp.float32)
            for hd_i in range(n_heads):
                lo = hd_i * head_dim
                qs = rows[:, lo:lo + head_dim]                              # (S, hd)
                ks = rows[:, d_model + lo:d_model + lo + head_dim]          # (S, hd)
                vs = rows[:, 2 * d_model + lo:2 * d_model + lo + head_dim]  # (S, hd)
                # q . k^T via dot_general (no materialized transpose)
                s = jax.lax.dot_general(
                    qs, ks, (((1,), (1,)), ((), ())),
                    preferred_element_type=jnp.float32) * scale             # (S, S)
                s = s - jnp.max(s, axis=-1, keepdims=True)
                p = jnp.exp(s)
                p = p * pl.reciprocal(jnp.sum(p, axis=-1, keepdims=True),
                                      approx=False)
                ctx = jnp.dot(p, vs, preferred_element_type=jnp.float32)    # (S, hd)
                # fold the output projection per head -> no head concatenate
                acc = acc + jnp.dot(ctx, wo_heads[hd_i],
                                    preferred_element_type=jnp.float32)
            attn_rows.append(acc)
        attn = jnp.concatenate(attn_rows, axis=0) + bo      # (B*S, D)

        # ---- residual + LayerNorm 1 ----
        h1 = _layer_norm(h + attn, g1, be1)

        # ---- feed-forward ----
        ff = jnp.dot(h1, w1, preferred_element_type=jnp.float32) + b1
        ff = jnp.maximum(ff, 0.0)
        ff = jnp.dot(ff, w2, preferred_element_type=jnp.float32) + b2

        # ---- residual + LayerNorm 2 ----
        h = _layer_norm(h1 + ff, g2, be2)

    out_ref[...] = h.astype(out_ref.dtype)


def _pack_params(params):
    """Pack weights for the fused kernel: fused QKV + one small-vector slab."""
    wqkv = jnp.concatenate([params["wq"], params["wk"], params["wv"]], axis=1)
    bqkv = jnp.concatenate([params["bq"], params["bk"], params["bv"]], axis=1)
    vec = jnp.zeros((8, VEC_W), jnp.float32)
    vec = vec.at[0:1, 0:3 * D_MODEL].set(bqkv)
    vec = vec.at[1:2, 0:D_FF].set(params["b1"])
    vec = vec.at[2:3, 0:D_MODEL].set(params["bo"])
    vec = vec.at[3:4, 0:D_MODEL].set(params["g1"])
    vec = vec.at[4:5, 0:D_MODEL].set(params["be1"])
    vec = vec.at[5:6, 0:D_MODEL].set(params["b2"])
    vec = vec.at[6:7, 0:D_MODEL].set(params["g2"])
    vec = vec.at[7:8, 0:D_MODEL].set(params["be2"])
    return wqkv, params["wo"], params["w1"], params["w2"], vec


def transformer_encoder_pallas(x, params, n_layers):
    """Full encoder stack in a single pallas_call. x: (B, S, D) float32."""
    B, S, D = x.shape
    wqkv, wo, w1, w2, vec = _pack_params(params)
    x2 = x.reshape(B * S, D)          # wrapper-side reshape (layout plumbing)

    kernel = functools.partial(
        encoder_stack_kernel,
        n_layers=n_layers, n_heads=N_HEADS, head_dim=HEAD_DIM,
        batch=B, seq=S, d_model=D, d_ff=D_FF,
    )

    def full(shape):
        return pl.BlockSpec(shape, lambda i: (0,) * len(shape))

    out2 = pl.pallas_call(
        kernel,
        out_shape=jax.ShapeDtypeStruct((B * S, D), x.dtype),
        grid_spec=pltpu.PrefetchScalarGridSpec(
            num_scalar_prefetch=0,
            grid=(1,),   # single invocation: whole problem resident in VMEM
            in_specs=[
                full((B * S, D)),
                full(wqkv.shape),
                full(wo.shape),
                full(w1.shape),
                full(w2.shape),
                full(vec.shape),
            ],
            out_specs=full((B * S, D)),
        ),
        compiler_params=pltpu.CompilerParams(
            dimension_semantics=("arbitrary",),
        ),
    )(x2, wqkv, wo, w1, w2, vec)
    return out2.reshape(B, S, D)


# --------------------- pure-JAX reference for validation --------------------
def encoder_layer_ref(x, p):
    def ln(y, g, b):
        m = jnp.mean(y, axis=-1, keepdims=True)
        v = jnp.mean(jnp.square(y - m), axis=-1, keepdims=True)
        return (y - m) * jax.lax.rsqrt(v + LN_EPS) * g + b

    q = x @ p["wq"] + p["bq"]
    k = x @ p["wk"] + p["bk"]
    v = x @ p["wv"] + p["bv"]
    B, S, D = x.shape
    qh = q.reshape(B, S, N_HEADS, HEAD_DIM).transpose(0, 2, 1, 3)
    kh = k.reshape(B, S, N_HEADS, HEAD_DIM).transpose(0, 2, 1, 3)
    vh = v.reshape(B, S, N_HEADS, HEAD_DIM).transpose(0, 2, 1, 3)
    s = jnp.einsum("bhqd,bhkd->bhqk", qh, kh) / np.sqrt(HEAD_DIM)
    pattn = jax.nn.softmax(s, axis=-1)
    ctx = jnp.einsum("bhqk,bhkd->bhqd", pattn, vh)
    ctx = ctx.transpose(0, 2, 1, 3).reshape(B, S, D)
    attn_out = ctx @ p["wo"] + p["bo"]
    h1 = ln(x + attn_out, p["g1"], p["be1"])
    ff = jnp.maximum(h1 @ p["w1"] + p["b1"], 0.0) @ p["w2"] + p["b2"]
    return ln(h1 + ff, p["g2"], p["be2"])


def transformer_encoder_ref(x, p, n_layers):
    out = x
    for _ in range(n_layers):
        out = encoder_layer_ref(out, p)
    return out


# ------------------------------- param init ---------------------------------
def init_params(key):
    ks = jax.random.split(key, 8)

    def lin(k, fan_in, fan_out):
        bound = 1.0 / np.sqrt(fan_in)
        return jax.random.uniform(
            k, (fan_in, fan_out), jnp.float32, -bound, bound
        )

    params = {
        "wq": lin(ks[0], D_MODEL, D_MODEL), "bq": jnp.zeros((1, D_MODEL), jnp.float32),
        "wk": lin(ks[1], D_MODEL, D_MODEL), "bk": jnp.zeros((1, D_MODEL), jnp.float32),
        "wv": lin(ks[2], D_MODEL, D_MODEL), "bv": jnp.zeros((1, D_MODEL), jnp.float32),
        "wo": lin(ks[3], D_MODEL, D_MODEL), "bo": jnp.zeros((1, D_MODEL), jnp.float32),
        "g1": jnp.ones((1, D_MODEL), jnp.float32), "be1": jnp.zeros((1, D_MODEL), jnp.float32),
        "w1": lin(ks[4], D_MODEL, D_FF), "b1": jnp.zeros((1, D_FF), jnp.float32),
        "w2": lin(ks[5], D_FF, D_MODEL), "b2": jnp.zeros((1, D_MODEL), jnp.float32),
        "g2": jnp.ones((1, D_MODEL), jnp.float32), "be2": jnp.zeros((1, D_MODEL), jnp.float32),
    }
    return params


if __name__ == "__main__":
    key = jax.random.PRNGKey(0)
    k_x, k_p = jax.random.split(key)
    x = jax.random.normal(k_x, (BATCH, SEQ, D_MODEL), jnp.float32)
    params = init_params(k_p)

    out = transformer_encoder_pallas(x, params, N_LAYERS)
    out = jax.block_until_ready(out)

    ref = transformer_encoder_ref(x, params, N_LAYERS)
    np.testing.assert_allclose(np.asarray(out), np.asarray(ref), atol=1e-4, rtol=1e-4)

    print("KERNEL_OK")
</pallas_src>

<mosaic_0001>
module attributes {stable_mosaic.version = 11 : i64} {
  func.func @encoder_stack_kernel(%arg0: i32, %arg1: memref<16x32xf32, #tpu.memory_space<vmem>>, %arg2: memref<32x96xf32, #tpu.memory_space<vmem>>, %arg3: memref<32x32xf32, #tpu.memory_space<vmem>>, %arg4: memref<32x64xf32, #tpu.memory_space<vmem>>, %arg5: memref<64x32xf32, #tpu.memory_space<vmem>>, %arg6: memref<8x96xf32, #tpu.memory_space<vmem>>, %arg7: memref<16x32xf32, #tpu.memory_space<vmem>>) attributes {dimension_semantics = [#tpu.dimension_semantics<arbitrary>], iteration_bounds = array<i64: 1>, scalar_prefetch = 0 : i64, scratch_operands = 0 : i64, tpu.core_type = #tpu.core_type<tc>, window_params = [{pipeline_mode = #tpu.pipeline_mode<synchronous>, transform_indices = @transform_0, window_bounds = array<i64: 16, 32>}, {pipeline_mode = #tpu.pipeline_mode<synchronous>, transform_indices = @transform_1, window_bounds = array<i64: 32, 96>}, {pipeline_mode = #tpu.pipeline_mode<synchronous>, transform_indices = @transform_2, window_bounds = array<i64: 32, 32>}, {pipeline_mode = #tpu.pipeline_mode<synchronous>, transform_indices = @transform_3, window_bounds = array<i64: 32, 64>}, {pipeline_mode = #tpu.pipeline_mode<synchronous>, transform_indices = @transform_4, window_bounds = array<i64: 64, 32>}, {pipeline_mode = #tpu.pipeline_mode<synchronous>, transform_indices = @transform_5, window_bounds = array<i64: 8, 96>}, {pipeline_mode = #tpu.pipeline_mode<synchronous>, transform_indices = @transform_6, window_bounds = array<i64: 16, 32>}]} {
    %c0 = arith.constant 0 : index
    %c0_0 = arith.constant 0 : index
    %0 = vector.load %arg2[%c0, %c0_0] : memref<32x96xf32, #tpu.memory_space<vmem>>, vector<32x96xf32>
    %c0_1 = arith.constant 0 : index
    %c0_2 = arith.constant 0 : index
    %1 = vector.load %arg3[%c0_1, %c0_2] : memref<32x32xf32, #tpu.memory_space<vmem>>, vector<32x32xf32>
    %c0_3 = arith.constant 0 : index
    %c0_4 = arith.constant 0 : index
    %2 = vector.load %arg4[%c0_3, %c0_4] : memref<32x64xf32, #tpu.memory_space<vmem>>, vector<32x64xf32>
    %c0_5 = arith.constant 0 : index
    %c0_6 = arith.constant 0 : index
    %3 = vector.load %arg5[%c0_5, %c0_6] : memref<64x32xf32, #tpu.memory_space<vmem>>, vector<64x32xf32>
    %c0_7 = arith.constant 0 : index
    %c0_8 = arith.constant 0 : index
    %4 = vector.load %arg6[%c0_7, %c0_8] : memref<8x96xf32, #tpu.memory_space<vmem>>, vector<1x96xf32>
    %c1 = arith.constant 1 : index
    %c0_9 = arith.constant 0 : index
    %5 = vector.load %arg6[%c1, %c0_9] : memref<8x96xf32, #tpu.memory_space<vmem>>, vector<1x64xf32>
    %c2 = arith.constant 2 : index
    %c0_10 = arith.constant 0 : index
    %6 = vector.load %arg6[%c2, %c0_10] : memref<8x96xf32, #tpu.memory_space<vmem>>, vector<1x32xf32>
    %c3 = arith.constant 3 : index
    %c0_11 = arith.constant 0 : index
    %7 = vector.load %arg6[%c3, %c0_11] : memref<8x96xf32, #tpu.memory_space<vmem>>, vector<1x32xf32>
    %c4 = arith.constant 4 : index
    %c0_12 = arith.constant 0 : index
    %8 = vector.load %arg6[%c4, %c0_12] : memref<8x96xf32, #tpu.memory_space<vmem>>, vector<1x32xf32>
    %c5 = arith.constant 5 : index
    %c0_13 = arith.constant 0 : index
    %9 = vector.load %arg6[%c5, %c0_13] : memref<8x96xf32, #tpu.memory_space<vmem>>, vector<1x32xf32>
    %c6 = arith.constant 6 : index
    %c0_14 = arith.constant 0 : index
    %10 = vector.load %arg6[%c6, %c0_14] : memref<8x96xf32, #tpu.memory_space<vmem>>, vector<1x32xf32>
    %c7 = arith.constant 7 : index
    %c0_15 = arith.constant 0 : index
    %11 = vector.load %arg6[%c7, %c0_15] : memref<8x96xf32, #tpu.memory_space<vmem>>, vector<1x32xf32>
    %12 = vector.extract_strided_slice %1 {offsets = [0, 0], sizes = [8, 32], strides = [1, 1]} : vector<32x32xf32> to vector<8x32xf32>
    %13 = vector.extract_strided_slice %1 {offsets = [8, 0], sizes = [8, 32], strides = [1, 1]} : vector<32x32xf32> to vector<8x32xf32>
    %14 = vector.extract_strided_slice %1 {offsets = [16, 0], sizes = [8, 32], strides = [1, 1]} : vector<32x32xf32> to vector<8x32xf32>
    %15 = vector.extract_strided_slice %1 {offsets = [24, 0], sizes = [8, 32], strides = [1, 1]} : vector<32x32xf32> to vector<8x32xf32>
    %c0_16 = arith.constant 0 : index
    %c0_17 = arith.constant 0 : index
    %16 = vector.load %arg1[%c0_16, %c0_17] : memref<16x32xf32, #tpu.memory_space<vmem>>, vector<16x32xf32>
    %cst = arith.constant dense<0.000000e+00> : vector<16x96xf32>
    %17 = tpu.matmul %16, %0, %cst {dimension_numbers = #tpu.dot_dimension_numbers<[1], [0], [0], [1], [0, 0, 1, 1], [], []>} : vector<16x32xf32>, vector<32x96xf32>, vector<16x96xf32> -> vector<16x96xf32>
    %18 = vector.broadcast %4 : vector<1x96xf32> to vector<16x96xf32>
    %19 = arith.addf %17, %18 : vector<16x96xf32>
    %20 = vector.extract_strided_slice %19 {offsets = [0, 0], sizes = [8, 96], strides = [1, 1]} : vector<16x96xf32> to vector<8x96xf32>
    %cst_18 = arith.constant 0.000000e+00 : f32
    %21 = vector.broadcast %cst_18 : f32 to vector<8x32xf32>
    %22 = vector.extract_strided_slice %20 {offsets = [0, 0], sizes = [8, 8], strides = [1, 1]} : vector<8x96xf32> to vector<8x8xf32>
    %23 = vector.extract_strided_slice %20 {offsets = [0, 32], sizes = [8, 8], strides = [1, 1]} : vector<8x96xf32> to vector<8x8xf32>
    %24 = vector.extract_strided_slice %20 {offsets = [0, 64], sizes = [8, 8], strides = [1, 1]} : vector<8x96xf32> to vector<8x8xf32>
    %cst_19 = arith.constant dense<0.000000e+00> : vector<8x8xf32>
    %25 = tpu.matmul %22, %23, %cst_19 {dimension_numbers = #tpu.dot_dimension_numbers<[1], [1], [0], [0], [0, 0, 1, 0], [], []>} : vector<8x8xf32>, vector<8x8xf32>, vector<8x8xf32> -> vector<8x8xf32>
    %cst_20 = arith.constant 0.353553385 : f32
    %26 = vector.broadcast %cst_20 : f32 to vector<8x8xf32>
    %27 = arith.mulf %25, %26 : vector<8x8xf32>
    %cst_21 = arith.constant dense<0xFF800000> : vector<8xf32>
    %28 = vector.multi_reduction <maximumf>, %27, %cst_21 [1] : vector<8x8xf32> to vector<8xf32>
    %29 = vector.shape_cast %28 : vector<8xf32> to vector<8x1xf32>
    %30 = vector.broadcast %29 : vector<8x1xf32> to vector<8x8xf32>
    %31 = arith.subf %27, %30 : vector<8x8xf32>
    %32 = math.exp %31 : vector<8x8xf32>
    %cst_22 = arith.constant dense<0.000000e+00> : vector<8xf32>
    %33 = vector.multi_reduction <add>, %32, %cst_22 [1] : vector<8x8xf32> to vector<8xf32>
    %34 = vector.shape_cast %33 : vector<8xf32> to vector<8x1xf32>
    %35 = tpu.reciprocal %34 : vector<8x1xf32> -> vector<8x1xf32>
    %36 = vector.broadcast %35 : vector<8x1xf32> to vector<8x8xf32>
    %37 = arith.mulf %32, %36 : vector<8x8xf32>
    %cst_23 = arith.constant dense<0.000000e+00> : vector<8x8xf32>
    %38 = tpu.matmul %37, %24, %cst_23 {dimension_numbers = #tpu.dot_dimension_numbers<[1], [0], [0], [1], [0, 0, 1, 1], [], []>} : vector<8x8xf32>, vector<8x8xf32>, vector<8x8xf32> -> vector<8x8xf32>
    %cst_24 = arith.constant dense<0.000000e+00> : vector<8x32xf32>
    %39 = tpu.matmul %38, %12, %cst_24 {dimension_numbers = #tpu.dot_dimension_numbers<[1], [0], [0], [1], [0, 0, 1, 1], [], []>} : vector<8x8xf32>, vector<8x32xf32>, vector<8x32xf32> -> vector<8x32xf32>
    %40 = arith.addf %21, %39 : vector<8x32xf32>
    %41 = vector.extract_strided_slice %20 {offsets = [0, 8], sizes = [8, 8], strides = [1, 1]} : vector<8x96xf32> to vector<8x8xf32>
    %42 = vector.extract_strided_slice %20 {offsets = [0, 40], sizes = [8, 8], strides = [1, 1]} : vector<8x96xf32> to vector<8x8xf32>
    %43 = vector.extract_strided_slice %20 {offsets = [0, 72], sizes = [8, 8], strides = [1, 1]} : vector<8x96xf32> to vector<8x8xf32>
    %cst_25 = arith.constant dense<0.000000e+00> : vector<8x8xf32>
    %44 = tpu.matmul %41, %42, %cst_25 {dimension_numbers = #tpu.dot_dimension_numbers<[1], [1], [0], [0], [0, 0, 1, 0], [], []>} : vector<8x8xf32>, vector<8x8xf32>, vector<8x8xf32> -> vector<8x8xf32>
    %cst_26 = arith.constant 0.353553385 : f32
    %45 = vector.broadcast %cst_26 : f32 to vector<8x8xf32>
    %46 = arith.mulf %44, %45 : vector<8x8xf32>
    %cst_27 = arith.constant dense<0xFF800000> : vector<8xf32>
    %47 = vector.multi_reduction <maximumf>, %46, %cst_27 [1] : vector<8x8xf32> to vector<8xf32>
    %48 = vector.shape_cast %47 : vector<8xf32> to vector<8x1xf32>
    %49 = vector.broadcast %48 : vector<8x1xf32> to vector<8x8xf32>
    %50 = arith.subf %46, %49 : vector<8x8xf32>
    %51 = math.exp %50 : vector<8x8xf32>
    %cst_28 = arith.constant dense<0.000000e+00> : vector<8xf32>
    %52 = vector.multi_reduction <add>, %51, %cst_28 [1] : vector<8x8xf32> to vector<8xf32>
    %53 = vector.shape_cast %52 : vector<8xf32> to vector<8x1xf32>
    %54 = tpu.reciprocal %53 : vector<8x1xf32> -> vector<8x1xf32>
    %55 = vector.broadcast %54 : vector<8x1xf32> to vector<8x8xf32>
    %56 = arith.mulf %51, %55 : vector<8x8xf32>
    %cst_29 = arith.constant dense<0.000000e+00> : vector<8x8xf32>
    %57 = tpu.matmul %56, %43, %cst_29 {dimension_numbers = #tpu.dot_dimension_numbers<[1], [0], [0], [1], [0, 0, 1, 1], [], []>} : vector<8x8xf32>, vector<8x8xf32>, vector<8x8xf32> -> vector<8x8xf32>
    %cst_30 = arith.constant dense<0.000000e+00> : vector<8x32xf32>
    %58 = tpu.matmul %57, %13, %cst_30 {dimension_numbers = #tpu.dot_dimension_numbers<[1], [0], [0], [1], [0, 0, 1, 1], [], []>} : vector<8x8xf32>, vector<8x32xf32>, vector<8x32xf32> -> vector<8x32xf32>
    %59 = arith.addf %40, %58 : vector<8x32xf32>
    %60 = vector.extract_strided_slice %20 {offsets = [0, 16], sizes = [8, 8], strides = [1, 1]} : vector<8x96xf32> to vector<8x8xf32>
    %61 = vector.extract_strided_slice %20 {offsets = [0, 48], sizes = [8, 8], strides = [1, 1]} : vector<8x96xf32> to vector<8x8xf32>
    %62 = vector.extract_strided_slice %20 {offsets = [0, 80], sizes = [8, 8], strides = [1, 1]} : vector<8x96xf32> to vector<8x8xf32>
    %cst_31 = arith.constant dense<0.000000e+00> : vector<8x8xf32>
    %63 = tpu.matmul %60, %61, %cst_31 {dimension_numbers = #tpu.dot_dimension_numbers<[1], [1], [0], [0], [0, 0, 1, 0], [], []>} : vector<8x8xf32>, vector<8x8xf32>, vector<8x8xf32> -> vector<8x8xf32>
    %cst_32 = arith.constant 0.353553385 : f32
    %64 = vector.broadcast %cst_32 : f32 to vector<8x8xf32>
    %65 = arith.mulf %63, %64 : vector<8x8xf32>
    %cst_33 = arith.constant dense<0xFF800000> : vector<8xf32>
    %66 = vector.multi_reduction <maximumf>, %65, %cst_33 [1] : vector<8x8xf32> to vector<8xf32>
    %67 = vector.shape_cast %66 : vector<8xf32> to vector<8x1xf32>
    %68 = vector.broadcast %67 : vector<8x1xf32> to vector<8x8xf32>
    %69 = arith.subf %65, %68 : vector<8x8xf32>
    %70 = math.exp %69 : vector<8x8xf32>
    %cst_34 = arith.constant dense<0.000000e+00> : vector<8xf32>
    %71 = vector.multi_reduction <add>, %70, %cst_34 [1] : vector<8x8xf32> to vector<8xf32>
    %72 = vector.shape_cast %71 : vector<8xf32> to vector<8x1xf32>
    %73 = tpu.reciprocal %72 : vector<8x1xf32> -> vector<8x1xf32>
    %74 = vector.broadcast %73 : vector<8x1xf32> to vector<8x8xf32>
    %75 = arith.mulf %70, %74 : vector<8x8xf32>
    %cst_35 = arith.constant dense<0.000000e+00> : vector<8x8xf32>
    %76 = tpu.matmul %75, %62, %cst_35 {dimension_numbers = #tpu.dot_dimension_numbers<[1], [0], [0], [1], [0, 0, 1, 1], [], []>} : vector<8x8xf32>, vector<8x8xf32>, vector<8x8xf32> -> vector<8x8xf32>
    %cst_36 = arith.constant dense<0.000000e+00> : vector<8x32xf32>
    %77 = tpu.matmul %76, %14, %cst_36 {dimension_numbers = #tpu.dot_dimension_numbers<[1], [0], [0], [1], [0, 0, 1, 1], [], []>} : vector<8x8xf32>, vector<8x32xf32>, vector<8x32xf32> -> vector<8x32xf32>
    %78 = arith.addf %59, %77 : vector<8x32xf32>
    %79 = vector.extract_strided_slice %20 {offsets = [0, 24], sizes = [8, 8], strides = [1, 1]} : vector<8x96xf32> to vector<8x8xf32>
    %80 = vector.extract_strided_slice %20 {offsets = [0, 56], sizes = [8, 8], strides = [1, 1]} : vector<8x96xf32> to vector<8x8xf32>
    %81 = vector.extract_strided_slice %20 {offsets = [0, 88], sizes = [8, 8], strides = [1, 1]} : vector<8x96xf32> to vector<8x8xf32>
    %cst_37 = arith.constant dense<0.000000e+00> : vector<8x8xf32>
    %82 = tpu.matmul %79, %80, %cst_37 {dimension_numbers = #tpu.dot_dimension_numbers<[1], [1], [0], [0], [0, 0, 1, 0], [], []>} : vector<8x8xf32>, vector<8x8xf32>, vector<8x8xf32> -> vector<8x8xf32>
    %cst_38 = arith.constant 0.353553385 : f32
    %83 = vector.broadcast %cst_38 : f32 to vector<8x8xf32>
    %84 = arith.mulf %82, %83 : vector<8x8xf32>
    %cst_39 = arith.constant dense<0xFF800000> : vector<8xf32>
    %85 = vector.multi_reduction <maximumf>, %84, %cst_39 [1] : vector<8x8xf32> to vector<8xf32>
    %86 = vector.shape_cast %85 : vector<8xf32> to vector<8x1xf32>
    %87 = vector.broadcast %86 : vector<8x1xf32> to vector<8x8xf32>
    %88 = arith.subf %84, %87 : vector<8x8xf32>
    %89 = math.exp %88 : vector<8x8xf32>
    %cst_40 = arith.constant dense<0.000000e+00> : vector<8xf32>
    %90 = vector.multi_reduction <add>, %89, %cst_40 [1] : vector<8x8xf32> to vector<8xf32>
    %91 = vector.shape_cast %90 : vector<8xf32> to vector<8x1xf32>
    %92 = tpu.reciprocal %91 : vector<8x1xf32> -> vector<8x1xf32>
    %93 = vector.broadcast %92 : vector<8x1xf32> to vector<8x8xf32>
    %94 = arith.mulf %89, %93 : vector<8x8xf32>
    %cst_41 = arith.constant dense<0.000000e+00> : vector<8x8xf32>
    %95 = tpu.matmul %94, %81, %cst_41 {dimension_numbers = #tpu.dot_dimension_numbers<[1], [0], [0], [1], [0, 0, 1, 1], [], []>} : vector<8x8xf32>, vector<8x8xf32>, vector<8x8xf32> -> vector<8x8xf32>
    %cst_42 = arith.constant dense<0.000000e+00> : vector<8x32xf32>
    %96 = tpu.matmul %95, %15, %cst_42 {dimension_numbers = #tpu.dot_dimension_numbers<[1], [0], [0], [1], [0, 0, 1, 1], [], []>} : vector<8x8xf32>, vector<8x32xf32>, vector<8x32xf32> -> vector<8x32xf32>
    %97 = arith.addf %78, %96 : vector<8x32xf32>
    %98 = vector.extract_strided_slice %19 {offsets = [8, 0], sizes = [8, 96], strides = [1, 1]} : vector<16x96xf32> to vector<8x96xf32>
    %cst_43 = arith.constant 0.000000e+00 : f32
    %99 = vector.broadcast %cst_43 : f32 to vector<8x32xf32>
    %100 = vector.extract_strided_slice %98 {offsets = [0, 0], sizes = [8, 8], strides = [1, 1]} : vector<8x96xf32> to vector<8x8xf32>
    %101 = vector.extract_strided_slice %98 {offsets = [0, 32], sizes = [8, 8], strides = [1, 1]} : vector<8x96xf32> to vector<8x8xf32>
    %102 = vector.extract_strided_slice %98 {offsets = [0, 64], sizes = [8, 8], strides = [1, 1]} : vector<8x96xf32> to vector<8x8xf32>
    %cst_44 = arith.constant dense<0.000000e+00> : vector<8x8xf32>
    %103 = tpu.matmul %100, %101, %cst_44 {dimension_numbers = #tpu.dot_dimension_numbers<[1], [1], [0], [0], [0, 0, 1, 0], [], []>} : vector<8x8xf32>, vector<8x8xf32>, vector<8x8xf32> -> vector<8x8xf32>
    %cst_45 = arith.constant 0.353553385 : f32
    %104 = vector.broadcast %cst_45 : f32 to vector<8x8xf32>
    %105 = arith.mulf %103, %104 : vector<8x8xf32>
    %cst_46 = arith.constant dense<0xFF800000> : vector<8xf32>
    %106 = vector.multi_reduction <maximumf>, %105, %cst_46 [1] : vector<8x8xf32> to vector<8xf32>
    %107 = vector.shape_cast %106 : vector<8xf32> to vector<8x1xf32>
    %108 = vector.broadcast %107 : vector<8x1xf32> to vector<8x8xf32>
    %109 = arith.subf %105, %108 : vector<8x8xf32>
    %110 = math.exp %109 : vector<8x8xf32>
    %cst_47 = arith.constant dense<0.000000e+00> : vector<8xf32>
    %111 = vector.multi_reduction <add>, %110, %cst_47 [1] : vector<8x8xf32> to vector<8xf32>
    %112 = vector.shape_cast %111 : vector<8xf32> to vector<8x1xf32>
    %113 = tpu.reciprocal %112 : vector<8x1xf32> -> vector<8x1xf32>
    %114 = vector.broadcast %113 : vector<8x1xf32> to vector<8x8xf32>
    %115 = arith.mulf %110, %114 : vector<8x8xf32>
    %cst_48 = arith.constant dense<0.000000e+00> : vector<8x8xf32>
    %116 = tpu.matmul %115, %102, %cst_48 {dimension_numbers = #tpu.dot_dimension_numbers<[1], [0], [0], [1], [0, 0, 1, 1], [], []>} : vector<8x8xf32>, vector<8x8xf32>, vector<8x8xf32> -> vector<8x8xf32>
    %cst_49 = arith.constant dense<0.000000e+00> : vector<8x32xf32>
    %117 = tpu.matmul %116, %12, %cst_49 {dimension_numbers = #tpu.dot_dimension_numbers<[1], [0], [0], [1], [0, 0, 1, 1], [], []>} : vector<8x8xf32>, vector<8x32xf32>, vector<8x32xf32> -> vector<8x32xf32>
    %118 = arith.addf %99, %117 : vector<8x32xf32>
    %119 = vector.extract_strided_slice %98 {offsets = [0, 8], sizes = [8, 8], strides = [1, 1]} : vector<8x96xf32> to vector<8x8xf32>
    %120 = vector.extract_strided_slice %98 {offsets = [0, 40], sizes = [8, 8], strides = [1, 1]} : vector<8x96xf32> to vector<8x8xf32>
    %121 = vector.extract_strided_slice %98 {offsets = [0, 72], sizes = [8, 8], strides = [1, 1]} : vector<8x96xf32> to vector<8x8xf32>
    %cst_50 = arith.constant dense<0.000000e+00> : vector<8x8xf32>
    %122 = tpu.matmul %119, %120, %cst_50 {dimension_numbers = #tpu.dot_dimension_numbers<[1], [1], [0], [0], [0, 0, 1, 0], [], []>} : vector<8x8xf32>, vector<8x8xf32>, vector<8x8xf32> -> vector<8x8xf32>
    %cst_51 = arith.constant 0.353553385 : f32
    %123 = vector.broadcast %cst_51 : f32 to vector<8x8xf32>
    %124 = arith.mulf %122, %123 : vector<8x8xf32>
    %cst_52 = arith.constant dense<0xFF800000> : vector<8xf32>
    %125 = vector.multi_reduction <maximumf>, %124, %cst_52 [1] : vector<8x8xf32> to vector<8xf32>
    %126 = vector.shape_cast %125 : vector<8xf32> to vector<8x1xf32>
    %127 = vector.broadcast %126 : vector<8x1xf32> to vector<8x8xf32>
    %128 = arith.subf %124, %127 : vector<8x8xf32>
    %129 = math.exp %128 : vector<8x8xf32>
    %cst_53 = arith.constant dense<0.000000e+00> : vector<8xf32>
    %130 = vector.multi_reduction <add>, %129, %cst_53 [1] : vector<8x8xf32> to vector<8xf32>
    %131 = vector.shape_cast %130 : vector<8xf32> to vector<8x1xf32>
    %132 = tpu.reciprocal %131 : vector<8x1xf32> -> vector<8x1xf32>
    %133 = vector.broadcast %132 : vector<8x1xf32> to vector<8x8xf32>
    %134 = arith.mulf %129, %133 : vector<8x8xf32>
    %cst_54 = arith.constant dense<0.000000e+00> : vector<8x8xf32>
    %135 = tpu.matmul %134, %121, %cst_54 {dimension_numbers = #tpu.dot_dimension_numbers<[1], [0], [0], [1], [0, 0, 1, 1], [], []>} : vector<8x8xf32>, vector<8x8xf32>, vector<8x8xf32> -> vector<8x8xf32>
    %cst_55 = arith.constant dense<0.000000e+00> : vector<8x32xf32>
    %136 = tpu.matmul %135, %13, %cst_55 {dimension_numbers = #tpu.dot_dimension_numbers<[1], [0], [0], [1], [0, 0, 1, 1], [], []>} : vector<8x8xf32>, vector<8x32xf32>, vector<8x32xf32> -> vector<8x32xf32>
    %137 = arith.addf %118, %136 : vector<8x32xf32>
    %138 = vector.extract_strided_slice %98 {offsets = [0, 16], sizes = [8, 8], strides = [1, 1]} : vector<8x96xf32> to vector<8x8xf32>
    %139 = vector.extract_strided_slice %98 {offsets = [0, 48], sizes = [8, 8], strides = [1, 1]} : vector<8x96xf32> to vector<8x8xf32>
    %140 = vector.extract_strided_slice %98 {offsets = [0, 80], sizes = [8, 8], strides = [1, 1]} : vector<8x96xf32> to vector<8x8xf32>
    %cst_56 = arith.constant dense<0.000000e+00> : vector<8x8xf32>
    %141 = tpu.matmul %138, %139, %cst_56 {dimension_numbers = #tpu.dot_dimension_numbers<[1], [1], [0], [0], [0, 0, 1, 0], [], []>} : vector<8x8xf32>, vector<8x8xf32>, vector<8x8xf32> -> vector<8x8xf32>
    %cst_57 = arith.constant 0.353553385 : f32
    %142 = vector.broadcast %cst_57 : f32 to vector<8x8xf32>
    %143 = arith.mulf %141, %142 : vector<8x8xf32>
    %cst_58 = arith.constant dense<0xFF800000> : vector<8xf32>
    %144 = vector.multi_reduction <maximumf>, %143, %cst_58 [1] : vector<8x8xf32> to vector<8xf32>
    %145 = vector.shape_cast %144 : vector<8xf32> to vector<8x1xf32>
    %146 = vector.broadcast %145 : vector<8x1xf32> to vector<8x8xf32>
    %147 = arith.subf %143, %146 : vector<8x8xf32>
    %148 = math.exp %147 : vector<8x8xf32>
    %cst_59 = arith.constant dense<0.000000e+00> : vector<8xf32>
    %149 = vector.multi_reduction <add>, %148, %cst_59 [1] : vector<8x8xf32> to vector<8xf32>
    %150 = vector.shape_cast %149 : vector<8xf32> to vector<8x1xf32>
    %151 = tpu.reciprocal %150 : vector<8x1xf32> -> vector<8x1xf32>
    %152 = vector.broadcast %151 : vector<8x1xf32> to vector<8x8xf32>
    %153 = arith.mulf %148, %152 : vector<8x8xf32>
    %cst_60 = arith.constant dense<0.000000e+00> : vector<8x8xf32>
    %154 = tpu.matmul %153, %140, %cst_60 {dimension_numbers = #tpu.dot_dimension_numbers<[1], [0], [0], [1], [0, 0, 1, 1], [], []>} : vector<8x8xf32>, vector<8x8xf32>, vector<8x8xf32> -> vector<8x8xf32>
    %cst_61 = arith.constant dense<0.000000e+00> : vector<8x32xf32>
    %155 = tpu.matmul %154, %14, %cst_61 {dimension_numbers = #tpu.dot_dimension_numbers<[1], [0], [0], [1], [0, 0, 1, 1], [], []>} : vector<8x8xf32>, vector<8x32xf32>, vector<8x32xf32> -> vector<8x32xf32>
    %156 = arith.addf %137, %155 : vector<8x32xf32>
    %157 = vector.extract_strided_slice %98 {offsets = [0, 24], sizes = [8, 8], strides = [1, 1]} : vector<8x96xf32> to vector<8x8xf32>
    %158 = vector.extract_strided_slice %98 {offsets = [0, 56], sizes = [8, 8], strides = [1, 1]} : vector<8x96xf32> to vector<8x8xf32>
    %159 = vector.extract_strided_slice %98 {offsets = [0, 88], sizes = [8, 8], strides = [1, 1]} : vector<8x96xf32> to vector<8x8xf32>
    %cst_62 = arith.constant dense<0.000000e+00> : vector<8x8xf32>
    %160 = tpu.matmul %157, %158, %cst_62 {dimension_numbers = #tpu.dot_dimension_numbers<[1], [1], [0], [0], [0, 0, 1, 0], [], []>} : vector<8x8xf32>, vector<8x8xf32>, vector<8x8xf32> -> vector<8x8xf32>
    %cst_63 = arith.constant 0.353553385 : f32
    %161 = vector.broadcast %cst_63 : f32 to vector<8x8xf32>
    %162 = arith.mulf %160, %161 : vector<8x8xf32>
    %cst_64 = arith.constant dense<0xFF800000> : vector<8xf32>
    %163 = vector.multi_reduction <maximumf>, %162, %cst_64 [1] : vector<8x8xf32> to vector<8xf32>
    %164 = vector.shape_cast %163 : vector<8xf32> to vector<8x1xf32>
    %165 = vector.broadcast %164 : vector<8x1xf32> to vector<8x8xf32>
    %166 = arith.subf %162, %165 : vector<8x8xf32>
    %167 = math.exp %166 : vector<8x8xf32>
    %cst_65 = arith.constant dense<0.000000e+00> : vector<8xf32>
    %168 = vector.multi_reduction <add>, %167, %cst_65 [1] : vector<8x8xf32> to vector<8xf32>
    %169 = vector.shape_cast %168 : vector<8xf32> to vector<8x1xf32>
    %170 = tpu.reciprocal %169 : vector<8x1xf32> -> vector<8x1xf32>
    %171 = vector.broadcast %170 : vector<8x1xf32> to vector<8x8xf32>
    %172 = arith.mulf %167, %171 : vector<8x8xf32>
    %cst_66 = arith.constant dense<0.000000e+00> : vector<8x8xf32>
    %173 = tpu.matmul %172, %159, %cst_66 {dimension_numbers = #tpu.dot_dimension_numbers<[1], [0], [0], [1], [0, 0, 1, 1], [], []>} : vector<8x8xf32>, vector<8x8xf32>, vector<8x8xf32> -> vector<8x8xf32>
    %cst_67 = arith.constant dense<0.000000e+00> : vector<8x32xf32>
    %174 = tpu.matmul %173, %15, %cst_67 {dimension_numbers = #tpu.dot_dimension_numbers<[1], [0], [0], [1], [0, 0, 1, 1], [], []>} : vector<8x8xf32>, vector<8x32xf32>, vector<8x32xf32> -> vector<8x32xf32>
    %175 = arith.addf %156, %174 : vector<8x32xf32>
    %176 = tpu.concatenate %97, %175 in 0 : vector<8x32xf32>, vector<8x32xf32> -> vector<16x32xf32>
    %177 = vector.broadcast %6 : vector<1x32xf32> to vector<16x32xf32>
    %178 = arith.addf %176, %177 : vector<16x32xf32>
    %179 = arith.addf %16, %178 : vector<16x32xf32>
    %cst_68 = arith.constant dense<0.000000e+00> : vector<16xf32>
    %180 = vector.multi_reduction <add>, %179, %cst_68 [1] : vector<16x32xf32> to vector<16xf32>
    %181 = vector.shape_cast %180 : vector<16xf32> to vector<16x1xf32>
    %cst_69 = arith.constant 3.200000e+01 : f32
    %182 = vector.broadcast %cst_69 : f32 to vector<16x1xf32>
    %183 = arith.divf %181, %182 : vector<16x1xf32>
    %184 = vector.broadcast %183 : vector<16x1xf32> to vector<16x32xf32>
    %185 = arith.subf %179, %184 : vector<16x32xf32>
    %186 = arith.mulf %185, %185 : vector<16x32xf32>
    %cst_70 = arith.constant dense<0.000000e+00> : vector<16xf32>
    %187 = vector.multi_reduction <add>, %186, %cst_70 [1] : vector<16x32xf32> to vector<16xf32>
    %188 = vector.shape_cast %187 : vector<16xf32> to vector<16x1xf32>
    %cst_71 = arith.constant 3.200000e+01 : f32
    %189 = vector.broadcast %cst_71 : f32 to vector<16x1xf32>
    %190 = arith.divf %188, %189 : vector<16x1xf32>
    %cst_72 = arith.constant 9.99999974E-6 : f32
    %191 = vector.broadcast %cst_72 : f32 to vector<16x1xf32>
    %192 = arith.addf %190, %191 : vector<16x1xf32>
    %193 = math.rsqrt %192 : vector<16x1xf32>
    %194 = vector.broadcast %183 : vector<16x1xf32> to vector<16x32xf32>
    %195 = arith.subf %179, %194 : vector<16x32xf32>
    %196 = vector.broadcast %193 : vector<16x1xf32> to vector<16x32xf32>
    %197 = arith.mulf %195, %196 : vector<16x32xf32>
    %198 = vector.broadcast %7 : vector<1x32xf32> to vector<16x32xf32>
    %199 = arith.mulf %197, %198 : vector<16x32xf32>
    %200 = vector.broadcast %8 : vector<1x32xf32> to vector<16x32xf32>
    %201 = arith.addf %199, %200 : vector<16x32xf32>
    %cst_73 = arith.constant dense<0.000000e+00> : vector<16x64xf32>
    %202 = tpu.matmul %201, %2, %cst_73 {dimension_numbers = #tpu.dot_dimension_numbers<[1], [0], [0], [1], [0, 0, 1, 1], [], []>} : vector<16x32xf32>, vector<32x64xf32>, vector<16x64xf32> -> vector<16x64xf32>
    %203 = vector.broadcast %5 : vector<1x64xf32> to vector<16x64xf32>
    %204 = arith.addf %202, %203 : vector<16x64xf32>
    %cst_74 = arith.constant 0.000000e+00 : f32
    %205 = vector.broadcast %cst_74 : f32 to vector<16x64xf32>
    %206 = arith.maximumf %204, %205 : vector<16x64xf32>
    %cst_75 = arith.constant dense<0.000000e+00> : vector<16x32xf32>
    %207 = tpu.matmul %206, %3, %cst_75 {dimension_numbers = #tpu.dot_dimension_numbers<[1], [0], [0], [1], [0, 0, 1, 1], [], []>} : vector<16x64xf32>, vector<64x32xf32>, vector<16x32xf32> -> vector<16x32xf32>
    %208 = vector.broadcast %9 : vector<1x32xf32> to vector<16x32xf32>
    %209 = arith.addf %207, %208 : vector<16x32xf32>
    %210 = arith.addf %201, %209 : vector<16x32xf32>
    %cst_76 = arith.constant dense<0.000000e+00> : vector<16xf32>
    %211 = vector.multi_reduction <add>, %210, %cst_76 [1] : vector<16x32xf32> to vector<16xf32>
    %212 = vector.shape_cast %211 : vector<16xf32> to vector<16x1xf32>
    %cst_77 = arith.constant 3.200000e+01 : f32
    %213 = vector.broadcast %cst_77 : f32 to vector<16x1xf32>
    %214 = arith.divf %212, %213 : vector<16x1xf32>
    %215 = vector.broadcast %214 : vector<16x1xf32> to vector<16x32xf32>
    %216 = arith.subf %210, %215 : vector<16x32xf32>
    %217 = arith.mulf %216, %216 : vector<16x32xf32>
    %cst_78 = arith.constant dense<0.000000e+00> : vector<16xf32>
    %218 = vector.multi_reduction <add>, %217, %cst_78 [1] : vector<16x32xf32> to vector<16xf32>
    %219 = vector.shape_cast %218 : vector<16xf32> to vector<16x1xf32>
    %cst_79 = arith.constant 3.200000e+01 : f32
    %220 = vector.broadcast %cst_79 : f32 to vector<16x1xf32>
    %221 = arith.divf %219, %220 : vector<16x1xf32>
    %cst_80 = arith.constant 9.99999974E-6 : f32
    %222 = vector.broadcast %cst_80 : f32 to vector<16x1xf32>
    %223 = arith.addf %221, %222 : vector<16x1xf32>
    %224 = math.rsqrt %223 : vector<16x1xf32>
    %225 = vector.broadcast %214 : vector<16x1xf32> to vector<16x32xf32>
    %226 = arith.subf %210, %225 : vector<16x32xf32>
    %227 = vector.broadcast %224 : vector<16x1xf32> to vector<16x32xf32>
    %228 = arith.mulf %226, %227 : vector<16x32xf32>
    %229 = vector.broadcast %10 : vector<1x32xf32> to vector<16x32xf32>
    %230 = arith.mulf %228, %229 : vector<16x32xf32>
    %231 = vector.broadcast %11 : vector<1x32xf32> to vector<16x32xf32>
    %232 = arith.addf %230, %231 : vector<16x32xf32>
    %cst_81 = arith.constant dense<0.000000e+00> : vector<16x96xf32>
    %233 = tpu.matmul %232, %0, %cst_81 {dimension_numbers = #tpu.dot_dimension_numbers<[1], [0], [0], [1], [0, 0, 1, 1], [], []>} : vector<16x32xf32>, vector<32x96xf32>, vector<16x96xf32> -> vector<16x96xf32>
    %234 = vector.broadcast %4 : vector<1x96xf32> to vector<16x96xf32>
    %235 = arith.addf %233, %234 : vector<16x96xf32>
    %236 = vector.extract_strided_slice %235 {offsets = [0, 0], sizes = [8, 96], strides = [1, 1]} : vector<16x96xf32> to vector<8x96xf32>
    %cst_82 = arith.constant 0.000000e+00 : f32
    %237 = vector.broadcast %cst_82 : f32 to vector<8x32xf32>
    %238 = vector.extract_strided_slice %236 {offsets = [0, 0], sizes = [8, 8], strides = [1, 1]} : vector<8x96xf32> to vector<8x8xf32>
    %239 = vector.extract_strided_slice %236 {offsets = [0, 32], sizes = [8, 8], strides = [1, 1]} : vector<8x96xf32> to vector<8x8xf32>
    %240 = vector.extract_strided_slice %236 {offsets = [0, 64], sizes = [8, 8], strides = [1, 1]} : vector<8x96xf32> to vector<8x8xf32>
    %cst_83 = arith.constant dense<0.000000e+00> : vector<8x8xf32>
    %241 = tpu.matmul %238, %239, %cst_83 {dimension_numbers = #tpu.dot_dimension_numbers<[1], [1], [0], [0], [0, 0, 1, 0], [], []>} : vector<8x8xf32>, vector<8x8xf32>, vector<8x8xf32> -> vector<8x8xf32>
    %cst_84 = arith.constant 0.353553385 : f32
    %242 = vector.broadcast %cst_84 : f32 to vector<8x8xf32>
    %243 = arith.mulf %241, %242 : vector<8x8xf32>
    %cst_85 = arith.constant dense<0xFF800000> : vector<8xf32>
    %244 = vector.multi_reduction <maximumf>, %243, %cst_85 [1] : vector<8x8xf32> to vector<8xf32>
    %245 = vector.shape_cast %244 : vector<8xf32> to vector<8x1xf32>
    %246 = vector.broadcast %245 : vector<8x1xf32> to vector<8x8xf32>
    %247 = arith.subf %243, %246 : vector<8x8xf32>
    %248 = math.exp %247 : vector<8x8xf32>
    %cst_86 = arith.constant dense<0.000000e+00> : vector<8xf32>
    %249 = vector.multi_reduction <add>, %248, %cst_86 [1] : vector<8x8xf32> to vector<8xf32>
    %250 = vector.shape_cast %249 : vector<8xf32> to vector<8x1xf32>
    %251 = tpu.reciprocal %250 : vector<8x1xf32> -> vector<8x1xf32>
    %252 = vector.broadcast %251 : vector<8x1xf32> to vector<8x8xf32>
    %253 = arith.mulf %248, %252 : vector<8x8xf32>
    %cst_87 = arith.constant dense<0.000000e+00> : vector<8x8xf32>
    %254 = tpu.matmul %253, %240, %cst_87 {dimension_numbers = #tpu.dot_dimension_numbers<[1], [0], [0], [1], [0, 0, 1, 1], [], []>} : vector<8x8xf32>, vector<8x8xf32>, vector<8x8xf32> -> vector<8x8xf32>
    %cst_88 = arith.constant dense<0.000000e+00> : vector<8x32xf32>
    %255 = tpu.matmul %254, %12, %cst_88 {dimension_numbers = #tpu.dot_dimension_numbers<[1], [0], [0], [1], [0, 0, 1, 1], [], []>} : vector<8x8xf32>, vector<8x32xf32>, vector<8x32xf32> -> vector<8x32xf32>
    %256 = arith.addf %237, %255 : vector<8x32xf32>
    %257 = vector.extract_strided_slice %236 {offsets = [0, 8], sizes = [8, 8], strides = [1, 1]} : vector<8x96xf32> to vector<8x8xf32>
    %258 = vector.extract_strided_slice %236 {offsets = [0, 40], sizes = [8, 8], strides = [1, 1]} : vector<8x96xf32> to vector<8x8xf32>
    %259 = vector.extract_strided_slice %236 {offsets = [0, 72], sizes = [8, 8], strides = [1, 1]} : vector<8x96xf32> to vector<8x8xf32>
    %cst_89 = arith.constant dense<0.000000e+00> : vector<8x8xf32>
    %260 = tpu.matmul %257, %258, %cst_89 {dimension_numbers = #tpu.dot_dimension_numbers<[1], [1], [0], [0], [0, 0, 1, 0], [], []>} : vector<8x8xf32>, vector<8x8xf32>, vector<8x8xf32> -> vector<8x8xf32>
    %cst_90 = arith.constant 0.353553385 : f32
    %261 = vector.broadcast %cst_90 : f32 to vector<8x8xf32>
    %262 = arith.mulf %260, %261 : vector<8x8xf32>
    %cst_91 = arith.constant dense<0xFF800000> : vector<8xf32>
    %263 = vector.multi_reduction <maximumf>, %262, %cst_91 [1] : vector<8x8xf32> to vector<8xf32>
    %264 = vector.shape_cast %263 : vector<8xf32> to vector<8x1xf32>
    %265 = vector.broadcast %264 : vector<8x1xf32> to vector<8x8xf32>
    %266 = arith.subf %262, %265 : vector<8x8xf32>
    %267 = math.exp %266 : vector<8x8xf32>
    %cst_92 = arith.constant dense<0.000000e+00> : vector<8xf32>
    %268 = vector.multi_reduction <add>, %267, %cst_92 [1] : vector<8x8xf32> to vector<8xf32>
    %269 = vector.shape_cast %268 : vector<8xf32> to vector<8x1xf32>
    %270 = tpu.reciprocal %269 : vector<8x1xf32> -> vector<8x1xf32>
    %271 = vector.broadcast %270 : vector<8x1xf32> to vector<8x8xf32>
    %272 = arith.mulf %267, %271 : vector<8x8xf32>
    %cst_93 = arith.constant dense<0.000000e+00> : vector<8x8xf32>
    %273 = tpu.matmul %272, %259, %cst_93 {dimension_numbers = #tpu.dot_dimension_numbers<[1], [0], [0], [1], [0, 0, 1, 1], [], []>} : vector<8x8xf32>, vector<8x8xf32>, vector<8x8xf32> -> vector<8x8xf32>
    %cst_94 = arith.constant dense<0.000000e+00> : vector<8x32xf32>
    %274 = tpu.matmul %273, %13, %cst_94 {dimension_numbers = #tpu.dot_dimension_numbers<[1], [0], [0], [1], [0, 0, 1, 1], [], []>} : vector<8x8xf32>, vector<8x32xf32>, vector<8x32xf32> -> vector<8x32xf32>
    %275 = arith.addf %256, %274 : vector<8x32xf32>
    %276 = vector.extract_strided_slice %236 {offsets = [0, 16], sizes = [8, 8], strides = [1, 1]} : vector<8x96xf32> to vector<8x8xf32>
    %277 = vector.extract_strided_slice %236 {offsets = [0, 48], sizes = [8, 8], strides = [1, 1]} : vector<8x96xf32> to vector<8x8xf32>
    %278 = vector.extract_strided_slice %236 {offsets = [0, 80], sizes = [8, 8], strides = [1, 1]} : vector<8x96xf32> to vector<8x8xf32>
    %cst_95 = arith.constant dense<0.000000e+00> : vector<8x8xf32>
    %279 = tpu.matmul %276, %277, %cst_95 {dimension_numbers = #tpu.dot_dimension_numbers<[1], [1], [0], [0], [0, 0, 1, 0], [], []>} : vector<8x8xf32>, vector<8x8xf32>, vector<8x8xf32> -> vector<8x8xf32>
    %cst_96 = arith.constant 0.353553385 : f32
    %280 = vector.broadcast %cst_96 : f32 to vector<8x8xf32>
    %281 = arith.mulf %279, %280 : vector<8x8xf32>
    %cst_97 = arith.constant dense<0xFF800000> : vector<8xf32>
    %282 = vector.multi_reduction <maximumf>, %281, %cst_97 [1] : vector<8x8xf32> to vector<8xf32>
    %283 = vector.shape_cast %282 : vector<8xf32> to vector<8x1xf32>
    %284 = vector.broadcast %283 : vector<8x1xf32> to vector<8x8xf32>
    %285 = arith.subf %281, %284 : vector<8x8xf32>
    %286 = math.exp %285 : vector<8x8xf32>
    %cst_98 = arith.constant dense<0.000000e+00> : vector<8xf32>
    %287 = vector.multi_reduction <add>, %286, %cst_98 [1] : vector<8x8xf32> to vector<8xf32>
    %288 = vector.shape_cast %287 : vector<8xf32> to vector<8x1xf32>
    %289 = tpu.reciprocal %288 : vector<8x1xf32> -> vector<8x1xf32>
    %290 = vector.broadcast %289 : vector<8x1xf32> to vector<8x8xf32>
    %291 = arith.mulf %286, %290 : vector<8x8xf32>
    %cst_99 = arith.constant dense<0.000000e+00> : vector<8x8xf32>
    %292 = tpu.matmul %291, %278, %cst_99 {dimension_numbers = #tpu.dot_dimension_numbers<[1], [0], [0], [1], [0, 0, 1, 1], [], []>} : vector<8x8xf32>, vector<8x8xf32>, vector<8x8xf32> -> vector<8x8xf32>
    %cst_100 = arith.constant dense<0.000000e+00> : vector<8x32xf32>
    %293 = tpu.matmul %292, %14, %cst_100 {dimension_numbers = #tpu.dot_dimension_numbers<[1], [0], [0], [1], [0, 0, 1, 1], [], []>} : vector<8x8xf32>, vector<8x32xf32>, vector<8x32xf32> -> vector<8x32xf32>
    %294 = arith.addf %275, %293 : vector<8x32xf32>
    %295 = vector.extract_strided_slice %236 {offsets = [0, 24], sizes = [8, 8], strides = [1, 1]} : vector<8x96xf32> to vector<8x8xf32>
    %296 = vector.extract_strided_slice %236 {offsets = [0, 56], sizes = [8, 8], strides = [1, 1]} : vector<8x96xf32> to vector<8x8xf32>
    %297 = vector.extract_strided_slice %236 {offsets = [0, 88], sizes = [8, 8], strides = [1, 1]} : vector<8x96xf32> to vector<8x8xf32>
    %cst_101 = arith.constant dense<0.000000e+00> : vector<8x8xf32>
    %298 = tpu.matmul %295, %296, %cst_101 {dimension_numbers = #tpu.dot_dimension_numbers<[1], [1], [0], [0], [0, 0, 1, 0], [], []>} : vector<8x8xf32>, vector<8x8xf32>, vector<8x8xf32> -> vector<8x8xf32>
    %cst_102 = arith.constant 0.353553385 : f32
    %299 = vector.broadcast %cst_102 : f32 to vector<8x8xf32>
    %300 = arith.mulf %298, %299 : vector<8x8xf32>
    %cst_103 = arith.constant dense<0xFF800000> : vector<8xf32>
    %301 = vector.multi_reduction <maximumf>, %300, %cst_103 [1] : vector<8x8xf32> to vector<8xf32>
    %302 = vector.shape_cast %301 : vector<8xf32> to vector<8x1xf32>
    %303 = vector.broadcast %302 : vector<8x1xf32> to vector<8x8xf32>
    %304 = arith.subf %300, %303 : vector<8x8xf32>
    %305 = math.exp %304 : vector<8x8xf32>
    %cst_104 = arith.constant dense<0.000000e+00> : vector<8xf32>
    %306 = vector.multi_reduction <add>, %305, %cst_104 [1] : vector<8x8xf32> to vector<8xf32>
    %307 = vector.shape_cast %306 : vector<8xf32> to vector<8x1xf32>
    %308 = tpu.reciprocal %307 : vector<8x1xf32> -> vector<8x1xf32>
    %309 = vector.broadcast %308 : vector<8x1xf32> to vector<8x8xf32>
    %310 = arith.mulf %305, %309 : vector<8x8xf32>
    %cst_105 = arith.constant dense<0.000000e+00> : vector<8x8xf32>
    %311 = tpu.matmul %310, %297, %cst_105 {dimension_numbers = #tpu.dot_dimension_numbers<[1], [0], [0], [1], [0, 0, 1, 1], [], []>} : vector<8x8xf32>, vector<8x8xf32>, vector<8x8xf32> -> vector<8x8xf32>
    %cst_106 = arith.constant dense<0.000000e+00> : vector<8x32xf32>
    %312 = tpu.matmul %311, %15, %cst_106 {dimension_numbers = #tpu.dot_dimension_numbers<[1], [0], [0], [1], [0, 0, 1, 1], [], []>} : vector<8x8xf32>, vector<8x32xf32>, vector<8x32xf32> -> vector<8x32xf32>
    %313 = arith.addf %294, %312 : vector<8x32xf32>
    %314 = vector.extract_strided_slice %235 {offsets = [8, 0], sizes = [8, 96], strides = [1, 1]} : vector<16x96xf32> to vector<8x96xf32>
    %cst_107 = arith.constant 0.000000e+00 : f32
    %315 = vector.broadcast %cst_107 : f32 to vector<8x32xf32>
    %316 = vector.extract_strided_slice %314 {offsets = [0, 0], sizes = [8, 8], strides = [1, 1]} : vector<8x96xf32> to vector<8x8xf32>
    %317 = vector.extract_strided_slice %314 {offsets = [0, 32], sizes = [8, 8], strides = [1, 1]} : vector<8x96xf32> to vector<8x8xf32>
    %318 = vector.extract_strided_slice %314 {offsets = [0, 64], sizes = [8, 8], strides = [1, 1]} : vector<8x96xf32> to vector<8x8xf32>
    %cst_108 = arith.constant dense<0.000000e+00> : vector<8x8xf32>
    %319 = tpu.matmul %316, %317, %cst_108 {dimension_numbers = #tpu.dot_dimension_numbers<[1], [1], [0], [0], [0, 0, 1, 0], [], []>} : vector<8x8xf32>, vector<8x8xf32>, vector<8x8xf32> -> vector<8x8xf32>
    %cst_109 = arith.constant 0.353553385 : f32
    %320 = vector.broadcast %cst_109 : f32 to vector<8x8xf32>
    %321 = arith.mulf %319, %320 : vector<8x8xf32>
    %cst_110 = arith.constant dense<0xFF800000> : vector<8xf32>
    %322 = vector.multi_reduction <maximumf>, %321, %cst_110 [1] : vector<8x8xf32> to vector<8xf32>
    %323 = vector.shape_cast %322 : vector<8xf32> to vector<8x1xf32>
    %324 = vector.broadcast %323 : vector<8x1xf32> to vector<8x8xf32>
    %325 = arith.subf %321, %324 : vector<8x8xf32>
    %326 = math.exp %325 : vector<8x8xf32>
    %cst_111 = arith.constant dense<0.000000e+00> : vector<8xf32>
    %327 = vector.multi_reduction <add>, %326, %cst_111 [1] : vector<8x8xf32> to vector<8xf32>
    %328 = vector.shape_cast %327 : vector<8xf32> to vector<8x1xf32>
    %329 = tpu.reciprocal %328 : vector<8x1xf32> -> vector<8x1xf32>
    %330 = vector.broadcast %329 : vector<8x1xf32> to vector<8x8xf32>
    %331 = arith.mulf %326, %330 : vector<8x8xf32>
    %cst_112 = arith.constant dense<0.000000e+00> : vector<8x8xf32>
    %332 = tpu.matmul %331, %318, %cst_112 {dimension_numbers = #tpu.dot_dimension_numbers<[1], [0], [0], [1], [0, 0, 1, 1], [], []>} : vector<8x8xf32>, vector<8x8xf32>, vector<8x8xf32> -> vector<8x8xf32>
    %cst_113 = arith.constant dense<0.000000e+00> : vector<8x32xf32>
    %333 = tpu.matmul %332, %12, %cst_113 {dimension_numbers = #tpu.dot_dimension_numbers<[1], [0], [0], [1], [0, 0, 1, 1], [], []>} : vector<8x8xf32>, vector<8x32xf32>, vector<8x32xf32> -> vector<8x32xf32>
    %334 = arith.addf %315, %333 : vector<8x32xf32>
    %335 = vector.extract_strided_slice %314 {offsets = [0, 8], sizes = [8, 8], strides = [1, 1]} : vector<8x96xf32> to vector<8x8xf32>
    %336 = vector.extract_strided_slice %314 {offsets = [0, 40], sizes = [8, 8], strides = [1, 1]} : vector<8x96xf32> to vector<8x8xf32>
    %337 = vector.extract_strided_slice %314 {offsets = [0, 72], sizes = [8, 8], strides = [1, 1]} : vector<8x96xf32> to vector<8x8xf32>
    %cst_114 = arith.constant dense<0.000000e+00> : vector<8x8xf32>
    %338 = tpu.matmul %335, %336, %cst_114 {dimension_numbers = #tpu.dot_dimension_numbers<[1], [1], [0], [0], [0, 0, 1, 0], [], []>} : vector<8x8xf32>, vector<8x8xf32>, vector<8x8xf32> -> vector<8x8xf32>
    %cst_115 = arith.constant 0.353553385 : f32
    %339 = vector.broadcast %cst_115 : f32 to vector<8x8xf32>
    %340 = arith.mulf %338, %339 : vector<8x8xf32>
    %cst_116 = arith.constant dense<0xFF800000> : vector<8xf32>
    %341 = vector.multi_reduction <maximumf>, %340, %cst_116 [1] : vector<8x8xf32> to vector<8xf32>
    %342 = vector.shape_cast %341 : vector<8xf32> to vector<8x1xf32>
    %343 = vector.broadcast %342 : vector<8x1xf32> to vector<8x8xf32>
    %344 = arith.subf %340, %343 : vector<8x8xf32>
    %345 = math.exp %344 : vector<8x8xf32>
    %cst_117 = arith.constant dense<0.000000e+00> : vector<8xf32>
    %346 = vector.multi_reduction <add>, %345, %cst_117 [1] : vector<8x8xf32> to vector<8xf32>
    %347 = vector.shape_cast %346 : vector<8xf32> to vector<8x1xf32>
    %348 = tpu.reciprocal %347 : vector<8x1xf32> -> vector<8x1xf32>
    %349 = vector.broadcast %348 : vector<8x1xf32> to vector<8x8xf32>
    %350 = arith.mulf %345, %349 : vector<8x8xf32>
    %cst_118 = arith.constant dense<0.000000e+00> : vector<8x8xf32>
    %351 = tpu.matmul %350, %337, %cst_118 {dimension_numbers = #tpu.dot_dimension_numbers<[1], [0], [0], [1], [0, 0, 1, 1], [], []>} : vector<8x8xf32>, vector<8x8xf32>, vector<8x8xf32> -> vector<8x8xf32>
    %cst_119 = arith.constant dense<0.000000e+00> : vector<8x32xf32>
    %352 = tpu.matmul %351, %13, %cst_119 {dimension_numbers = #tpu.dot_dimension_numbers<[1], [0], [0], [1], [0, 0, 1, 1], [], []>} : vector<8x8xf32>, vector<8x32xf32>, vector<8x32xf32> -> vector<8x32xf32>
    %353 = arith.addf %334, %352 : vector<8x32xf32>
    %354 = vector.extract_strided_slice %314 {offsets = [0, 16], sizes = [8, 8], strides = [1, 1]} : vector<8x96xf32> to vector<8x8xf32>
    %355 = vector.extract_strided_slice %314 {offsets = [0, 48], sizes = [8, 8], strides = [1, 1]} : vector<8x96xf32> to vector<8x8xf32>
    %356 = vector.extract_strided_slice %314 {offsets = [0, 80], sizes = [8, 8], strides = [1, 1]} : vector<8x96xf32> to vector<8x8xf32>
    %cst_120 = arith.constant dense<0.000000e+00> : vector<8x8xf32>
    %357 = tpu.matmul %354, %355, %cst_120 {dimension_numbers = #tpu.dot_dimension_numbers<[1], [1], [0], [0], [0, 0, 1, 0], [], []>} : vector<8x8xf32>, vector<8x8xf32>, vector<8x8xf32> -> vector<8x8xf32>
    %cst_121 = arith.constant 0.353553385 : f32
    %358 = vector.broadcast %cst_121 : f32 to vector<8x8xf32>
    %359 = arith.mulf %357, %358 : vector<8x8xf32>
    %cst_122 = arith.constant dense<0xFF800000> : vector<8xf32>
    %360 = vector.multi_reduction <maximumf>, %359, %cst_122 [1] : vector<8x8xf32> to vector<8xf32>
    %361 = vector.shape_cast %360 : vector<8xf32> to vector<8x1xf32>
    %362 = vector.broadcast %361 : vector<8x1xf32> to vector<8x8xf32>
    %363 = arith.subf %359, %362 : vector<8x8xf32>
    %364 = math.exp %363 : vector<8x8xf32>
    %cst_123 = arith.constant dense<0.000000e+00> : vector<8xf32>
    %365 = vector.multi_reduction <add>, %364, %cst_123 [1] : vector<8x8xf32> to vector<8xf32>
    %366 = vector.shape_cast %365 : vector<8xf32> to vector<8x1xf32>
    %367 = tpu.reciprocal %366 : vector<8x1xf32> -> vector<8x1xf32>
    %368 = vector.broadcast %367 : vector<8x1xf32> to vector<8x8xf32>
    %369 = arith.mulf %364, %368 : vector<8x8xf32>
    %cst_124 = arith.constant dense<0.000000e+00> : vector<8x8xf32>
    %370 = tpu.matmul %369, %356, %cst_124 {dimension_numbers = #tpu.dot_dimension_numbers<[1], [0], [0], [1], [0, 0, 1, 1], [], []>} : vector<8x8xf32>, vector<8x8xf32>, vector<8x8xf32> -> vector<8x8xf32>
    %cst_125 = arith.constant dense<0.000000e+00> : vector<8x32xf32>
    %371 = tpu.matmul %370, %14, %cst_125 {dimension_numbers = #tpu.dot_dimension_numbers<[1], [0], [0], [1], [0, 0, 1, 1], [], []>} : vector<8x8xf32>, vector<8x32xf32>, vector<8x32xf32> -> vector<8x32xf32>
    %372 = arith.addf %353, %371 : vector<8x32xf32>
    %373 = vector.extract_strided_slice %314 {offsets = [0, 24], sizes = [8, 8], strides = [1, 1]} : vector<8x96xf32> to vector<8x8xf32>
    %374 = vector.extract_strided_slice %314 {offsets = [0, 56], sizes = [8, 8], strides = [1, 1]} : vector<8x96xf32> to vector<8x8xf32>
    %375 = vector.extract_strided_slice %314 {offsets = [0, 88], sizes = [8, 8], strides = [1, 1]} : vector<8x96xf32> to vector<8x8xf32>
    %cst_126 = arith.constant dense<0.000000e+00> : vector<8x8xf32>
    %376 = tpu.matmul %373, %374, %cst_126 {dimension_numbers = #tpu.dot_dimension_numbers<[1], [1], [0], [0], [0, 0, 1, 0], [], []>} : vector<8x8xf32>, vector<8x8xf32>, vector<8x8xf32> -> vector<8x8xf32>
    %cst_127 = arith.constant 0.353553385 : f32
    %377 = vector.broadcast %cst_127 : f32 to vector<8x8xf32>
    %378 = arith.mulf %376, %377 : vector<8x8xf32>
    %cst_128 = arith.constant dense<0xFF800000> : vector<8xf32>
    %379 = vector.multi_reduction <maximumf>, %378, %cst_128 [1] : vector<8x8xf32> to vector<8xf32>
    %380 = vector.shape_cast %379 : vector<8xf32> to vector<8x1xf32>
    %381 = vector.broadcast %380 : vector<8x1xf32> to vector<8x8xf32>
    %382 = arith.subf %378, %381 : vector<8x8xf32>
    %383 = math.exp %382 : vector<8x8xf32>
    %cst_129 = arith.constant dense<0.000000e+00> : vector<8xf32>
    %384 = vector.multi_reduction <add>, %383, %cst_129 [1] : vector<8x8xf32> to vector<8xf32>
    %385 = vector.shape_cast %384 : vector<8xf32> to vector<8x1xf32>
    %386 = tpu.reciprocal %385 : vector<8x1xf32> -> vector<8x1xf32>
    %387 = vector.broadcast %386 : vector<8x1xf32> to vector<8x8xf32>
    %388 = arith.mulf %383, %387 : vector<8x8xf32>
    %cst_130 = arith.constant dense<0.000000e+00> : vector<8x8xf32>
    %389 = tpu.matmul %388, %375, %cst_130 {dimension_numbers = #tpu.dot_dimension_numbers<[1], [0], [0], [1], [0, 0, 1, 1], [], []>} : vector<8x8xf32>, vector<8x8xf32>, vector<8x8xf32> -> vector<8x8xf32>
    %cst_131 = arith.constant dense<0.000000e+00> : vector<8x32xf32>
    %390 = tpu.matmul %389, %15, %cst_131 {dimension_numbers = #tpu.dot_dimension_numbers<[1], [0], [0], [1], [0, 0, 1, 1], [], []>} : vector<8x8xf32>, vector<8x32xf32>, vector<8x32xf32> -> vector<8x32xf32>
    %391 = arith.addf %372, %390 : vector<8x32xf32>
    %392 = tpu.concatenate %313, %391 in 0 : vector<8x32xf32>, vector<8x32xf32> -> vector<16x32xf32>
    %393 = vector.broadcast %6 : vector<1x32xf32> to vector<16x32xf32>
    %394 = arith.addf %392, %393 : vector<16x32xf32>
    %395 = arith.addf %232, %394 : vector<16x32xf32>
    %cst_132 = arith.constant dense<0.000000e+00> : vector<16xf32>
    %396 = vector.multi_reduction <add>, %395, %cst_132 [1] : vector<16x32xf32> to vector<16xf32>
    %397 = vector.shape_cast %396 : vector<16xf32> to vector<16x1xf32>
    %cst_133 = arith.constant 3.200000e+01 : f32
    %398 = vector.broadcast %cst_133 : f32 to vector<16x1xf32>
    %399 = arith.divf %397, %398 : vector<16x1xf32>
    %400 = vector.broadcast %399 : vector<16x1xf32> to vector<16x32xf32>
    %401 = arith.subf %395, %400 : vector<16x32xf32>
    %402 = arith.mulf %401, %401 : vector<16x32xf32>
    %cst_134 = arith.constant dense<0.000000e+00> : vector<16xf32>
    %403 = vector.multi_reduction <add>, %402, %cst_134 [1] : vector<16x32xf32> to vector<16xf32>
    %404 = vector.shape_cast %403 : vector<16xf32> to vector<16x1xf32>
    %cst_135 = arith.constant 3.200000e+01 : f32
    %405 = vector.broadcast %cst_135 : f32 to vector<16x1xf32>
    %406 = arith.divf %404, %405 : vector<16x1xf32>
    %cst_136 = arith.constant 9.99999974E-6 : f32
    %407 = vector.broadcast %cst_136 : f32 to vector<16x1xf32>
    %408 = arith.addf %406, %407 : vector<16x1xf32>
    %409 = math.rsqrt %408 : vector<16x1xf32>
    %410 = vector.broadcast %399 : vector<16x1xf32> to vector<16x32xf32>
    %411 = arith.subf %395, %410 : vector<16x32xf32>
    %412 = vector.broadcast %409 : vector<16x1xf32> to vector<16x32xf32>
    %413 = arith.mulf %411, %412 : vector<16x32xf32>
    %414 = vector.broadcast %7 : vector<1x32xf32> to vector<16x32xf32>
    %415 = arith.mulf %413, %414 : vector<16x32xf32>
    %416 = vector.broadcast %8 : vector<1x32xf32> to vector<16x32xf32>
    %417 = arith.addf %415, %416 : vector<16x32xf32>
    %cst_137 = arith.constant dense<0.000000e+00> : vector<16x64xf32>
    %418 = tpu.matmul %417, %2, %cst_137 {dimension_numbers = #tpu.dot_dimension_numbers<[1], [0], [0], [1], [0, 0, 1, 1], [], []>} : vector<16x32xf32>, vector<32x64xf32>, vector<16x64xf32> -> vector<16x64xf32>
    %419 = vector.broadcast %5 : vector<1x64xf32> to vector<16x64xf32>
    %420 = arith.addf %418, %419 : vector<16x64xf32>
    %cst_138 = arith.constant 0.000000e+00 : f32
    %421 = vector.broadcast %cst_138 : f32 to vector<16x64xf32>
    %422 = arith.maximumf %420, %421 : vector<16x64xf32>
    %cst_139 = arith.constant dense<0.000000e+00> : vector<16x32xf32>
    %423 = tpu.matmul %422, %3, %cst_139 {dimension_numbers = #tpu.dot_dimension_numbers<[1], [0], [0], [1], [0, 0, 1, 1], [], []>} : vector<16x64xf32>, vector<64x32xf32>, vector<16x32xf32> -> vector<16x32xf32>
    %424 = vector.broadcast %9 : vector<1x32xf32> to vector<16x32xf32>
    %425 = arith.addf %423, %424 : vector<16x32xf32>
    %426 = arith.addf %417, %425 : vector<16x32xf32>
    %cst_140 = arith.constant dense<0.000000e+00> : vector<16xf32>
    %427 = vector.multi_reduction <add>, %426, %cst_140 [1] : vector<16x32xf32> to vector<16xf32>
    %428 = vector.shape_cast %427 : vector<16xf32> to vector<16x1xf32>
    %cst_141 = arith.constant 3.200000e+01 : f32
    %429 = vector.broadcast %cst_141 : f32 to vector<16x1xf32>
    %430 = arith.divf %428, %429 : vector<16x1xf32>
    %431 = vector.broadcast %430 : vector<16x1xf32> to vector<16x32xf32>
    %432 = arith.subf %426, %431 : vector<16x32xf32>
    %433 = arith.mulf %432, %432 : vector<16x32xf32>
    %cst_142 = arith.constant dense<0.000000e+00> : vector<16xf32>
    %434 = vector.multi_reduction <add>, %433, %cst_142 [1] : vector<16x32xf32> to vector<16xf32>
    %435 = vector.shape_cast %434 : vector<16xf32> to vector<16x1xf32>
    %cst_143 = arith.constant 3.200000e+01 : f32
    %436 = vector.broadcast %cst_143 : f32 to vector<16x1xf32>
    %437 = arith.divf %435, %436 : vector<16x1xf32>
    %cst_144 = arith.constant 9.99999974E-6 : f32
    %438 = vector.broadcast %cst_144 : f32 to vector<16x1xf32>
    %439 = arith.addf %437, %438 : vector<16x1xf32>
    %440 = math.rsqrt %439 : vector<16x1xf32>
    %441 = vector.broadcast %430 : vector<16x1xf32> to vector<16x32xf32>
    %442 = arith.subf %426, %441 : vector<16x32xf32>
    %443 = vector.broadcast %440 : vector<16x1xf32> to vector<16x32xf32>
    %444 = arith.mulf %442, %443 : vector<16x32xf32>
    %445 = vector.broadcast %10 : vector<1x32xf32> to vector<16x32xf32>
    %446 = arith.mulf %444, %445 : vector<16x32xf32>
    %447 = vector.broadcast %11 : vector<1x32xf32> to vector<16x32xf32>
    %448 = arith.addf %446, %447 : vector<16x32xf32>
    %c0_145 = arith.constant 0 : index
    %c0_146 = arith.constant 0 : index
    %449 = vector.load %arg7[%c0_145, %c0_146] : memref<16x32xf32, #tpu.memory_space<vmem>>, vector<16x32xf32>
    tpu.vector_store %arg7[%c0_145, %c0_146], %448 {strides = array<i32>} : memref<16x32xf32, #tpu.memory_space<vmem>>, vector<16x32xf32>,
    return
  }
  func.func @transform_0(%arg0: i32) -> (i32, i32) {
    %c0_i32 = arith.constant 0 : i32
    %c0_i32_0 = arith.constant 0 : i32
    %c0_i32_1 = arith.constant 0 : i32
    return %c0_i32, %c0_i32_0 : i32, i32
  }
  func.func @transform_1(%arg0: i32) -> (i32, i32) {
    %c0_i32 = arith.constant 0 : i32
    %c0_i32_0 = arith.constant 0 : i32
    %c0_i32_1 = arith.constant 0 : i32
    return %c0_i32, %c0_i32_0 : i32, i32
  }
  func.func @transform_2(%arg0: i32) -> (i32, i32) {
    %c0_i32 = arith.constant 0 : i32
    %c0_i32_0 = arith.constant 0 : i32
    %c0_i32_1 = arith.constant 0 : i32
    return %c0_i32, %c0_i32_0 : i32, i32
  }
  func.func @transform_3(%arg0: i32) -> (i32, i32) {
    %c0_i32 = arith.constant 0 : i32
    %c0_i32_0 = arith.constant 0 : i32
    %c0_i32_1 = arith.constant 0 : i32
    return %c0_i32, %c0_i32_0 : i32, i32
  }
  func.func @transform_4(%arg0: i32) -> (i32, i32) {
    %c0_i32 = arith.constant 0 : i32
    %c0_i32_0 = arith.constant 0 : i32
    %c0_i32_1 = arith.constant 0 : i32
    return %c0_i32, %c0_i32_0 : i32, i32
  }
  func.func @transform_5(%arg0: i32) -> (i32, i32) {
    %c0_i32 = arith.constant 0 : i32
    %c0_i32_0 = arith.constant 0 : i32
    %c0_i32_1 = arith.constant 0 : i32
    return %c0_i32, %c0_i32_0 : i32, i32
  }
  func.func @transform_6(%arg0: i32) -> (i32, i32) {
    %c0_i32 = arith.constant 0 : i32
    %c0_i32_0 = arith.constant 0 : i32
    %c0_i32_1 = arith.constant 0 : i32
    return %c0_i32, %c0_i32_0 : i32, i32
  }
}

</mosaic_0001>

<llo_original>
// kernel: tpu_custom_call.1
$region0: #{tpu_custom_call.1}
  #allocation0 [shape = 'u32[]', space=smem, size = 0x4, offset = 0x4, fixed_abs, tag = 'smem constant byte address 0x4 - core index']
  #allocation1 [shape = 'u32[144,128]{1,0:T(1,128)}', space=vmem, size = 0x12000, scoped, tag = 'internal scratch']
  %s0 = inlined_call_operand.hbm [shape: f32[16,32], index: 0, kind: input, shape index: {}]
  %s1 = inlined_call_operand.vmem [shape: f32[32,96], index: 1, kind: input, shape index: {}]
  %s2 = inlined_call_operand.vmem [shape: f32[32,32], index: 2, kind: input, shape index: {}]
  %s3 = inlined_call_operand.vmem [shape: f32[32,64], index: 3, kind: input, shape index: {}]
  %s4 = inlined_call_operand.vmem [shape: f32[64,32], index: 4, kind: input, shape index: {}]
  %s5 = inlined_call_operand.vmem [shape: f32[8,96], index: 5, kind: input, shape index: {}]
  %s6 = inlined_call_operand.hbm [shape: f32[16,32], index: 6, kind: output, shape index: {}]
  %s7 = sld [smem:[#allocation0]]
  $region38: #{tpu_custom_call.1} parent=0
    _
  %s9 = ssub.s32 1, %s7
  %s10 = scalar_select 0, %s9, %s7
  $region1: #{tpu_custom_call.1} parent=0
    #allocation2 [shape = 'u8[8192]{0}', space=vmem, size = 0x2000, scoped, tag = 'input window, operand 0, single buffered']
    #allocation3 [shape = 's32[1]{0}', space=sflag, size = 0x4, scoped, tag = 'scoped memory for tpu_custom_call.1']
    #allocation4 [shape = 's32[1]{0}', space=sflag, size = 0x4, scoped, tag = 'scoped memory for tpu_custom_call.1']
    #allocation5 [shape = 'u8[8192]{0}', space=vmem, size = 0x2000, scoped, tag = 'output window, operand 0, single buffered']
    %11 = vsyncpa [#allocation3], 0
    %12 = vsyncpa [#allocation4], 0
    // Predicated region
    $region2: #{tpu_custom_call.1} parent=1 // pred_check
      _
    $region3: #{tpu_custom_call.1} parent=1 // pred_check_branch
      %14 = sbr.rel (0) target = $region5
    $region4: #{tpu_custom_call.1} parent=1 // pred_region
      %s16 = ssub.s32 256, 256
      %17 = vsyncadd [#allocation3], %s16
      %s18 = sshll.u32 [#allocation2], 4
      %s19 = int_to_ptr.vmem [resolvable:$true] %s18
      %24 = dma.hbm_to_vmem [thread:$0]  %s0, 256, %s19, [#allocation3], 128, 128, 8
    $region5: #{tpu_custom_call.1} parent=1 // pred_fallthru
      _
    // Predicated region
    $region6: #{tpu_custom_call.1} parent=1 // pred_check
      _
    $region7: #{tpu_custom_call.1} parent=1 // pred_check_branch
      %26 = sbr.rel (0) target = $region9
    $region8: #{tpu_custom_call.1} parent=1 // pred_region
      _
    $region9: #{tpu_custom_call.1} parent=1 // pred_fallthru
      _
    // Predicated region
    $region10: #{tpu_custom_call.1} parent=1 // pred_check
      _
    $region11: #{tpu_custom_call.1} parent=1 // pred_check_branch
      %28 = sbr.rel (0) target = $region13
    $region12: #{tpu_custom_call.1} parent=1 // pred_region
      _
    $region13: #{tpu_custom_call.1} parent=1 // pred_fallthru
      _
    // Predicated region
    $region14: #{tpu_custom_call.1} parent=1 // pred_check
      _
    $region15: #{tpu_custom_call.1} parent=1 // pred_check_branch
      %30 = sbr.rel (0) target = $region17
    $region16: #{tpu_custom_call.1} parent=1 // pred_region
      _
    $region17: #{tpu_custom_call.1} parent=1 // pred_fallthru
      _
    // Predicated region
    $region18: #{tpu_custom_call.1} parent=1 // pred_check
      _
    $region19: #{tpu_custom_call.1} parent=1 // pred_check_branch
      %32 = sbr.rel (0) target = $region21
    $region20: #{tpu_custom_call.1} parent=1 // pred_region
      _
    $region21: #{tpu_custom_call.1} parent=1 // pred_fallthru
      _
    // Predicated region
    $region22: #{tpu_custom_call.1} parent=1 // pred_check
      _
    $region23: #{tpu_custom_call.1} parent=1 // pred_check_branch
      %34 = sbr.rel (0) target = $region25
    $region24: #{tpu_custom_call.1} parent=1 // pred_region
      _
    $region25: #{tpu_custom_call.1} parent=1 // pred_fallthru
      _
    // Predicated region
    $region26: #{tpu_custom_call.1} parent=1 // pred_check
      _
    $region27: #{tpu_custom_call.1} parent=1 // pred_check_branch
      %36 = sbr.rel (0) target = $region29
    $region28: #{tpu_custom_call.1} parent=1 // pred_region
      %37 = dma.done [#allocation3], 256
    $region29: #{tpu_custom_call.1} parent=1 // pred_fallthru
      _
    %v38 = vld [vmem:[%s1] sm:$0xff]
    %v39 = vld [vmem:[%s1 + $0x8] sm:$0xff]
    %v40 = vld [vmem:[%s1 + $0x10] sm:$0xff]
    %v41 = vld [vmem:[%s1 + $0x18] sm:$0xff]
    %v42 = vld [vmem:[%s2] sm:$0xff]
    %v43 = vld [vmem:[%s2 + $0x8] sm:$0xff]
    %v44 = vld [vmem:[%s2 + $0x10] sm:$0xff]
    %v45 = vld [vmem:[%s2 + $0x18] sm:$0xff]
    %v46 = vld [vmem:[%s3] sm:$0xff]
    %v47 = vld [vmem:[%s3 + $0x8] sm:$0xff]
    %v48 = vld [vmem:[%s3 + $0x10] sm:$0xff]
    %v49 = vld [vmem:[%s3 + $0x18] sm:$0xff]
    %v50 = vld [vmem:[%s4] sm:$0xff]
    %v51 = vld [vmem:[%s4 + $0x8] sm:$0xff]
    %v52 = vld [vmem:[%s4 + $0x10] sm:$0xff]
    %v53 = vld [vmem:[%s4 + $0x18] sm:$0xff]
    %v54 = vld [vmem:[%s4 + $0x20] sm:$0xff]
    %v55 = vld [vmem:[%s4 + $0x28] sm:$0xff]
    %v56 = vld [vmem:[%s4 + $0x30] sm:$0xff]
    %v57 = vld [vmem:[%s4 + $0x38] sm:$0xff]
    %v58 = vld [vmem:[%s5] sm:$0x1]
    %v59 = vld [vmem:[%s5 + $0x1] sm:$0x1]
    %v60 = vld [vmem:[%s5 + $0x2] sm:$0x1]
    %v61 = vld [vmem:[%s5 + $0x3] sm:$0x1]
    %v62 = vld [vmem:[%s5 + $0x4] sm:$0x1]
    %v63 = vld [vmem:[%s5 + $0x5] sm:$0x1]
    %v64 = vld [vmem:[%s5 + $0x6] sm:$0x1]
    %v65 = vld [vmem:[%s5 + $0x7] sm:$0x1]
    %v66 = vld [vmem:[#allocation2] sm:$0xff]
    %v67 = vld [vmem:[#allocation2 + $0x8] sm:$0xff]
    %v68 = vlaneseq
    %v69 = vshrl.u32 %v68, 7
    %v70 = vsub.s32 0, %v69
    %v71 = vrot.slane %v58, %v70
    %vm72 = vcmask 261120
    %v74 = vsel %vm72, %v66, 0
    %v77 = vsel %vm72, %v67, 0
    %79 = vmatprep.subr.mxu0 0.0
    %80 = vmatpush1.msra.mxu0 %v38
    %81 = vmatprep.subr.mxu0 0.0
    %82 = vmatpush1.msra.mxu0 %v39
    %83 = vmatprep.subr.mxu0 0.0
    %84 = vmatpush1.msra.mxu0 %v40
    %85 = vmatprep.subr.mxu0 0.0
    %86 = vmatpush1.msra.mxu0 %v41
    %87 = vmatprep.subr.mxu0 0.0
    %88 = vmatpush1.msra.mxu0 0.0
    %89 = vmatprep.subr.mxu0 0.0
    %90 = vmatpush1.msra.mxu0 0.0
    %91 = vmatprep.subr.mxu0 0.0
    %92 = vmatpush1.msra.mxu0 0.0
    %93 = vmatprep.subr.mxu0 0.0
    %94 = vmatpush1.msra.mxu0 0.0
    %95 = vmatprep.subr.mxu0 0.0
    %96 = vmatpush1.msra.mxu0 0.0
    %97 = vmatprep.subr.mxu0 0.0
    %98 = vmatpush1.msra.mxu0 0.0
    %99 = vmatprep.subr.mxu0 0.0
    %100 = vmatpush1.msra.mxu0 0.0
    %101 = vmatprep.subr.mxu0 0.0
    %102 = vmatpush1.msra.mxu0 0.0
    %103 = vmatprep.subr.mxu0 0.0
    %104 = vmatpush1.msra.mxu0 0.0
    %105 = vmatprep.subr.mxu0 0.0
    %106 = vmatpush1.msra.mxu0 0.0
    %107 = vmatprep.subr.mxu0 0.0
    %108 = vmatpush1.msra.mxu0 0.0
    %109 = vmatprep.subr.mxu0 0.0
    %110 = vmatpush1.msra.mxu0 0.0
    %111 = vmatprep.subr.mxu0 0.0
    %112 = vmatpush1.msra.mxu0 0.0
    %113 = vmatprep.subr.mxu0 0.0
    %114 = vmatpush1.msra.mxu0 0.0
    %115 = vmatprep.subr.mxu0 0.0
    %116 = vmatpush1.msra.mxu0 0.0
    %117 = vmatprep.subr.mxu0 0.0
    %118 = vmatpush1.msra.mxu0 0.0
    %119 = vmatprep.subr.mxu0 0.0
    %120 = vmatpush1.msra.mxu0 0.0
    %121 = vmatprep.subr.mxu0 0.0
    %122 = vmatpush1.msra.mxu0 0.0
    %123 = vmatprep.subr.mxu0 0.0
    %124 = vmatpush1.msra.mxu0 0.0
    %125 = vmatprep.subr.mxu0 0.0
    %126 = vmatpush1.msra.mxu0 0.0
    %127 = vmatprep.subr.mxu0 0.0
    %128 = vmatpush1.msra.mxu0 0.0
    %129 = vmatprep.subr.mxu0 0.0
    %130 = vmatpush1.msra.mxu0 0.0
    %131 = vmatprep.subr.mxu0 0.0
    %132 = vmatpush1.msra.mxu0 0.0
    %133 = vmatprep.subr.mxu0 0.0
    %134 = vmatpush1.msra.mxu0 0.0
    %135 = vmatprep.subr.mxu0 0.0
    %136 = vmatpush1.msra.mxu0 0.0
    %137 = vmatprep.subr.mxu0 0.0
    %138 = vmatpush1.msra.mxu0 0.0
    %139 = vmatprep.subr.mxu0 0.0
    %140 = vmatpush1.msra.mxu0 0.0
    %141 = vmatprep.subr.mxu0 0.0
    %142 = vmatpush1.msra.mxu0 0.0
    %143 = vmatprep.mubr.f32.mxu0 0.0
    %144 = vmatmul.mubr.f32.gmra.mrb[0].mxu0 %v74
    %v145 = vpop.f32.mrb[0].mxu0
    %v146 = vadd.f32 %v71, %v145
    %v147 = vpop.f32.mrb[0].mxu0
    %148 = vmatprep.mubr.f32.mxu0 0.0
    %149 = vmatmul.mubr.f32.gmra.mrb[0].mxu0 %v77
    %v150 = vpop.f32.mrb[0].mxu0
    %v151 = vadd.f32 %v71, %v150
    %v152 = vpop.f32.mrb[0].mxu0
    %153 = vdwg.mxu0
    %155 = vrot.lane.b32.xlu0 %v146, 96
    %v156 = vpop.permute.xlu0 %155
    %vm157 = vcmask 64512
    %v158 = vsel %vm157, %v146, 0
    %v160 = vsel %vm157, %v156, 0
    %162 = vmatprep.subr.mxu0 0.0
    %163 = vmatpush1.xpose.msra.mxu0 %v160
    %164 = vmatprep.subr.mxu0 0.0
    %165 = vmatpush1.xpose.msra.mxu0 0.0
    %166 = vmatprep.subr.mxu0 0.0
    %167 = vmatpush1.xpose.msra.mxu0 0.0
    %168 = vmatprep.subr.mxu0 0.0
    %169 = vmatpush1.xpose.msra.mxu0 0.0
    %170 = vmatprep.subr.mxu0 0.0
    %171 = vmatpush1.xpose.msra.mxu0 0.0
    %172 = vmatprep.subr.mxu0 0.0
    %173 = vmatpush1.xpose.msra.mxu0 0.0
    %174 = vmatprep.subr.mxu0 0.0
    %175 = vmatpush1.xpose.msra.mxu0 0.0
    %176 = vmatprep.subr.mxu0 0.0
    %177 = vmatpush1.xpose.msra.mxu0 0.0
    %178 = vmatprep.subr.mxu0 0.0
    %179 = vmatpush1.xpose.msra.mxu0 0.0
    %180 = vmatprep.subr.mxu0 0.0
    %181 = vmatpush1.xpose.msra.mxu0 0.0
    %182 = vmatprep.subr.mxu0 0.0
    %183 = vmatpush1.xpose.msra.mxu0 0.0
    %184 = vmatprep.subr.mxu0 0.0
    %185 = vmatpush1.xpose.msra.mxu0 0.0
    %186 = vmatprep.subr.mxu0 0.0
    %187 = vmatpush1.xpose.msra.mxu0 0.0
    %188 = vmatprep.subr.mxu0 0.0
    %189 = vmatpush1.xpose.msra.mxu0 0.0
    %190 = vmatprep.subr.mxu0 0.0
    %191 = vmatpush1.xpose.msra.mxu0 0.0
    %192 = vmatprep.subr.mxu0 0.0
    %193 = vmatpush1.xpose.msra.mxu0 0.0
    %194 = vmatprep.subr.mxu0 0.0
    %195 = vmatpush1.xpose.msra.mxu0 0.0
    %196 = vmatprep.subr.mxu0 0.0
    %197 = vmatpush1.xpose.msra.mxu0 0.0
    %198 = vmatprep.subr.mxu0 0.0
    %199 = vmatpush1.xpose.msra.mxu0 0.0
    %200 = vmatprep.subr.mxu0 0.0
    %201 = vmatpush1.xpose.msra.mxu0 0.0
    %202 = vmatprep.subr.mxu0 0.0
    %203 = vmatpush1.xpose.msra.mxu0 0.0
    %204 = vmatprep.subr.mxu0 0.0
    %205 = vmatpush1.xpose.msra.mxu0 0.0
    %206 = vmatprep.subr.mxu0 0.0
    %207 = vmatpush1.xpose.msra.mxu0 0.0
    %208 = vmatprep.subr.mxu0 0.0
    %209 = vmatpush1.xpose.msra.mxu0 0.0
    %210 = vmatprep.subr.mxu0 0.0
    %211 = vmatpush1.xpose.msra.mxu0 0.0
    %212 = vmatprep.subr.mxu0 0.0
    %213 = vmatpush1.xpose.msra.mxu0 0.0
    %214 = vmatprep.subr.mxu0 0.0
    %215 = vmatpush1.xpose.msra.mxu0 0.0
    %216 = vmatprep.subr.mxu0 0.0
    %217 = vmatpush1.xpose.msra.mxu0 0.0
    %218 = vmatprep.subr.mxu0 0.0
    %219 = vmatpush1.xpose.msra.mxu0 0.0
    %220 = vmatprep.subr.mxu0 0.0
    %221 = vmatpush1.xpose.msra.mxu0 0.0
    %222 = vmatprep.subr.mxu0 0.0
    %223 = vmatpush1.xpose.msra.mxu0 0.0
    %224 = vmatprep.subr.mxu0 0.0
    %225 = vmatpush1.xpose.msra.mxu0 0.0
    %226 = vmatprep.mubr.f32.mxu0 0.0
    %227 = vmatmul.mubr.f32.gmra.mrb[0].mxu0 %v158
    %v228 = vpop.f32.mrb[0].mxu0
    %v229 = vadd.f32 0.0, %v228
    %v230 = vpop.f32.mrb[0].mxu0
    %231 = vdwg.mxu0
    %v232 = vmul.f32 %v229, 0.35355338
    %v233 = vsel %vm157, %v232, -inf
    %234 = vmax.xlane.f32.xlu0 %v233
    %v235 = vpop.xlane.xlu0 %234
    %v236 = vsub.f32 %v232, %v235
    %v237 = vmul.f32 %v236, 1.442695
    %v238 = vpow.pop %v237
    %v239 = vsel %vm157, %v238, 0.0
    %240 = vadd.xlane.f32.xlu0 %v239
    %v241 = vpop.xlane.xlu0 %240
    %v242 = vrcp.pop %v241
    %v243 = vmul.f32 %v238, %v242
    %244 = vrot.lane.b32.xlu0 %v146, 64
    %v245 = vpop.permute.xlu0 %244
    %v248 = vsel %vm157, %v243, 0
    %250 = vmatprep.subr.mxu0 0.0
    %251 = vmatpush1.msra.mxu0 %v245
    %252 = vmatprep.subr.mxu0 0.0
    %253 = vmatpush1.msra.mxu0 0.0
    %254 = vmatprep.subr.mxu0 0.0
    %255 = vmatpush1.msra.mxu0 0.0
    %256 = vmatprep.subr.mxu0 0.0
    %257 = vmatpush1.msra.mxu0 0.0
    %258 = vmatprep.subr.mxu0 0.0
    %259 = vmatpush1.msra.mxu0 0.0
    %260 = vmatprep.subr.mxu0 0.0
    %261 = vmatpush1.msra.mxu0 0.0
    %262 = vmatprep.subr.mxu0 0.0
    %263 = vmatpush1.msra.mxu0 0.0
    %264 = vmatprep.subr.mxu0 0.0
    %265 = vmatpush1.msra.mxu0 0.0
    %266 = vmatprep.subr.mxu0 0.0
    %267 = vmatpush1.msra.mxu0 0.0
    %268 = vmatprep.subr.mxu0 0.0
    %269 = vmatpush1.msra.mxu0 0.0
    %270 = vmatprep.subr.mxu0 0.0
    %271 = vmatpush1.msra.mxu0 0.0
    %272 = vmatprep.subr.mxu0 0.0
    %273 = vmatpush1.msra.mxu0 0.0
    %274 = vmatprep.subr.mxu0 0.0
    %275 = vmatpush1.msra.mxu0 0.0
    %276 = vmatprep.subr.mxu0 0.0
    %277 = vmatpush1.msra.mxu0 0.0
    %278 = vmatprep.subr.mxu0 0.0
    %279 = vmatpush1.msra.mxu0 0.0
    %280 = vmatprep.subr.mxu0 0.0
    %281 = vmatpush1.msra.mxu0 0.0
    %282 = vmatprep.subr.mxu0 0.0
    %283 = vmatpush1.msra.mxu0 0.0
    %284 = vmatprep.subr.mxu0 0.0
    %285 = vmatpush1.msra.mxu0 0.0
    %286 = vmatprep.subr.mxu0 0.0
    %287 = vmatpush1.msra.mxu0 0.0
    %288 = vmatprep.subr.mxu0 0.0
    %289 = vmatpush1.msra.mxu0 0.0
    %290 = vmatprep.subr.mxu0 0.0
    %291 = vmatpush1.msra.mxu0 0.0
    %292 = vmatprep.subr.mxu0 0.0
    %293 = vmatpush1.msra.mxu0 0.0
    %294 = vmatprep.subr.mxu0 0.0
    %295 = vmatpush1.msra.mxu0 0.0
    %296 = vmatprep.subr.mxu0 0.0
    %297 = vmatpush1.msra.mxu0 0.0
    %298 = vmatprep.subr.mxu0 0.0
    %299 = vmatpush1.msra.mxu0 0.0
    %300 = vmatprep.subr.mxu0 0.0
    %301 = vmatpush1.msra.mxu0 0.0
    %302 = vmatprep.subr.mxu0 0.0
    %303 = vmatpush1.msra.mxu0 0.0
    %304 = vmatprep.subr.mxu0 0.0
    %305 = vmatpush1.msra.mxu0 0.0
    %306 = vmatprep.subr.mxu0 0.0
    %307 = vmatpush1.msra.mxu0 0.0
    %308 = vmatprep.subr.mxu0 0.0
    %309 = vmatpush1.msra.mxu0 0.0
    %310 = vmatprep.subr.mxu0 0.0
    %311 = vmatpush1.msra.mxu0 0.0
    %312 = vmatprep.subr.mxu0 0.0
    %313 = vmatpush1.msra.mxu0 0.0
    %314 = vmatprep.mubr.f32.mxu0 0.0
    %315 = vmatmul.mubr.f32.gmra.mrb[0].mxu0 %v248
    %v316 = vpop.f32.mrb[0].mxu0
    %v317 = vadd.f32 0.0, %v316
    %v318 = vpop.f32.mrb[0].mxu0
    %319 = vdwg.mxu0
    %320 = vrot.lane.b32.xlu0 %v146, 120
    %v321 = vpop.permute.xlu0 %320
    %322 = vrot.lane.b32.xlu0 %v146, 88
    %v323 = vpop.permute.xlu0 %322
    %v324 = vsel %vm157, %v321, 0
    %v326 = vsel %vm157, %v323, 0
    %328 = vmatprep.subr.mxu0 0.0
    %329 = vmatpush1.xpose.msra.mxu0 %v326
    %330 = vmatprep.subr.mxu0 0.0
    %331 = vmatpush1.xpose.msra.mxu0 0.0
    %332 = vmatprep.subr.mxu0 0.0
    %333 = vmatpush1.xpose.msra.mxu0 0.0
    %334 = vmatprep.subr.mxu0 0.0
    %335 = vmatpush1.xpose.msra.mxu0 0.0
    %336 = vmatprep.subr.mxu0 0.0
    %337 = vmatpush1.xpose.msra.mxu0 0.0
    %338 = vmatprep.subr.mxu0 0.0
    %339 = vmatpush1.xpose.msra.mxu0 0.0
    %340 = vmatprep.subr.mxu0 0.0
    %341 = vmatpush1.xpose.msra.mxu0 0.0
    %342 = vmatprep.subr.mxu0 0.0
    %343 = vmatpush1.xpose.msra.mxu0 0.0
    %344 = vmatprep.subr.mxu0 0.0
    %345 = vmatpush1.xpose.msra.mxu0 0.0
    %346 = vmatprep.subr.mxu0 0.0
    %347 = vmatpush1.xpose.msra.mxu0 0.0
    %348 = vmatprep.subr.mxu0 0.0
    %349 = vmatpush1.xpose.msra.mxu0 0.0
    %350 = vmatprep.subr.mxu0 0.0
    %351 = vmatpush1.xpose.msra.mxu0 0.0
    %352 = vmatprep.subr.mxu0 0.0
    %353 = vmatpush1.xpose.msra.mxu0 0.0
    %354 = vmatprep.subr.mxu0 0.0
    %355 = vmatpush1.xpose.msra.mxu0 0.0
    %356 = vmatprep.subr.mxu0 0.0
    %357 = vmatpush1.xpose.msra.mxu0 0.0
    %358 = vmatprep.subr.mxu0 0.0
    %359 = vmatpush1.xpose.msra.mxu0 0.0
    %360 = vmatprep.subr.mxu0 0.0
    %361 = vmatpush1.xpose.msra.mxu0 0.0
    %362 = vmatprep.subr.mxu0 0.0
    %363 = vmatpush1.xpose.msra.mxu0 0.0
    %364 = vmatprep.subr.mxu0 0.0
    %365 = vmatpush1.xpose.msra.mxu0 0.0
    %366 = vmatprep.subr.mxu0 0.0
    %367 = vmatpush1.xpose.msra.mxu0 0.0
    %368 = vmatprep.subr.mxu0 0.0
    %369 = vmatpush1.xpose.msra.mxu0 0.0
    %370 = vmatprep.subr.mxu0 0.0
    %371 = vmatpush1.xpose.msra.mxu0 0.0
    %372 = vmatprep.subr.mxu0 0.0
    %373 = vmatpush1.xpose.msra.mxu0 0.0
    %374 = vmatprep.subr.mxu0 0.0
    %375 = vmatpush1.xpose.msra.mxu0 0.0
    %376 = vmatprep.subr.mxu0 0.0
    %377 = vmatpush1.xpose.msra.mxu0 0.0
    %378 = vmatprep.subr.mxu0 0.0
    %379 = vmatpush1.xpose.msra.mxu0 0.0
    %380 = vmatprep.subr.mxu0 0.0
    %381 = vmatpush1.xpose.msra.mxu0 0.0
    %382 = vmatprep.subr.mxu0 0.0
    %383 = vmatpush1.xpose.msra.mxu0 0.0
    %384 = vmatprep.subr.mxu0 0.0
    %385 = vmatpush1.xpose.msra.mxu0 0.0
    %386 = vmatprep.subr.mxu0 0.0
    %387 = vmatpush1.xpose.msra.mxu0 0.0
    %388 = vmatprep.subr.mxu0 0.0
    %389 = vmatpush1.xpose.msra.mxu0 0.0
    %390 = vmatprep.subr.mxu0 0.0
    %391 = vmatpush1.xpose.msra.mxu0 0.0
    %392 = vmatprep.mubr.f32.mxu0 0.0
    %393 = vmatmul.mubr.f32.gmra.mrb[0].mxu0 %v324
    %v394 = vpop.f32.mrb[0].mxu0
    %v395 = vadd.f32 0.0, %v394
    %v396 = vpop.f32.mrb[0].mxu0
    %397 = vdwg.mxu0
    %v398 = vmul.f32 %v395, 0.35355338
    %v399 = vsel %vm157, %v398, -inf
    %400 = vmax.xlane.f32.xlu0 %v399
    %v401 = vpop.xlane.xlu0 %400
    %v402 = vsub.f32 %v398, %v401
    %v403 = vmul.f32 %v402, 1.442695
    %v404 = vpow.pop %v403
    %v405 = vsel %vm157, %v404, 0.0
    %406 = vadd.xlane.f32.xlu0 %v405
    %v407 = vpop.xlane.xlu0 %406
    %v408 = vrcp.pop %v407
    %v409 = vmul.f32 %v404, %v408
    %410 = vrot.lane.b32.xlu0 %v146, 56
    %v411 = vpop.permute.xlu0 %410
    %v414 = vsel %vm157, %v409, 0
    %416 = vmatprep.subr.mxu0 0.0
    %417 = vmatpush1.msra.mxu0 %v411
    %418 = vmatprep.subr.mxu0 0.0
    %419 = vmatpush1.msra.mxu0 0.0
    %420 = vmatprep.subr.mxu0 0.0
    %421 = vmatpush1.msra.mxu0 0.0
    %422 = vmatprep.subr.mxu0 0.0
    %423 = vmatpush1.msra.mxu0 0.0
    %424 = vmatprep.subr.mxu0 0.0
    %425 = vmatpush1.msra.mxu0 0.0
    %426 = vmatprep.subr.mxu0 0.0
    %427 = vmatpush1.msra.mxu0 0.0
    %428 = vmatprep.subr.mxu0 0.0
    %429 = vmatpush1.msra.mxu0 0.0
    %430 = vmatprep.subr.mxu0 0.0
    %431 = vmatpush1.msra.mxu0 0.0
    %432 = vmatprep.subr.mxu0 0.0
    %433 = vmatpush1.msra.mxu0 0.0
    %434 = vmatprep.subr.mxu0 0.0
    %435 = vmatpush1.msra.mxu0 0.0
    %436 = vmatprep.subr.mxu0 0.0
    %437 = vmatpush1.msra.mxu0 0.0
    %438 = vmatprep.subr.mxu0 0.0
    %439 = vmatpush1.msra.mxu0 0.0
    %440 = vmatprep.subr.mxu0 0.0
    %441 = vmatpush1.msra.mxu0 0.0
    %442 = vmatprep.subr.mxu0 0.0
    %443 = vmatpush1.msra.mxu0 0.0
    %444 = vmatprep.subr.mxu0 0.0
    %445 = vmatpush1.msra.mxu0 0.0
    %446 = vmatprep.subr.mxu0 0.0
    %447 = vmatpush1.msra.mxu0 0.0
    %448 = vmatprep.subr.mxu0 0.0
    %449 = vmatpush1.msra.mxu0 0.0
    %450 = vmatprep.subr.mxu0 0.0
    %451 = vmatpush1.msra.mxu0 0.0
    %452 = vmatprep.subr.mxu0 0.0
    %453 = vmatpush1.msra.mxu0 0.0
    %454 = vmatprep.subr.mxu0 0.0
    %455 = vmatpush1.msra.mxu0 0.0
    %456 = vmatprep.subr.mxu0 0.0
    %457 = vmatpush1.msra.mxu0 0.0
    %458 = vmatprep.subr.mxu0 0.0
    %459 = vmatpush1.msra.mxu0 0.0
    %460 = vmatprep.subr.mxu0 0.0
    %461 = vmatpush1.msra.mxu0 0.0
    %462 = vmatprep.subr.mxu0 0.0
    %463 = vmatpush1.msra.mxu0 0.0
    %464 = vmatprep.subr.mxu0 0.0
    %465 = vmatpush1.msra.mxu0 0.0
    %466 = vmatprep.subr.mxu0 0.0
    %467 = vmatpush1.msra.mxu0 0.0
    %468 = vmatprep.subr.mxu0 0.0
    %469 = vmatpush1.msra.mxu0 0.0
    %470 = vmatprep.subr.mxu0 0.0
    %471 = vmatpush1.msra.mxu0 0.0
    %472 = vmatprep.subr.mxu0 0.0
    %473 = vmatpush1.msra.mxu0 0.0
    %474 = vmatprep.subr.mxu0 0.0
    %475 = vmatpush1.msra.mxu0 0.0
    %476 = vmatprep.subr.mxu0 0.0
    %477 = vmatpush1.msra.mxu0 0.0
    %478 = vmatprep.subr.mxu0 0.0
    %479 = vmatpush1.msra.mxu0 0.0
    %480 = vmatprep.mubr.f32.mxu0 0.0
    %481 = vmatmul.mubr.f32.gmra.mrb[0].mxu0 %v414
    %v482 = vpop.f32.mrb[0].mxu0
    %v483 = vadd.f32 0.0, %v482
    %v484 = vpop.f32.mrb[0].mxu0
    %485 = vdwg.mxu0
    %v487 = vsel %vm157, %v483, 0
    %489 = vmatprep.subr.mxu0 0.0
    %490 = vmatpush1.msra.mxu0 %v43
    %491 = vmatprep.subr.mxu0 0.0
    %492 = vmatpush1.msra.mxu0 0.0
    %493 = vmatprep.subr.mxu0 0.0
    %494 = vmatpush1.msra.mxu0 0.0
    %495 = vmatprep.subr.mxu0 0.0
    %496 = vmatpush1.msra.mxu0 0.0
    %497 = vmatprep.subr.mxu0 0.0
    %498 = vmatpush1.msra.mxu0 0.0
    %499 = vmatprep.subr.mxu0 0.0
    %500 = vmatpush1.msra.mxu0 0.0
    %501 = vmatprep.subr.mxu0 0.0
    %502 = vmatpush1.msra.mxu0 0.0
    %503 = vmatprep.subr.mxu0 0.0
    %504 = vmatpush1.msra.mxu0 0.0
    %505 = vmatprep.subr.mxu0 0.0
    %506 = vmatpush1.msra.mxu0 0.0
    %507 = vmatprep.subr.mxu0 0.0
    %508 = vmatpush1.msra.mxu0 0.0
    %509 = vmatprep.subr.mxu0 0.0
    %510 = vmatpush1.msra.mxu0 0.0
    %511 = vmatprep.subr.mxu0 0.0
    %512 = vmatpush1.msra.mxu0 0.0
    %513 = vmatprep.subr.mxu0 0.0
    %514 = vmatpush1.msra.mxu0 0.0
    %515 = vmatprep.subr.mxu0 0.0
    %516 = vmatpush1.msra.mxu0 0.0
    %517 = vmatprep.subr.mxu0 0.0
    %518 = vmatpush1.msra.mxu0 0.0
    %519 = vmatprep.subr.mxu0 0.0
    %520 = vmatpush1.msra.mxu0 0.0
    %521 = vmatprep.subr.mxu0 0.0
    %522 = vmatpush1.msra.mxu0 0.0
    %523 = vmatprep.subr.mxu0 0.0
    %524 = vmatpush1.msra.mxu0 0.0
    %525 = vmatprep.subr.mxu0 0.0
    %526 = vmatpush1.msra.mxu0 0.0
    %527 = vmatprep.subr.mxu0 0.0
    %528 = vmatpush1.msra.mxu0 0.0
    %529 = vmatprep.subr.mxu0 0.0
    %530 = vmatpush1.msra.mxu0 0.0
    %531 = vmatprep.subr.mxu0 0.0
    %532 = vmatpush1.msra.mxu0 0.0
    %533 = vmatprep.subr.mxu0 0.0
    %534 = vmatpush1.msra.mxu0 0.0
    %535 = vmatprep.subr.mxu0 0.0
    %536 = vmatpush1.msra.mxu0 0.0
    %537 = vmatprep.subr.mxu0 0.0
    %538 = vmatpush1.msra.mxu0 0.0
    %539 = vmatprep.subr.mxu0 0.0
    %540 = vmatpush1.msra.mxu0 0.0
    %541 = vmatprep.subr.mxu0 0.0
    %542 = vmatpush1.msra.mxu0 0.0
    %543 = vmatprep.subr.mxu0 0.0
    %544 = vmatpush1.msra.mxu0 0.0
    %545 = vmatprep.subr.mxu0 0.0
    %546 = vmatpush1.msra.mxu0 0.0
    %547 = vmatprep.subr.mxu0 0.0
    %548 = vmatpush1.msra.mxu0 0.0
    %549 = vmatprep.subr.mxu0 0.0
    %550 = vmatpush1.msra.mxu0 0.0
    %551 = vmatprep.subr.mxu0 0.0
    %552 = vmatpush1.msra.mxu0 0.0
    %553 = vmatprep.mubr.f32.mxu0 0.0
    %554 = vmatmul.mubr.f32.gmra.mrb[0].mxu0 %v487
    %v555 = vpop.f32.mrb[0].mxu0
    %v556 = vadd.f32 0.0, %v555
    %v557 = vpop.f32.mrb[0].mxu0
    %558 = vdwg.mxu0
    %v560 = vsel %vm157, %v317, 0
    %562 = vmatprep.subr.mxu0 0.0
    %563 = vmatpush1.msra.mxu0 %v42
    %564 = vmatprep.subr.mxu0 0.0
    %565 = vmatpush1.msra.mxu0 0.0
    %566 = vmatprep.subr.mxu0 0.0
    %567 = vmatpush1.msra.mxu0 0.0
    %568 = vmatprep.subr.mxu0 0.0
    %569 = vmatpush1.msra.mxu0 0.0
    %570 = vmatprep.subr.mxu0 0.0
    %571 = vmatpush1.msra.mxu0 0.0
    %572 = vmatprep.subr.mxu0 0.0
    %573 = vmatpush1.msra.mxu0 0.0
    %574 = vmatprep.subr.mxu0 0.0
    %575 = vmatpush1.msra.mxu0 0.0
    %576 = vmatprep.subr.mxu0 0.0
    %577 = vmatpush1.msra.mxu0 0.0
    %578 = vmatprep.subr.mxu0 0.0
    %579 = vmatpush1.msra.mxu0 0.0
    %580 = vmatprep.subr.mxu0 0.0
    %581 = vmatpush1.msra.mxu0 0.0
    %582 = vmatprep.subr.mxu0 0.0
    %583 = vmatpush1.msra.mxu0 0.0
    %584 = vmatprep.subr.mxu0 0.0
    %585 = vmatpush1.msra.mxu0 0.0
    %586 = vmatprep.subr.mxu0 0.0
    %587 = vmatpush1.msra.mxu0 0.0
    %588 = vmatprep.subr.mxu0 0.0
    %589 = vmatpush1.msra.mxu0 0.0
    %590 = vmatprep.subr.mxu0 0.0
    %591 = vmatpush1.msra.mxu0 0.0
    %592 = vmatprep.subr.mxu0 0.0
    %593 = vmatpush1.msra.mxu0 0.0
    %594 = vmatprep.subr.mxu0 0.0
    %595 = vmatpush1.msra.mxu0 0.0
    %596 = vmatprep.subr.mxu0 0.0
    %597 = vmatpush1.msra.mxu0 0.0
    %598 = vmatprep.subr.mxu0 0.0
    %599 = vmatpush1.msra.mxu0 0.0
    %600 = vmatprep.subr.mxu0 0.0
    %601 = vmatpush1.msra.mxu0 0.0
    %602 = vmatprep.subr.mxu0 0.0
    %603 = vmatpush1.msra.mxu0 0.0
    %604 = vmatprep.subr.mxu0 0.0
    %605 = vmatpush1.msra.mxu0 0.0
    %606 = vmatprep.subr.mxu0 0.0
    %607 = vmatpush1.msra.mxu0 0.0
    %608 = vmatprep.subr.mxu0 0.0
    %609 = vmatpush1.msra.mxu0 0.0
    %610 = vmatprep.subr.mxu0 0.0
    %611 = vmatpush1.msra.mxu0 0.0
    %612 = vmatprep.subr.mxu0 0.0
    %613 = vmatpush1.msra.mxu0 0.0
    %614 = vmatprep.subr.mxu0 0.0
    %615 = vmatpush1.msra.mxu0 0.0
    %616 = vmatprep.subr.mxu0 0.0
    %617 = vmatpush1.msra.mxu0 0.0
    %618 = vmatprep.subr.mxu0 0.0
    %619 = vmatpush1.msra.mxu0 0.0
    %620 = vmatprep.subr.mxu0 0.0
    %621 = vmatpush1.msra.mxu0 0.0
    %622 = vmatprep.subr.mxu0 0.0
    %623 = vmatpush1.msra.mxu0 0.0
    %624 = vmatprep.subr.mxu0 0.0
    %625 = vmatpush1.msra.mxu0 0.0
    %626 = vmatprep.mubr.f32.mxu0 0.0
    %627 = vmatmul.mubr.f32.gmra.mrb[0].mxu0 %v560
    %v628 = vpop.f32.mrb[0].mxu0
    %v629 = vadd.f32 %v556, %v628
    %v630 = vpop.f32.mrb[0].mxu0
    %631 = vdwg.mxu0
    %632 = vrot.lane.b32.xlu0 %v146, 112
    %v633 = vpop.permute.xlu0 %632
    %634 = vrot.lane.b32.xlu0 %v146, 80
    %v635 = vpop.permute.xlu0 %634
    %v636 = vsel %vm157, %v633, 0
    %v638 = vsel %vm157, %v635, 0
    %640 = vmatprep.subr.mxu0 0.0
    %641 = vmatpush1.xpose.msra.mxu0 %v638
    %642 = vmatprep.subr.mxu0 0.0
    %643 = vmatpush1.xpose.msra.mxu0 0.0
    %644 = vmatprep.subr.mxu0 0.0
    %645 = vmatpush1.xpose.msra.mxu0 0.0
    %646 = vmatprep.subr.mxu0 0.0
    %647 = vmatpush1.xpose.msra.mxu0 0.0
    %648 = vmatprep.subr.mxu0 0.0
    %649 = vmatpush1.xpose.msra.mxu0 0.0
    %650 = vmatprep.subr.mxu0 0.0
    %651 = vmatpush1.xpose.msra.mxu0 0.0
    %652 = vmatprep.subr.mxu0 0.0
    %653 = vmatpush1.xpose.msra.mxu0 0.0
    %654 = vmatprep.subr.mxu0 0.0
    %655 = vmatpush1.xpose.msra.mxu0 0.0
    %656 = vmatprep.subr.mxu0 0.0
    %657 = vmatpush1.xpose.msra.mxu0 0.0
    %658 = vmatprep.subr.mxu0 0.0
    %659 = vmatpush1.xpose.msra.mxu0 0.0
    %660 = vmatprep.subr.mxu0 0.0
    %661 = vmatpush1.xpose.msra.mxu0 0.0
    %662 = vmatprep.subr.mxu0 0.0
    %663 = vmatpush1.xpose.msra.mxu0 0.0
    %664 = vmatprep.subr.mxu0 0.0
    %665 = vmatpush1.xpose.msra.mxu0 0.0
    %666 = vmatprep.subr.mxu0 0.0
    %667 = vmatpush1.xpose.msra.mxu0 0.0
    %668 = vmatprep.subr.mxu0 0.0
    %669 = vmatpush1.xpose.msra.mxu0 0.0
    %670 = vmatprep.subr.mxu0 0.0
    %671 = vmatpush1.xpose.msra.mxu0 0.0
    %672 = vmatprep.subr.mxu0 0.0
    %673 = vmatpush1.xpose.msra.mxu0 0.0
    %674 = vmatprep.subr.mxu0 0.0
    %675 = vmatpush1.xpose.msra.mxu0 0.0
    %676 = vmatprep.subr.mxu0 0.0
    %677 = vmatpush1.xpose.msra.mxu0 0.0
    %678 = vmatprep.subr.mxu0 0.0
    %679 = vmatpush1.xpose.msra.mxu0 0.0
    %680 = vmatprep.subr.mxu0 0.0
    %681 = vmatpush1.xpose.msra.mxu0 0.0
    %682 = vmatprep.subr.mxu0 0.0
    %683 = vmatpush1.xpose.msra.mxu0 0.0
    %684 = vmatprep.subr.mxu0 0.0
    %685 = vmatpush1.xpose.msra.mxu0 0.0
    %686 = vmatprep.subr.mxu0 0.0
    %687 = vmatpush1.xpose.msra.mxu0 0.0
    %688 = vmatprep.subr.mxu0 0.0
    %689 = vmatpush1.xpose.msra.mxu0 0.0
    %690 = vmatprep.subr.mxu0 0.0
    %691 = vmatpush1.xpose.msra.mxu0 0.0
    %692 = vmatprep.subr.mxu0 0.0
    %693 = vmatpush1.xpose.msra.mxu0 0.0
    %694 = vmatprep.subr.mxu0 0.0
    %695 = vmatpush1.xpose.msra.mxu0 0.0
    %696 = vmatprep.subr.mxu0 0.0
    %697 = vmatpush1.xpose.msra.mxu0 0.0
    %698 = vmatprep.subr.mxu0 0.0
    %699 = vmatpush1.xpose.msra.mxu0 0.0
    %700 = vmatprep.subr.mxu0 0.0
    %701 = vmatpush1.xpose.msra.mxu0 0.0
    %702 = vmatprep.subr.mxu0 0.0
    %703 = vmatpush1.xpose.msra.mxu0 0.0
    %704 = vmatprep.mubr.f32.mxu0 0.0
    %705 = vmatmul.mubr.f32.gmra.mrb[0].mxu0 %v636
    %v706 = vpop.f32.mrb[0].mxu0
    %v707 = vadd.f32 0.0, %v706
    %v708 = vpop.f32.mrb[0].mxu0
    %709 = vdwg.mxu0
    %v710 = vmul.f32 %v707, 0.35355338
    %v711 = vsel %vm157, %v710, -inf
    %712 = vmax.xlane.f32.xlu0 %v711
    %v713 = vpop.xlane.xlu0 %712
    %v714 = vsub.f32 %v710, %v713
    %v715 = vmul.f32 %v714, 1.442695
    %v716 = vpow.pop %v715
    %v717 = vsel %vm157, %v716, 0.0
    %718 = vadd.xlane.f32.xlu0 %v717
    %v719 = vpop.xlane.xlu0 %718
    %v720 = vrcp.pop %v719
    %v721 = vmul.f32 %v716, %v720
    %722 = vrot.lane.b32.xlu0 %v146, 48
    %v723 = vpop.permute.xlu0 %722
    %v726 = vsel %vm157, %v721, 0
    %728 = vmatprep.subr.mxu0 0.0
    %729 = vmatpush1.msra.mxu0 %v723
    %730 = vmatprep.subr.mxu0 0.0
    %731 = vmatpush1.msra.mxu0 0.0
    %732 = vmatprep.subr.mxu0 0.0
    %733 = vmatpush1.msra.mxu0 0.0
    %734 = vmatprep.subr.mxu0 0.0
    %735 = vmatpush1.msra.mxu0 0.0
    %736 = vmatprep.subr.mxu0 0.0
    %737 = vmatpush1.msra.mxu0 0.0
    %738 = vmatprep.subr.mxu0 0.0
    %739 = vmatpush1.msra.mxu0 0.0
    %740 = vmatprep.subr.mxu0 0.0
    %741 = vmatpush1.msra.mxu0 0.0
    %742 = vmatprep.subr.mxu0 0.0
    %743 = vmatpush1.msra.mxu0 0.0
    %744 = vmatprep.subr.mxu0 0.0
    %745 = vmatpush1.msra.mxu0 0.0
    %746 = vmatprep.subr.mxu0 0.0
    %747 = vmatpush1.msra.mxu0 0.0
    %748 = vmatprep.subr.mxu0 0.0
    %749 = vmatpush1.msra.mxu0 0.0
    %750 = vmatprep.subr.mxu0 0.0
    %751 = vmatpush1.msra.mxu0 0.0
    %752 = vmatprep.subr.mxu0 0.0
    %753 = vmatpush1.msra.mxu0 0.0
    %754 = vmatprep.subr.mxu0 0.0
    %755 = vmatpush1.msra.mxu0 0.0
    %756 = vmatprep.subr.mxu0 0.0
    %757 = vmatpush1.msra.mxu0 0.0
    %758 = vmatprep.subr.mxu0 0.0
    %759 = vmatpush1.msra.mxu0 0.0
    %760 = vmatprep.subr.mxu0 0.0
    %761 = vmatpush1.msra.mxu0 0.0
    %762 = vmatprep.subr.mxu0 0.0
    %763 = vmatpush1.msra.mxu0 0.0
    %764 = vmatprep.subr.mxu0 0.0
    %765 = vmatpush1.msra.mxu0 0.0
    %766 = vmatprep.subr.mxu0 0.0
    %767 = vmatpush1.msra.mxu0 0.0
    %768 = vmatprep.subr.mxu0 0.0
    %769 = vmatpush1.msra.mxu0 0.0
    %770 = vmatprep.subr.mxu0 0.0
    %771 = vmatpush1.msra.mxu0 0.0
    %772 = vmatprep.subr.mxu0 0.0
    %773 = vmatpush1.msra.mxu0 0.0
    %774 = vmatprep.subr.mxu0 0.0
    %775 = vmatpush1.msra.mxu0 0.0
    %776 = vmatprep.subr.mxu0 0.0
    %777 = vmatpush1.msra.mxu0 0.0
    %778 = vmatprep.subr.mxu0 0.0
    %779 = vmatpush1.msra.mxu0 0.0
    %780 = vmatprep.subr.mxu0 0.0
    %781 = vmatpush1.msra.mxu0 0.0
    %782 = vmatprep.subr.mxu0 0.0
    %783 = vmatpush1.msra.mxu0 0.0
    %784 = vmatprep.subr.mxu0 0.0
    %785 = vmatpush1.msra.mxu0 0.0
    %786 = vmatprep.subr.mxu0 0.0
    %787 = vmatpush1.msra.mxu0 0.0
    %788 = vmatprep.subr.mxu0 0.0
    %789 = vmatpush1.msra.mxu0 0.0
    %790 = vmatprep.subr.mxu0 0.0
    %791 = vmatpush1.msra.mxu0 0.0
    %792 = vmatprep.mubr.f32.mxu0 0.0
    %793 = vmatmul.mubr.f32.gmra.mrb[0].mxu0 %v726
    %v794 = vpop.f32.mrb[0].mxu0
    %v795 = vadd.f32 0.0, %v794
    %v796 = vpop.f32.mrb[0].mxu0
    %797 = vdwg.mxu0
    %v799 = vsel %vm157, %v795, 0
    %801 = vmatprep.subr.mxu0 0.0
    %802 = vmatpush1.msra.mxu0 %v44
    %803 = vmatprep.subr.mxu0 0.0
    %804 = vmatpush1.msra.mxu0 0.0
    %805 = vmatprep.subr.mxu0 0.0
    %806 = vmatpush1.msra.mxu0 0.0
    %807 = vmatprep.subr.mxu0 0.0
    %808 = vmatpush1.msra.mxu0 0.0
    %809 = vmatprep.subr.mxu0 0.0
    %810 = vmatpush1.msra.mxu0 0.0
    %811 = vmatprep.subr.mxu0 0.0
    %812 = vmatpush1.msra.mxu0 0.0
    %813 = vmatprep.subr.mxu0 0.0
    %814 = vmatpush1.msra.mxu0 0.0
    %815 = vmatprep.subr.mxu0 0.0
    %816 = vmatpush1.msra.mxu0 0.0
    %817 = vmatprep.subr.mxu0 0.0
    %818 = vmatpush1.msra.mxu0 0.0
    %819 = vmatprep.subr.mxu0 0.0
    %820 = vmatpush1.msra.mxu0 0.0
    %821 = vmatprep.subr.mxu0 0.0
    %822 = vmatpush1.msra.mxu0 0.0
    %823 = vmatprep.subr.mxu0 0.0
    %824 = vmatpush1.msra.mxu0 0.0
    %825 = vmatprep.subr.mxu0 0.0
    %826 = vmatpush1.msra.mxu0 0.0
    %827 = vmatprep.subr.mxu0 0.0
    %828 = vmatpush1.msra.mxu0 0.0
    %829 = vmatprep.subr.mxu0 0.0
    %830 = vmatpush1.msra.mxu0 0.0
    %831 = vmatprep.subr.mxu0 0.0
    %832 = vmatpush1.msra.mxu0 0.0
    %833 = vmatprep.subr.mxu0 0.0
    %834 = vmatpush1.msra.mxu0 0.0
    %835 = vmatprep.subr.mxu0 0.0
    %836 = vmatpush1.msra.mxu0 0.0
    %837 = vmatprep.subr.mxu0 0.0
    %838 = vmatpush1.msra.mxu0 0.0
    %839 = vmatprep.subr.mxu0 0.0
    %840 = vmatpush1.msra.mxu0 0.0
    %841 = vmatprep.subr.mxu0 0.0
    %842 = vmatpush1.msra.mxu0 0.0
    %843 = vmatprep.subr.mxu0 0.0
    %844 = vmatpush1.msra.mxu0 0.0
    %845 = vmatprep.subr.mxu0 0.0
    %846 = vmatpush1.msra.mxu0 0.0
    %847 = vmatprep.subr.mxu0 0.0
    %848 = vmatpush1.msra.mxu0 0.0
    %849 = vmatprep.subr.mxu0 0.0
    %850 = vmatpush1.msra.mxu0 0.0
    %851 = vmatprep.subr.mxu0 0.0
    %852 = vmatpush1.msra.mxu0 0.0
    %853 = vmatprep.subr.mxu0 0.0
    %854 = vmatpush1.msra.mxu0 0.0
    %855 = vmatprep.subr.mxu0 0.0
    %856 = vmatpush1.msra.mxu0 0.0
    %857 = vmatprep.subr.mxu0 0.0
    %858 = vmatpush1.msra.mxu0 0.0
    %859 = vmatprep.subr.mxu0 0.0
    %860 = vmatpush1.msra.mxu0 0.0
    %861 = vmatprep.subr.mxu0 0.0
    %862 = vmatpush1.msra.mxu0 0.0
    %863 = vmatprep.subr.mxu0 0.0
    %864 = vmatpush1.msra.mxu0 0.0
    %865 = vmatprep.mubr.f32.mxu0 0.0
    %866 = vmatmul.mubr.f32.gmra.mrb[0].mxu0 %v799
    %v867 = vpop.f32.mrb[0].mxu0
    %v868 = vadd.f32 0.0, %v867
    %v869 = vpop.f32.mrb[0].mxu0
    %870 = vdwg.mxu0
    %v871 = vadd.f32 %v629, %v868
    %872 = vrot.lane.b32.xlu0 %v146, 104
    %v873 = vpop.permute.xlu0 %872
    %874 = vrot.lane.b32.xlu0 %v146, 72
    %v875 = vpop.permute.xlu0 %874
    %v876 = vsel %vm157, %v873, 0
    %v878 = vsel %vm157, %v875, 0
    %880 = vmatprep.subr.mxu0 0.0
    %881 = vmatpush1.xpose.msra.mxu0 %v878
    %882 = vmatprep.subr.mxu0 0.0
    %883 = vmatpush1.xpose.msra.mxu0 0.0
    %884 = vmatprep.subr.mxu0 0.0
    %885 = vmatpush1.xpose.msra.mxu0 0.0
    %886 = vmatprep.subr.mxu0 0.0
    %887 = vmatpush1.xpose.msra.mxu0 0.0
    %888 = vmatprep.subr.mxu0 0.0
    %889 = vmatpush1.xpose.msra.mxu0 0.0
    %890 = vmatprep.subr.mxu0 0.0
    %891 = vmatpush1.xpose.msra.mxu0 0.0
    %892 = vmatprep.subr.mxu0 0.0
    %893 = vmatpush1.xpose.msra.mxu0 0.0
    %894 = vmatprep.subr.mxu0 0.0
    %895 = vmatpush1.xpose.msra.mxu0 0.0
    %896 = vmatprep.subr.mxu0 0.0
    %897 = vmatpush1.xpose.msra.mxu0 0.0
    %898 = vmatprep.subr.mxu0 0.0
    %899 = vmatpush1.xpose.msra.mxu0 0.0
    %900 = vmatprep.subr.mxu0 0.0
    %901 = vmatpush1.xpose.msra.mxu0 0.0
    %902 = vmatprep.subr.mxu0 0.0
    %903 = vmatpush1.xpose.msra.mxu0 0.0
    %904 = vmatprep.subr.mxu0 0.0
    %905 = vmatpush1.xpose.msra.mxu0 0.0
    %906 = vmatprep.subr.mxu0 0.0
    %907 = vmatpush1.xpose.msra.mxu0 0.0
    %908 = vmatprep.subr.mxu0 0.0
    %909 = vmatpush1.xpose.msra.mxu0 0.0
    %910 = vmatprep.subr.mxu0 0.0
    %911 = vmatpush1.xpose.msra.mxu0 0.0
    %912 = vmatprep.subr.mxu0 0.0
    %913 = vmatpush1.xpose.msra.mxu0 0.0
    %914 = vmatprep.subr.mxu0 0.0
    %915 = vmatpush1.xpose.msra.mxu0 0.0
    %916 = vmatprep.subr.mxu0 0.0
    %917 = vmatpush1.xpose.msra.mxu0 0.0
    %918 = vmatprep.subr.mxu0 0.0
    %919 = vmatpush1.xpose.msra.mxu0 0.0
    %920 = vmatprep.subr.mxu0 0.0
    %921 = vmatpush1.xpose.msra.mxu0 0.0
    %922 = vmatprep.subr.mxu0 0.0
    %923 = vmatpush1.xpose.msra.mxu0 0.0
    %924 = vmatprep.subr.mxu0 0.0
    %925 = vmatpush1.xpose.msra.mxu0 0.0
    %926 = vmatprep.subr.mxu0 0.0
    %927 = vmatpush1.xpose.msra.mxu0 0.0
    %928 = vmatprep.subr.mxu0 0.0
    %929 = vmatpush1.xpose.msra.mxu0 0.0
    %930 = vmatprep.subr.mxu0 0.0
    %931 = vmatpush1.xpose.msra.mxu0 0.0
    %932 = vmatprep.subr.mxu0 0.0
    %933 = vmatpush1.xpose.msra.mxu0 0.0
    %934 = vmatprep.subr.mxu0 0.0
    %935 = vmatpush1.xpose.msra.mxu0 0.0
    %936 = vmatprep.subr.mxu0 0.0
    %937 = vmatpush1.xpose.msra.mxu0 0.0
    %938 = vmatprep.subr.mxu0 0.0
    %939 = vmatpush1.xpose.msra.mxu0 0.0
    %940 = vmatprep.subr.mxu0 0.0
    %941 = vmatpush1.xpose.msra.mxu0 0.0
    %942 = vmatprep.subr.mxu0 0.0
    %943 = vmatpush1.xpose.msra.mxu0 0.0
    %944 = vmatprep.mubr.f32.mxu0 0.0
    %945 = vmatmul.mubr.f32.gmra.mrb[0].mxu0 %v876
    %v946 = vpop.f32.mrb[0].mxu0
    %v947 = vadd.f32 0.0, %v946
    %v948 = vpop.f32.mrb[0].mxu0
    %949 = vdwg.mxu0
    %v950 = vmul.f32 %v947, 0.35355338
    %v951 = vsel %vm157, %v950, -inf
    %952 = vmax.xlane.f32.xlu0 %v951
    %v953 = vpop.xlane.xlu0 %952
    %v954 = vsub.f32 %v950, %v953
    %v955 = vmul.f32 %v954, 1.442695
    %v956 = vpow.pop %v955
    %v957 = vsel %vm157, %v956, 0.0
    %958 = vadd.xlane.f32.xlu0 %v957
    %v959 = vpop.xlane.xlu0 %958
    %v960 = vrcp.pop %v959
    %v961 = vmul.f32 %v956, %v960
    %962 = vrot.lane.b32.xlu0 %v146, 40
    %v963 = vpop.permute.xlu0 %962
    %v966 = vsel %vm157, %v961, 0
    %968 = vmatprep.subr.mxu0 0.0
    %969 = vmatpush1.msra.mxu0 %v963
    %970 = vmatprep.subr.mxu0 0.0
    %971 = vmatpush1.msra.mxu0 0.0
    %972 = vmatprep.subr.mxu0 0.0
    %973 = vmatpush1.msra.mxu0 0.0
    %974 = vmatprep.subr.mxu0 0.0
    %975 = vmatpush1.msra.mxu0 0.0
    %976 = vmatprep.subr.mxu0 0.0
    %977 = vmatpush1.msra.mxu0 0.0
    %978 = vmatprep.subr.mxu0 0.0
    %979 = vmatpush1.msra.mxu0 0.0
    %980 = vmatprep.subr.mxu0 0.0
    %981 = vmatpush1.msra.mxu0 0.0
    %982 = vmatprep.subr.mxu0 0.0
    %983 = vmatpush1.msra.mxu0 0.0
    %984 = vmatprep.subr.mxu0 0.0
    %985 = vmatpush1.msra.mxu0 0.0
    %986 = vmatprep.subr.mxu0 0.0
    %987 = vmatpush1.msra.mxu0 0.0
    %988 = vmatprep.subr.mxu0 0.0
    %989 = vmatpush1.msra.mxu0 0.0
    %990 = vmatprep.subr.mxu0 0.0
    %991 = vmatpush1.msra.mxu0 0.0
    %992 = vmatprep.subr.mxu0 0.0
    %993 = vmatpush1.msra.mxu0 0.0
    %994 = vmatprep.subr.mxu0 0.0
    %995 = vmatpush1.msra.mxu0 0.0
    %996 = vmatprep.subr.mxu0 0.0
    %997 = vmatpush1.msra.mxu0 0.0
    %998 = vmatprep.subr.mxu0 0.0
    %999 = vmatpush1.msra.mxu0 0.0
    %1000 = vmatprep.subr.mxu0 0.0
    %1001 = vmatpush1.msra.mxu0 0.0
    %1002 = vmatprep.subr.mxu0 0.0
    %1003 = vmatpush1.msra.mxu0 0.0
    %1004 = vmatprep.subr.mxu0 0.0
    %1005 = vmatpush1.msra.mxu0 0.0
    %1006 = vmatprep.subr.mxu0 0.0
    %1007 = vmatpush1.msra.mxu0 0.0
    %1008 = vmatprep.subr.mxu0 0.0
    %1009 = vmatpush1.msra.mxu0 0.0
    %1010 = vmatprep.subr.mxu0 0.0
    %1011 = vmatpush1.msra.mxu0 0.0
    %1012 = vmatprep.subr.mxu0 0.0
    %1013 = vmatpush1.msra.mxu0 0.0
    %1014 = vmatprep.subr.mxu0 0.0
    %1015 = vmatpush1.msra.mxu0 0.0
    %1016 = vmatprep.subr.mxu0 0.0
    %1017 = vmatpush1.msra.mxu0 0.0
    %1018 = vmatprep.subr.mxu0 0.0
    %1019 = vmatpush1.msra.mxu0 0.0
    %1020 = vmatprep.subr.mxu0 0.0
    %1021 = vmatpush1.msra.mxu0 0.0
    %1022 = vmatprep.subr.mxu0 0.0
    %1023 = vmatpush1.msra.mxu0 0.0
    %1024 = vmatprep.subr.mxu0 0.0
    %1025 = vmatpush1.msra.mxu0 0.0
    %1026 = vmatprep.subr.mxu0 0.0
    %1027 = vmatpush1.msra.mxu0 0.0
    %1028 = vmatprep.subr.mxu0 0.0
    %1029 = vmatpush1.msra.mxu0 0.0
    %1030 = vmatprep.subr.mxu0 0.0
    %1031 = vmatpush1.msra.mxu0 0.0
    %1032 = vmatprep.mubr.f32.mxu0 0.0
    %1033 = vmatmul.mubr.f32.gmra.mrb[0].mxu0 %v966
    %v1034 = vpop.f32.mrb[0].mxu0
    %v1035 = vadd.f32 0.0, %v1034
    %v1036 = vpop.f32.mrb[0].mxu0
    %1037 = vdwg.mxu0
    %v1039 = vsel %vm157, %v1035, 0
    %1041 = vmatprep.subr.mxu0 0.0
    %1042 = vmatpush1.msra.mxu0 %v45
    %1043 = vmatprep.subr.mxu0 0.0
    %1044 = vmatpush1.msra.mxu0 0.0
    %1045 = vmatprep.subr.mxu0 0.0
    %1046 = vmatpush1.msra.mxu0 0.0
    %1047 = vmatprep.subr.mxu0 0.0
    %1048 = vmatpush1.msra.mxu0 0.0
    %1049 = vmatprep.subr.mxu0 0.0
    %1050 = vmatpush1.msra.mxu0 0.0
    %1051 = vmatprep.subr.mxu0 0.0
    %1052 = vmatpush1.msra.mxu0 0.0
    %1053 = vmatprep.subr.mxu0 0.0
    %1054 = vmatpush1.msra.mxu0 0.0
    %1055 = vmatprep.subr.mxu0 0.0
    %1056 = vmatpush1.msra.mxu0 0.0
    %1057 = vmatprep.subr.mxu0 0.0
    %1058 = vmatpush1.msra.mxu0 0.0
    %1059 = vmatprep.subr.mxu0 0.0
    %1060 = vmatpush1.msra.mxu0 0.0
    %1061 = vmatprep.subr.mxu0 0.0
    %1062 = vmatpush1.msra.mxu0 0.0
    %1063 = vmatprep.subr.mxu0 0.0
    %1064 = vmatpush1.msra.mxu0 0.0
    %1065 = vmatprep.subr.mxu0 0.0
    %1066 = vmatpush1.msra.mxu0 0.0
    %1067 = vmatprep.subr.mxu0 0.0
    %1068 = vmatpush1.msra.mxu0 0.0
    %1069 = vmatprep.subr.mxu0 0.0
    %1070 = vmatpush1.msra.mxu0 0.0
    %1071 = vmatprep.subr.mxu0 0.0
    %1072 = vmatpush1.msra.mxu0 0.0
    %1073 = vmatprep.subr.mxu0 0.0
    %1074 = vmatpush1.msra.mxu0 0.0
    %1075 = vmatprep.subr.mxu0 0.0
    %1076 = vmatpush1.msra.mxu0 0.0
    %1077 = vmatprep.subr.mxu0 0.0
    %1078 = vmatpush1.msra.mxu0 0.0
    %1079 = vmatprep.subr.mxu0 0.0
    %1080 = vmatpush1.msra.mxu0 0.0
    %1081 = vmatprep.subr.mxu0 0.0
    %1082 = vmatpush1.msra.mxu0 0.0
    %1083 = vmatprep.subr.mxu0 0.0
    %1084 = vmatpush1.msra.mxu0 0.0
    %1085 = vmatprep.subr.mxu0 0.0
    %1086 = vmatpush1.msra.mxu0 0.0
    %1087 = vmatprep.subr.mxu0 0.0
    %1088 = vmatpush1.msra.mxu0 0.0
    %1089 = vmatprep.subr.mxu0 0.0
    %1090 = vmatpush1.msra.mxu0 0.0
    %1091 = vmatprep.subr.mxu0 0.0
    %1092 = vmatpush1.msra.mxu0 0.0
    %1093 = vmatprep.subr.mxu0 0.0
    %1094 = vmatpush1.msra.mxu0 0.0
    %1095 = vmatprep.subr.mxu0 0.0
    %1096 = vmatpush1.msra.mxu0 0.0
    %1097 = vmatprep.subr.mxu0 0.0
    %1098 = vmatpush1.msra.mxu0 0.0
    %1099 = vmatprep.subr.mxu0 0.0
    %1100 = vmatpush1.msra.mxu0 0.0
    %1101 = vmatprep.subr.mxu0 0.0
    %1102 = vmatpush1.msra.mxu0 0.0
    %1103 = vmatprep.subr.mxu0 0.0
    %1104 = vmatpush1.msra.mxu0 0.0
    %1105 = vmatprep.mubr.f32.mxu0 0.0
    %1106 = vmatmul.mubr.f32.gmra.mrb[0].mxu0 %v1039
    %v1107 = vpop.f32.mrb[0].mxu0
    %v1108 = vadd.f32 0.0, %v1107
    %v1109 = vpop.f32.mrb[0].mxu0
    %1110 = vdwg.mxu0
    %v1111 = vadd.f32 %v871, %v1108
    %1113 = vrot.lane.b32.xlu0 %v151, 96
    %v1114 = vpop.permute.xlu0 %1113
    %v1115 = vsel %vm157, %v151, 0
    %v1117 = vsel %vm157, %v1114, 0
    %1119 = vmatprep.subr.mxu0 0.0
    %1120 = vmatpush1.xpose.msra.mxu0 %v1117
    %1121 = vmatprep.subr.mxu0 0.0
    %1122 = vmatpush1.xpose.msra.mxu0 0.0
    %1123 = vmatprep.subr.mxu0 0.0
    %1124 = vmatpush1.xpose.msra.mxu0 0.0
    %1125 = vmatprep.subr.mxu0 0.0
    %1126 = vmatpush1.xpose.msra.mxu0 0.0
    %1127 = vmatprep.subr.mxu0 0.0
    %1128 = vmatpush1.xpose.msra.mxu0 0.0
    %1129 = vmatprep.subr.mxu0 0.0
    %1130 = vmatpush1.xpose.msra.mxu0 0.0
    %1131 = vmatprep.subr.mxu0 0.0
    %1132 = vmatpush1.xpose.msra.mxu0 0.0
    %1133 = vmatprep.subr.mxu0 0.0
    %1134 = vmatpush1.xpose.msra.mxu0 0.0
    %1135 = vmatprep.subr.mxu0 0.0
    %1136 = vmatpush1.xpose.msra.mxu0 0.0
    %1137 = vmatprep.subr.mxu0 0.0
    %1138 = vmatpush1.xpose.msra.mxu0 0.0
    %1139 = vmatprep.subr.mxu0 0.0
    %1140 = vmatpush1.xpose.msra.mxu0 0.0
    %1141 = vmatprep.subr.mxu0 0.0
    %1142 = vmatpush1.xpose.msra.mxu0 0.0
    %1143 = vmatprep.subr.mxu0 0.0
    %1144 = vmatpush1.xpose.msra.mxu0 0.0
    %1145 = vmatprep.subr.mxu0 0.0
    %1146 = vmatpush1.xpose.msra.mxu0 0.0
    %1147 = vmatprep.subr.mxu0 0.0
    %1148 = vmatpush1.xpose.msra.mxu0 0.0
    %1149 = vmatprep.subr.mxu0 0.0
    %1150 = vmatpush1.xpose.msra.mxu0 0.0
    %1151 = vmatprep.subr.mxu0 0.0
    %1152 = vmatpush1.xpose.msra.mxu0 0.0
    %1153 = vmatprep.subr.mxu0 0.0
    %1154 = vmatpush1.xpose.msra.mxu0 0.0
    %1155 = vmatprep.subr.mxu0 0.0
    %1156 = vmatpush1.xpose.msra.mxu0 0.0
    %1157 = vmatprep.subr.mxu0 0.0
    %1158 = vmatpush1.xpose.msra.mxu0 0.0
    %1159 = vmatprep.subr.mxu0 0.0
    %1160 = vmatpush1.xpose.msra.mxu0 0.0
    %1161 = vmatprep.subr.mxu0 0.0
    %1162 = vmatpush1.xpose.msra.mxu0 0.0
    %1163 = vmatprep.subr.mxu0 0.0
    %1164 = vmatpush1.xpose.msra.mxu0 0.0
    %1165 = vmatprep.subr.mxu0 0.0
    %1166 = vmatpush1.xpose.msra.mxu0 0.0
    %1167 = vmatprep.subr.mxu0 0.0
    %1168 = vmatpush1.xpose.msra.mxu0 0.0
    %1169 = vmatprep.subr.mxu0 0.0
    %1170 = vmatpush1.xpose.msra.mxu0 0.0
    %1171 = vmatprep.subr.mxu0 0.0
    %1172 = vmatpush1.xpose.msra.mxu0 0.0
    %1173 = vmatprep.subr.mxu0 0.0
    %1174 = vmatpush1.xpose.msra.mxu0 0.0
    %1175 = vmatprep.subr.mxu0 0.0
    %1176 = vmatpush1.xpose.msra.mxu0 0.0
    %1177 = vmatprep.subr.mxu0 0.0
    %1178 = vmatpush1.xpose.msra.mxu0 0.0
    %1179 = vmatprep.subr.mxu0 0.0
    %1180 = vmatpush1.xpose.msra.mxu0 0.0
    %1181 = vmatprep.subr.mxu0 0.0
    %1182 = vmatpush1.xpose.msra.mxu0 0.0
    %1183 = vmatprep.mubr.f32.mxu0 0.0
    %1184 = vmatmul.mubr.f32.gmra.mrb[0].mxu0 %v1115
    %v1185 = vpop.f32.mrb[0].mxu0
    %v1186 = vadd.f32 0.0, %v1185
    %v1187 = vpop.f32.mrb[0].mxu0
    %1188 = vdwg.mxu0
    %v1189 = vmul.f32 %v1186, 0.35355338
    %v1190 = vsel %vm157, %v1189, -inf
    %1191 = vmax.xlane.f32.xlu0 %v1190
    %v1192 = vpop.xlane.xlu0 %1191
    %v1193 = vsub.f32 %v1189, %v1192
    %v1194 = vmul.f32 %v1193, 1.442695
    %v1195 = vpow.pop %v1194
    %v1196 = vsel %vm157, %v1195, 0.0
    %1197 = vadd.xlane.f32.xlu0 %v1196
    %v1198 = vpop.xlane.xlu0 %1197
    %v1199 = vrcp.pop %v1198
    %v1200 = vmul.f32 %v1195, %v1199
    %1201 = vrot.lane.b32.xlu0 %v151, 64
    %v1202 = vpop.permute.xlu0 %1201
    %v1205 = vsel %vm157, %v1200, 0
    %1207 = vmatprep.subr.mxu0 0.0
    %1208 = vmatpush1.msra.mxu0 %v1202
    %1209 = vmatprep.subr.mxu0 0.0
    %1210 = vmatpush1.msra.mxu0 0.0
    %1211 = vmatprep.subr.mxu0 0.0
    %1212 = vmatpush1.msra.mxu0 0.0
    %1213 = vmatprep.subr.mxu0 0.0
    %1214 = vmatpush1.msra.mxu0 0.0
    %1215 = vmatprep.subr.mxu0 0.0
    %1216 = vmatpush1.msra.mxu0 0.0
    %1217 = vmatprep.subr.mxu0 0.0
    %1218 = vmatpush1.msra.mxu0 0.0
    %1219 = vmatprep.subr.mxu0 0.0
    %1220 = vmatpush1.msra.mxu0 0.0
    %1221 = vmatprep.subr.mxu0 0.0
    %1222 = vmatpush1.msra.mxu0 0.0
    %1223 = vmatprep.subr.mxu0 0.0
    %1224 = vmatpush1.msra.mxu0 0.0
    %1225 = vmatprep.subr.mxu0 0.0
    %1226 = vmatpush1.msra.mxu0 0.0
    %1227 = vmatprep.subr.mxu0 0.0
    %1228 = vmatpush1.msra.mxu0 0.0
    %1229 = vmatprep.subr.mxu0 0.0
    %1230 = vmatpush1.msra.mxu0 0.0
    %1231 = vmatprep.subr.mxu0 0.0
    %1232 = vmatpush1.msra.mxu0 0.0
    %1233 = vmatprep.subr.mxu0 0.0
    %1234 = vmatpush1.msra.mxu0 0.0
    %1235 = vmatprep.subr.mxu0 0.0
    %1236 = vmatpush1.msra.mxu0 0.0
    %1237 = vmatprep.subr.mxu0 0.0
    %1238 = vmatpush1.msra.mxu0 0.0
    %1239 = vmatprep.subr.mxu0 0.0
    %1240 = vmatpush1.msra.mxu0 0.0
    %1241 = vmatprep.subr.mxu0 0.0
    %1242 = vmatpush1.msra.mxu0 0.0
    %1243 = vmatprep.subr.mxu0 0.0
    %1244 = vmatpush1.msra.mxu0 0.0
    %1245 = vmatprep.subr.mxu0 0.0
    %1246 = vmatpush1.msra.mxu0 0.0
    %1247 = vmatprep.subr.mxu0 0.0
    %1248 = vmatpush1.msra.mxu0 0.0
    %1249 = vmatprep.subr.mxu0 0.0
    %1250 = vmatpush1.msra.mxu0 0.0
    %1251 = vmatprep.subr.mxu0 0.0
    %1252 = vmatpush1.msra.mxu0 0.0
    %1253 = vmatprep.subr.mxu0 0.0
    %1254 = vmatpush1.msra.mxu0 0.0
    %1255 = vmatprep.subr.mxu0 0.0
    %1256 = vmatpush1.msra.mxu0 0.0
    %1257 = vmatprep.subr.mxu0 0.0
    %1258 = vmatpush1.msra.mxu0 0.0
    %1259 = vmatprep.subr.mxu0 0.0
    %1260 = vmatpush1.msra.mxu0 0.0
    %1261 = vmatprep.subr.mxu0 0.0
    %1262 = vmatpush1.msra.mxu0 0.0
    %1263 = vmatprep.subr.mxu0 0.0
    %1264 = vmatpush1.msra.mxu0 0.0
    %1265 = vmatprep.subr.mxu0 0.0
    %1266 = vmatpush1.msra.mxu0 0.0
    %1267 = vmatprep.subr.mxu0 0.0
    %1268 = vmatpush1.msra.mxu0 0.0
    %1269 = vmatprep.subr.mxu0 0.0
    %1270 = vmatpush1.msra.mxu0 0.0
    %1271 = vmatprep.mubr.f32.mxu0 0.0
    %1272 = vmatmul.mubr.f32.gmra.mrb[0].mxu0 %v1205
    %v1273 = vpop.f32.mrb[0].mxu0
    %v1274 = vadd.f32 0.0, %v1273
    %v1275 = vpop.f32.mrb[0].mxu0
    %1276 = vdwg.mxu0
    %1277 = vrot.lane.b32.xlu0 %v151, 120
    %v1278 = vpop.permute.xlu0 %1277
    %1279 = vrot.lane.b32.xlu0 %v151, 88
    %v1280 = vpop.permute.xlu0 %1279
    %v1281 = vsel %vm157, %v1278, 0
    %v1283 = vsel %vm157, %v1280, 0
    %1285 = vmatprep.subr.mxu0 0.0
    %1286 = vmatpush1.xpose.msra.mxu0 %v1283
    %1287 = vmatprep.subr.mxu0 0.0
    %1288 = vmatpush1.xpose.msra.mxu0 0.0
    %1289 = vmatprep.subr.mxu0 0.0
    %1290 = vmatpush1.xpose.msra.mxu0 0.0
    %1291 = vmatprep.subr.mxu0 0.0
    %1292 = vmatpush1.xpose.msra.mxu0 0.0
    %1293 = vmatprep.subr.mxu0 0.0
    %1294 = vmatpush1.xpose.msra.mxu0 0.0
    %1295 = vmatprep.subr.mxu0 0.0
    %1296 = vmatpush1.xpose.msra.mxu0 0.0
    %1297 = vmatprep.subr.mxu0 0.0
    %1298 = vmatpush1.xpose.msra.mxu0 0.0
    %1299 = vmatprep.subr.mxu0 0.0
    %1300 = vmatpush1.xpose.msra.mxu0 0.0
    %1301 = vmatprep.subr.mxu0 0.0
    %1302 = vmatpush1.xpose.msra.mxu0 0.0
    %1303 = vmatprep.subr.mxu0 0.0
    %1304 = vmatpush1.xpose.msra.mxu0 0.0
    %1305 = vmatprep.subr.mxu0 0.0
    %1306 = vmatpush1.xpose.msra.mxu0 0.0
    %1307 = vmatprep.subr.mxu0 0.0
    %1308 = vmatpush1.xpose.msra.mxu0 0.0
    %1309 = vmatprep.subr.mxu0 0.0
    %1310 = vmatpush1.xpose.msra.mxu0 0.0
    %1311 = vmatprep.subr.mxu0 0.0
    %1312 = vmatpush1.xpose.msra.mxu0 0.0
    %1313 = vmatprep.subr.mxu0 0.0
    %1314 = vmatpush1.xpose.msra.mxu0 0.0
    %1315 = vmatprep.subr.mxu0 0.0
    %1316 = vmatpush1.xpose.msra.mxu0 0.0
    %1317 = vmatprep.subr.mxu0 0.0
    %1318 = vmatpush1.xpose.msra.mxu0 0.0
    %1319 = vmatprep.subr.mxu0 0.0
    %1320 = vmatpush1.xpose.msra.mxu0 0.0
    %1321 = vmatprep.subr.mxu0 0.0
    %1322 = vmatpush1.xpose.msra.mxu0 0.0
    %1323 = vmatprep.subr.mxu0 0.0
    %1324 = vmatpush1.xpose.msra.mxu0 0.0
    %1325 = vmatprep.subr.mxu0 0.0
    %1326 = vmatpush1.xpose.msra.mxu0 0.0
    %1327 = vmatprep.subr.mxu0 0.0
    %1328 = vmatpush1.xpose.msra.mxu0 0.0
    %1329 = vmatprep.subr.mxu0 0.0
    %1330 = vmatpush1.xpose.msra.mxu0 0.0
    %1331 = vmatprep.subr.mxu0 0.0
    %1332 = vmatpush1.xpose.msra.mxu0 0.0
    %1333 = vmatprep.subr.mxu0 0.0
    %1334 = vmatpush1.xpose.msra.mxu0 0.0
    %1335 = vmatprep.subr.mxu0 0.0
    %1336 = vmatpush1.xpose.msra.mxu0 0.0
    %1337 = vmatprep.subr.mxu0 0.0
    %1338 = vmatpush1.xpose.msra.mxu0 0.0
    %1339 = vmatprep.subr.mxu0 0.0
    %1340 = vmatpush1.xpose.msra.mxu0 0.0
    %1341 = vmatprep.subr.mxu0 0.0
    %1342 = vmatpush1.xpose.msra.mxu0 0.0
    %1343 = vmatprep.subr.mxu0 0.0
    %1344 = vmatpush1.xpose.msra.mxu0 0.0
    %1345 = vmatprep.subr.mxu0 0.0
    %1346 = vmatpush1.xpose.msra.mxu0 0.0
    %1347 = vmatprep.subr.mxu0 0.0
    %1348 = vmatpush1.xpose.msra.mxu0 0.0
    %1349 = vmatprep.mubr.f32.mxu0 0.0
    %1350 = vmatmul.mubr.f32.gmra.mrb[0].mxu0 %v1281
    %v1351 = vpop.f32.mrb[0].mxu0
    %v1352 = vadd.f32 0.0, %v1351
    %v1353 = vpop.f32.mrb[0].mxu0
    %1354 = vdwg.mxu0
    %v1355 = vmul.f32 %v1352, 0.35355338
    %v1356 = vsel %vm157, %v1355, -inf
    %1357 = vmax.xlane.f32.xlu0 %v1356
    %v1358 = vpop.xlane.xlu0 %1357
    %v1359 = vsub.f32 %v1355, %v1358
    %v1360 = vmul.f32 %v1359, 1.442695
    %v1361 = vpow.pop %v1360
    %v1362 = vsel %vm157, %v1361, 0.0
    %1363 = vadd.xlane.f32.xlu0 %v1362
    %v1364 = vpop.xlane.xlu0 %1363
    %v1365 = vrcp.pop %v1364
    %v1366 = vmul.f32 %v1361, %v1365
    %1367 = vrot.lane.b32.xlu0 %v151, 56
    %v1368 = vpop.permute.xlu0 %1367
    %v1371 = vsel %vm157, %v1366, 0
    %1373 = vmatprep.subr.mxu0 0.0
    %1374 = vmatpush1.msra.mxu0 %v1368
    %1375 = vmatprep.subr.mxu0 0.0
    %1376 = vmatpush1.msra.mxu0 0.0
    %1377 = vmatprep.subr.mxu0 0.0
    %1378 = vmatpush1.msra.mxu0 0.0
    %1379 = vmatprep.subr.mxu0 0.0
    %1380 = vmatpush1.msra.mxu0 0.0
    %1381 = vmatprep.subr.mxu0 0.0
    %1382 = vmatpush1.msra.mxu0 0.0
    %1383 = vmatprep.subr.mxu0 0.0
    %1384 = vmatpush1.msra.mxu0 0.0
    %1385 = vmatprep.subr.mxu0 0.0
    %1386 = vmatpush1.msra.mxu0 0.0
    %1387 = vmatprep.subr.mxu0 0.0
    %1388 = vmatpush1.msra.mxu0 0.0
    %1389 = vmatprep.subr.mxu0 0.0
    %1390 = vmatpush1.msra.mxu0 0.0
    %1391 = vmatprep.subr.mxu0 0.0
    %1392 = vmatpush1.msra.mxu0 0.0
    %1393 = vmatprep.subr.mxu0 0.0
    %1394 = vmatpush1.msra.mxu0 0.0
    %1395 = vmatprep.subr.mxu0 0.0
    %1396 = vmatpush1.msra.mxu0 0.0
    %1397 = vmatprep.subr.mxu0 0.0
    %1398 = vmatpush1.msra.mxu0 0.0
    %1399 = vmatprep.subr.mxu0 0.0
    %1400 = vmatpush1.msra.mxu0 0.0
    %1401 = vmatprep.subr.mxu0 0.0
    %1402 = vmatpush1.msra.mxu0 0.0
    %1403 = vmatprep.subr.mxu0 0.0
    %1404 = vmatpush1.msra.mxu0 0.0
    %1405 = vmatprep.subr.mxu0 0.0
    %1406 = vmatpush1.msra.mxu0 0.0
    %1407 = vmatprep.subr.mxu0 0.0
    %1408 = vmatpush1.msra.mxu0 0.0
    %1409 = vmatprep.subr.mxu0 0.0
    %1410 = vmatpush1.msra.mxu0 0.0
    %1411 = vmatprep.subr.mxu0 0.0
    %1412 = vmatpush1.msra.mxu0 0.0
    %1413 = vmatprep.subr.mxu0 0.0
    %1414 = vmatpush1.msra.mxu0 0.0
    %1415 = vmatprep.subr.mxu0 0.0
    %1416 = vmatpush1.msra.mxu0 0.0
    %1417 = vmatprep.subr.mxu0 0.0
    %1418 = vmatpush1.msra.mxu0 0.0
    %1419 = vmatprep.subr.mxu0 0.0
    %1420 = vmatpush1.msra.mxu0 0.0
    %1421 = vmatprep.subr.mxu0 0.0
    %1422 = vmatpush1.msra.mxu0 0.0
    %1423 = vmatprep.subr.mxu0 0.0
    %1424 = vmatpush1.msra.mxu0 0.0
    %1425 = vmatprep.subr.mxu0 0.0
    %1426 = vmatpush1.msra.mxu0 0.0
    %1427 = vmatprep.subr.mxu0 0.0
    %1428 = vmatpush1.msra.mxu0 0.0
    %1429 = vmatprep.subr.mxu0 0.0
    %1430 = vmatpush1.msra.mxu0 0.0
    %1431 = vmatprep.subr.mxu0 0.0
    %1432 = vmatpush1.msra.mxu0 0.0
    %1433 = vmatprep.subr.mxu0 0.0
    %1434 = vmatpush1.msra.mxu0 0.0
    %1435 = vmatprep.subr.mxu0 0.0
    %1436 = vmatpush1.msra.mxu0 0.0
    %1437 = vmatprep.mubr.f32.mxu0 0.0
    %1438 = vmatmul.mubr.f32.gmra.mrb[0].mxu0 %v1371
    %v1439 = vpop.f32.mrb[0].mxu0
    %v1440 = vadd.f32 0.0, %v1439
    %v1441 = vpop.f32.mrb[0].mxu0
    %1442 = vdwg.mxu0
    %v1444 = vsel %vm157, %v1440, 0
    %1446 = vmatprep.subr.mxu0 0.0
    %1447 = vmatpush1.msra.mxu0 %v43
    %1448 = vmatprep.subr.mxu0 0.0
    %1449 = vmatpush1.msra.mxu0 0.0
    %1450 = vmatprep.subr.mxu0 0.0
    %1451 = vmatpush1.msra.mxu0 0.0
    %1452 = vmatprep.subr.mxu0 0.0
    %1453 = vmatpush1.msra.mxu0 0.0
    %1454 = vmatprep.subr.mxu0 0.0
    %1455 = vmatpush1.msra.mxu0 0.0
    %1456 = vmatprep.subr.mxu0 0.0
    %1457 = vmatpush1.msra.mxu0 0.0
    %1458 = vmatprep.subr.mxu0 0.0
    %1459 = vmatpush1.msra.mxu0 0.0
    %1460 = vmatprep.subr.mxu0 0.0
    %1461 = vmatpush1.msra.mxu0 0.0
    %1462 = vmatprep.subr.mxu0 0.0
    %1463 = vmatpush1.msra.mxu0 0.0
    %1464 = vmatprep.subr.mxu0 0.0
    %1465 = vmatpush1.msra.mxu0 0.0
    %1466 = vmatprep.subr.mxu0 0.0
    %1467 = vmatpush1.msra.mxu0 0.0
    %1468 = vmatprep.subr.mxu0 0.0
    %1469 = vmatpush1.msra.mxu0 0.0
    %1470 = vmatprep.subr.mxu0 0.0
    %1471 = vmatpush1.msra.mxu0 0.0
    %1472 = vmatprep.subr.mxu0 0.0
    %1473 = vmatpush1.msra.mxu0 0.0
    %1474 = vmatprep.subr.mxu0 0.0
    %1475 = vmatpush1.msra.mxu0 0.0
    %1476 = vmatprep.subr.mxu0 0.0
    %1477 = vmatpush1.msra.mxu0 0.0
    %1478 = vmatprep.subr.mxu0 0.0
    %1479 = vmatpush1.msra.mxu0 0.0
    %1480 = vmatprep.subr.mxu0 0.0
    %1481 = vmatpush1.msra.mxu0 0.0
    %1482 = vmatprep.subr.mxu0 0.0
    %1483 = vmatpush1.msra.mxu0 0.0
    %1484 = vmatprep.subr.mxu0 0.0
    %1485 = vmatpush1.msra.mxu0 0.0
    %1486 = vmatprep.subr.mxu0 0.0
    %1487 = vmatpush1.msra.mxu0 0.0
    %1488 = vmatprep.subr.mxu0 0.0
    %1489 = vmatpush1.msra.mxu0 0.0
    %1490 = vmatprep.subr.mxu0 0.0
    %1491 = vmatpush1.msra.mxu0 0.0
    %1492 = vmatprep.subr.mxu0 0.0
    %1493 = vmatpush1.msra.mxu0 0.0
    %1494 = vmatprep.subr.mxu0 0.0
    %1495 = vmatpush1.msra.mxu0 0.0
    %1496 = vmatprep.subr.mxu0 0.0
    %1497 = vmatpush1.msra.mxu0 0.0
    %1498 = vmatprep.subr.mxu0 0.0
    %1499 = vmatpush1.msra.mxu0 0.0
    %1500 = vmatprep.subr.mxu0 0.0
    %1501 = vmatpush1.msra.mxu0 0.0
    %1502 = vmatprep.subr.mxu0 0.0
    %1503 = vmatpush1.msra.mxu0 0.0
    %1504 = vmatprep.subr.mxu0 0.0
    %1505 = vmatpush1.msra.mxu0 0.0
    %1506 = vmatprep.subr.mxu0 0.0
    %1507 = vmatpush1.msra.mxu0 0.0
    %1508 = vmatprep.subr.mxu0 0.0
    %1509 = vmatpush1.msra.mxu0 0.0
    %1510 = vmatprep.mubr.f32.mxu0 0.0
    %1511 = vmatmul.mubr.f32.gmra.mrb[0].mxu0 %v1444
    %v1512 = vpop.f32.mrb[0].mxu0
    %v1513 = vadd.f32 0.0, %v1512
    %v1514 = vpop.f32.mrb[0].mxu0
    %1515 = vdwg.mxu0
    %v1517 = vsel %vm157, %v1274, 0
    %1519 = vmatprep.subr.mxu0 0.0
    %1520 = vmatpush1.msra.mxu0 %v42
    %1521 = vmatprep.subr.mxu0 0.0
    %1522 = vmatpush1.msra.mxu0 0.0
    %1523 = vmatprep.subr.mxu0 0.0
    %1524 = vmatpush1.msra.mxu0 0.0
    %1525 = vmatprep.subr.mxu0 0.0
    %1526 = vmatpush1.msra.mxu0 0.0
    %1527 = vmatprep.subr.mxu0 0.0
    %1528 = vmatpush1.msra.mxu0 0.0
    %1529 = vmatprep.subr.mxu0 0.0
    %1530 = vmatpush1.msra.mxu0 0.0
    %1531 = vmatprep.subr.mxu0 0.0
    %1532 = vmatpush1.msra.mxu0 0.0
    %1533 = vmatprep.subr.mxu0 0.0
    %1534 = vmatpush1.msra.mxu0 0.0
    %1535 = vmatprep.subr.mxu0 0.0
    %1536 = vmatpush1.msra.mxu0 0.0
    %1537 = vmatprep.subr.mxu0 0.0
    %1538 = vmatpush1.msra.mxu0 0.0
    %1539 = vmatprep.subr.mxu0 0.0
    %1540 = vmatpush1.msra.mxu0 0.0
    %1541 = vmatprep.subr.mxu0 0.0
    %1542 = vmatpush1.msra.mxu0 0.0
    %1543 = vmatprep.subr.mxu0 0.0
    %1544 = vmatpush1.msra.mxu0 0.0
    %1545 = vmatprep.subr.mxu0 0.0
    %1546 = vmatpush1.msra.mxu0 0.0
    %1547 = vmatprep.subr.mxu0 0.0
    %1548 = vmatpush1.msra.mxu0 0.0
    %1549 = vmatprep.subr.mxu0 0.0
    %1550 = vmatpush1.msra.mxu0 0.0
    %1551 = vmatprep.subr.mxu0 0.0
    %1552 = vmatpush1.msra.mxu0 0.0
    %1553 = vmatprep.subr.mxu0 0.0
    %1554 = vmatpush1.msra.mxu0 0.0
    %1555 = vmatprep.subr.mxu0 0.0
    %1556 = vmatpush1.msra.mxu0 0.0
    %1557 = vmatprep.subr.mxu0 0.0
    %1558 = vmatpush1.msra.mxu0 0.0
    %1559 = vmatprep.subr.mxu0 0.0
    %1560 = vmatpush1.msra.mxu0 0.0
    %1561 = vmatprep.subr.mxu0 0.0
    %1562 = vmatpush1.msra.mxu0 0.0
    %1563 = vmatprep.subr.mxu0 0.0
    %1564 = vmatpush1.msra.mxu0 0.0
    %1565 = vmatprep.subr.mxu0 0.0
    %1566 = vmatpush1.msra.mxu0 0.0
    %1567 = vmatprep.subr.mxu0 0.0
    %1568 = vmatpush1.msra.mxu0 0.0
    %1569 = vmatprep.subr.mxu0 0.0
    %1570 = vmatpush1.msra.mxu0 0.0
    %1571 = vmatprep.subr.mxu0 0.0
    %1572 = vmatpush1.msra.mxu0 0.0
    %1573 = vmatprep.subr.mxu0 0.0
    %1574 = vmatpush1.msra.mxu0 0.0
    %1575 = vmatprep.subr.mxu0 0.0
    %1576 = vmatpush1.msra.mxu0 0.0
    %1577 = vmatprep.subr.mxu0 0.0
    %1578 = vmatpush1.msra.mxu0 0.0
    %1579 = vmatprep.subr.mxu0 0.0
    %1580 = vmatpush1.msra.mxu0 0.0
    %1581 = vmatprep.subr.mxu0 0.0
    %1582 = vmatpush1.msra.mxu0 0.0
    %1583 = vmatprep.mubr.f32.mxu0 0.0
    %1584 = vmatmul.mubr.f32.gmra.mrb[0].mxu0 %v1517
    %v1585 = vpop.f32.mrb[0].mxu0
    %v1586 = vadd.f32 %v1513, %v1585
    %v1587 = vpop.f32.mrb[0].mxu0
    %1588 = vdwg.mxu0
    %1589 = vrot.lane.b32.xlu0 %v151, 112
    %v1590 = vpop.permute.xlu0 %1589
    %1591 = vrot.lane.b32.xlu0 %v151, 80
    %v1592 = vpop.permute.xlu0 %1591
    %v1593 = vsel %vm157, %v1590, 0
    %v1595 = vsel %vm157, %v1592, 0
    %1597 = vmatprep.subr.mxu0 0.0
    %1598 = vmatpush1.xpose.msra.mxu0 %v1595
    %1599 = vmatprep.subr.mxu0 0.0
    %1600 = vmatpush1.xpose.msra.mxu0 0.0
    %1601 = vmatprep.subr.mxu0 0.0
    %1602 = vmatpush1.xpose.msra.mxu0 0.0
    %1603 = vmatprep.subr.mxu0 0.0
    %1604 = vmatpush1.xpose.msra.mxu0 0.0
    %1605 = vmatprep.subr.mxu0 0.0
    %1606 = vmatpush1.xpose.msra.mxu0 0.0
    %1607 = vmatprep.subr.mxu0 0.0
    %1608 = vmatpush1.xpose.msra.mxu0 0.0
    %1609 = vmatprep.subr.mxu0 0.0
    %1610 = vmatpush1.xpose.msra.mxu0 0.0
    %1611 = vmatprep.subr.mxu0 0.0
    %1612 = vmatpush1.xpose.msra.mxu0 0.0
    %1613 = vmatprep.subr.mxu0 0.0
    %1614 = vmatpush1.xpose.msra.mxu0 0.0
    %1615 = vmatprep.subr.mxu0 0.0
    %1616 = vmatpush1.xpose.msra.mxu0 0.0
    %1617 = vmatprep.subr.mxu0 0.0
    %1618 = vmatpush1.xpose.msra.mxu0 0.0
    %1619 = vmatprep.subr.mxu0 0.0
    %1620 = vmatpush1.xpose.msra.mxu0 0.0
    %1621 = vmatprep.subr.mxu0 0.0
    %1622 = vmatpush1.xpose.msra.mxu0 0.0
    %1623 = vmatprep.subr.mxu0 0.0
    %1624 = vmatpush1.xpose.msra.mxu0 0.0
    %1625 = vmatprep.subr.mxu0 0.0
    %1626 = vmatpush1.xpose.msra.mxu0 0.0
    %1627 = vmatprep.subr.mxu0 0.0
    %1628 = vmatpush1.xpose.msra.mxu0 0.0
    %1629 = vmatprep.subr.mxu0 0.0
    %1630 = vmatpush1.xpose.msra.mxu0 0.0
    %1631 = vmatprep.subr.mxu0 0.0
    %1632 = vmatpush1.xpose.msra.mxu0 0.0
    %1633 = vmatprep.subr.mxu0 0.0
    %1634 = vmatpush1.xpose.msra.mxu0 0.0
    %1635 = vmatprep.subr.mxu0 0.0
    %1636 = vmatpush1.xpose.msra.mxu0 0.0
    %1637 = vmatprep.subr.mxu0 0.0
    %1638 = vmatpush1.xpose.msra.mxu0 0.0
    %1639 = vmatprep.subr.mxu0 0.0
    %1640 = vmatpush1.xpose.msra.mxu0 0.0
    %1641 = vmatprep.subr.mxu0 0.0
    %1642 = vmatpush1.xpose.msra.mxu0 0.0
    %1643 = vmatprep.subr.mxu0 0.0
    %1644 = vmatpush1.xpose.msra.mxu0 0.0
    %1645 = vmatprep.subr.mxu0 0.0
    %1646 = vmatpush1.xpose.msra.mxu0 0.0
    %1647 = vmatprep.subr.mxu0 0.0
    %1648 = vmatpush1.xpose.msra.mxu0 0.0
    %1649 = vmatprep.subr.mxu0 0.0
    %1650 = vmatpush1.xpose.msra.mxu0 0.0
    %1651 = vmatprep.subr.mxu0 0.0
    %1652 = vmatpush1.xpose.msra.mxu0 0.0
    %1653 = vmatprep.subr.mxu0 0.0
    %1654 = vmatpush1.xpose.msra.mxu0 0.0
    %1655 = vmatprep.subr.mxu0 0.0
    %1656 = vmatpush1.xpose.msra.mxu0 0.0
    %1657 = vmatprep.subr.mxu0 0.0
    %1658 = vmatpush1.xpose.msra.mxu0 0.0
    %1659 = vmatprep.subr.mxu0 0.0
    %1660 = vmatpush1.xpose.msra.mxu0 0.0
    %1661 = vmatprep.mubr.f32.mxu0 0.0
    %1662 = vmatmul.mubr.f32.gmra.mrb[0].mxu0 %v1593
    %v1663 = vpop.f32.mrb[0].mxu0
    %v1664 = vadd.f32 0.0, %v1663
    %v1665 = vpop.f32.mrb[0].mxu0
    %1666 = vdwg.mxu0
    %v1667 = vmul.f32 %v1664, 0.35355338
    %v1668 = vsel %vm157, %v1667, -inf
    %1669 = vmax.xlane.f32.xlu0 %v1668
    %v1670 = vpop.xlane.xlu0 %1669
    %v1671 = vsub.f32 %v1667, %v1670
    %v1672 = vmul.f32 %v1671, 1.442695
    %v1673 = vpow.pop %v1672
    %v1674 = vsel %vm157, %v1673, 0.0
    %1675 = vadd.xlane.f32.xlu0 %v1674
    %v1676 = vpop.xlane.xlu0 %1675
    %v1677 = vrcp.pop %v1676
    %v1678 = vmul.f32 %v1673, %v1677
    %1679 = vrot.lane.b32.xlu0 %v151, 48
    %v1680 = vpop.permute.xlu0 %1679
    %v1683 = vsel %vm157, %v1678, 0
    %1685 = vmatprep.subr.mxu0 0.0
    %1686 = vmatpush1.msra.mxu0 %v1680
    %1687 = vmatprep.subr.mxu0 0.0
    %1688 = vmatpush1.msra.mxu0 0.0
    %1689 = vmatprep.subr.mxu0 0.0
    %1690 = vmatpush1.msra.mxu0 0.0
    %1691 = vmatprep.subr.mxu0 0.0
    %1692 = vmatpush1.msra.mxu0 0.0
    %1693 = vmatprep.subr.mxu0 0.0
    %1694 = vmatpush1.msra.mxu0 0.0
    %1695 = vmatprep.subr.mxu0 0.0
    %1696 = vmatpush1.msra.mxu0 0.0
    %1697 = vmatprep.subr.mxu0 0.0
    %1698 = vmatpush1.msra.mxu0 0.0
    %1699 = vmatprep.subr.mxu0 0.0
    %1700 = vmatpush1.msra.mxu0 0.0
    %1701 = vmatprep.subr.mxu0 0.0
    %1702 = vmatpush1.msra.mxu0 0.0
    %1703 = vmatprep.subr.mxu0 0.0
    %1704 = vmatpush1.msra.mxu0 0.0
    %1705 = vmatprep.subr.mxu0 0.0
    %1706 = vmatpush1.msra.mxu0 0.0
    %1707 = vmatprep.subr.mxu0 0.0
    %1708 = vmatpush1.msra.mxu0 0.0
    %1709 = vmatprep.subr.mxu0 0.0
    %1710 = vmatpush1.msra.mxu0 0.0
    %1711 = vmatprep.subr.mxu0 0.0
    %1712 = vmatpush1.msra.mxu0 0.0
    %1713 = vmatprep.subr.mxu0 0.0
    %1714 = vmatpush1.msra.mxu0 0.0
    %1715 = vmatprep.subr.mxu0 0.0
    %1716 = vmatpush1.msra.mxu0 0.0
    %1717 = vmatprep.subr.mxu0 0.0
    %1718 = vmatpush1.msra.mxu0 0.0
    %1719 = vmatprep.subr.mxu0 0.0
    %1720 = vmatpush1.msra.mxu0 0.0
    %1721 = vmatprep.subr.mxu0 0.0
    %1722 = vmatpush1.msra.mxu0 0.0
    %1723 = vmatprep.subr.mxu0 0.0
    %1724 = vmatpush1.msra.mxu0 0.0
    %1725 = vmatprep.subr.mxu0 0.0
    %1726 = vmatpush1.msra.mxu0 0.0
    %1727 = vmatprep.subr.mxu0 0.0
    %1728 = vmatpush1.msra.mxu0 0.0
    %1729 = vmatprep.subr.mxu0 0.0
    %1730 = vmatpush1.msra.mxu0 0.0
    %1731 = vmatprep.subr.mxu0 0.0
    %1732 = vmatpush1.msra.mxu0 0.0
    %1733 = vmatprep.subr.mxu0 0.0
    %1734 = vmatpush1.msra.mxu0 0.0
    %1735 = vmatprep.subr.mxu0 0.0
    %1736 = vmatpush1.msra.mxu0 0.0
    %1737 = vmatprep.subr.mxu0 0.0
    %1738 = vmatpush1.msra.mxu0 0.0
    %1739 = vmatprep.subr.mxu0 0.0
    %1740 = vmatpush1.msra.mxu0 0.0
    %1741 = vmatprep.subr.mxu0 0.0
    %1742 = vmatpush1.msra.mxu0 0.0
    %1743 = vmatprep.subr.mxu0 0.0
    %1744 = vmatpush1.msra.mxu0 0.0
    %1745 = vmatprep.subr.mxu0 0.0
    %1746 = vmatpush1.msra.mxu0 0.0
    %1747 = vmatprep.subr.mxu0 0.0
    %1748 = vmatpush1.msra.mxu0 0.0
    %1749 = vmatprep.mubr.f32.mxu0 0.0
    %1750 = vmatmul.mubr.f32.gmra.mrb[0].mxu0 %v1683
    %v1751 = vpop.f32.mrb[0].mxu0
    %v1752 = vadd.f32 0.0, %v1751
    %v1753 = vpop.f32.mrb[0].mxu0
    %1754 = vdwg.mxu0
    %v1756 = vsel %vm157, %v1752, 0
    %1758 = vmatprep.subr.mxu0 0.0
    %1759 = vmatpush1.msra.mxu0 %v44
    %1760 = vmatprep.subr.mxu0 0.0
    %1761 = vmatpush1.msra.mxu0 0.0
    %1762 = vmatprep.subr.mxu0 0.0
    %1763 = vmatpush1.msra.mxu0 0.0
    %1764 = vmatprep.subr.mxu0 0.0
    %1765 = vmatpush1.msra.mxu0 0.0
    %1766 = vmatprep.subr.mxu0 0.0
    %1767 = vmatpush1.msra.mxu0 0.0
    %1768 = vmatprep.subr.mxu0 0.0
    %1769 = vmatpush1.msra.mxu0 0.0
    %1770 = vmatprep.subr.mxu0 0.0
    %1771 = vmatpush1.msra.mxu0 0.0
    %1772 = vmatprep.subr.mxu0 0.0
    %1773 = vmatpush1.msra.mxu0 0.0
    %1774 = vmatprep.subr.mxu0 0.0
    %1775 = vmatpush1.msra.mxu0 0.0
    %1776 = vmatprep.subr.mxu0 0.0
    %1777 = vmatpush1.msra.mxu0 0.0
    %1778 = vmatprep.subr.mxu0 0.0
    %1779 = vmatpush1.msra.mxu0 0.0
    %1780 = vmatprep.subr.mxu0 0.0
    %1781 = vmatpush1.msra.mxu0 0.0
    %1782 = vmatprep.subr.mxu0 0.0
    %1783 = vmatpush1.msra.mxu0 0.0
    %1784 = vmatprep.subr.mxu0 0.0
    %1785 = vmatpush1.msra.mxu0 0.0
    %1786 = vmatprep.subr.mxu0 0.0
    %1787 = vmatpush1.msra.mxu0 0.0
    %1788 = vmatprep.subr.mxu0 0.0
    %1789 = vmatpush1.msra.mxu0 0.0
    %1790 = vmatprep.subr.mxu0 0.0
    %1791 = vmatpush1.msra.mxu0 0.0
    %1792 = vmatprep.subr.mxu0 0.0
    %1793 = vmatpush1.msra.mxu0 0.0
    %1794 = vmatprep.subr.mxu0 0.0
    %1795 = vmatpush1.msra.mxu0 0.0
    %1796 = vmatprep.subr.mxu0 0.0
    %1797 = vmatpush1.msra.mxu0 0.0
    %1798 = vmatprep.subr.mxu0 0.0
    %1799 = vmatpush1.msra.mxu0 0.0
    %1800 = vmatprep.subr.mxu0 0.0
    %1801 = vmatpush1.msra.mxu0 0.0
    %1802 = vmatprep.subr.mxu0 0.0
    %1803 = vmatpush1.msra.mxu0 0.0
    %1804 = vmatprep.subr.mxu0 0.0
    %1805 = vmatpush1.msra.mxu0 0.0
    %1806 = vmatprep.subr.mxu0 0.0
    %1807 = vmatpush1.msra.mxu0 0.0
    %1808 = vmatprep.subr.mxu0 0.0
    %1809 = vmatpush1.msra.mxu0 0.0
    %1810 = vmatprep.subr.mxu0 0.0
    %1811 = vmatpush1.msra.mxu0 0.0
    %1812 = vmatprep.subr.mxu0 0.0
    %1813 = vmatpush1.msra.mxu0 0.0
    %1814 = vmatprep.subr.mxu0 0.0
    %1815 = vmatpush1.msra.mxu0 0.0
    %1816 = vmatprep.subr.mxu0 0.0
    %1817 = vmatpush1.msra.mxu0 0.0
    %1818 = vmatprep.subr.mxu0 0.0
    %1819 = vmatpush1.msra.mxu0 0.0
    %1820 = vmatprep.subr.mxu0 0.0
    %1821 = vmatpush1.msra.mxu0 0.0
    %1822 = vmatprep.mubr.f32.mxu0 0.0
    %1823 = vmatmul.mubr.f32.gmra.mrb[0].mxu0 %v1756
    %v1824 = vpop.f32.mrb[0].mxu0
    %v1825 = vadd.f32 0.0, %v1824
    %v1826 = vpop.f32.mrb[0].mxu0
    %1827 = vdwg.mxu0
    %v1828 = vadd.f32 %v1586, %v1825
    %1829 = vrot.lane.b32.xlu0 %v151, 104
    %v1830 = vpop.permute.xlu0 %1829
    %1831 = vrot.lane.b32.xlu0 %v151, 72
    %v1832 = vpop.permute.xlu0 %1831
    %v1833 = vsel %vm157, %v1830, 0
    %v1835 = vsel %vm157, %v1832, 0
    %1837 = vmatprep.subr.mxu0 0.0
    %1838 = vmatpush1.xpose.msra.mxu0 %v1835
    %1839 = vmatprep.subr.mxu0 0.0
    %1840 = vmatpush1.xpose.msra.mxu0 0.0
    %1841 = vmatprep.subr.mxu0 0.0
    %1842 = vmatpush1.xpose.msra.mxu0 0.0
    %1843 = vmatprep.subr.mxu0 0.0
    %1844 = vmatpush1.xpose.msra.mxu0 0.0
    %1845 = vmatprep.subr.mxu0 0.0
    %1846 = vmatpush1.xpose.msra.mxu0 0.0
    %1847 = vmatprep.subr.mxu0 0.0
    %1848 = vmatpush1.xpose.msra.mxu0 0.0
    %1849 = vmatprep.subr.mxu0 0.0
    %1850 = vmatpush1.xpose.msra.mxu0 0.0
    %1851 = vmatprep.subr.mxu0 0.0
    %1852 = vmatpush1.xpose.msra.mxu0 0.0
    %1853 = vmatprep.subr.mxu0 0.0
    %1854 = vmatpush1.xpose.msra.mxu0 0.0
    %1855 = vmatprep.subr.mxu0 0.0
    %1856 = vmatpush1.xpose.msra.mxu0 0.0
    %1857 = vmatprep.subr.mxu0 0.0
    %1858 = vmatpush1.xpose.msra.mxu0 0.0
    %1859 = vmatprep.subr.mxu0 0.0
    %1860 = vmatpush1.xpose.msra.mxu0 0.0
    %1861 = vmatprep.subr.mxu0 0.0
    %1862 = vmatpush1.xpose.msra.mxu0 0.0
    %1863 = vmatprep.subr.mxu0 0.0
    %1864 = vmatpush1.xpose.msra.mxu0 0.0
    %1865 = vmatprep.subr.mxu0 0.0
    %1866 = vmatpush1.xpose.msra.mxu0 0.0
    %1867 = vmatprep.subr.mxu0 0.0
    %1868 = vmatpush1.xpose.msra.mxu0 0.0
    %1869 = vmatprep.subr.mxu0 0.0
    %1870 = vmatpush1.xpose.msra.mxu0 0.0
    %1871 = vmatprep.subr.mxu0 0.0
    %1872 = vmatpush1.xpose.msra.mxu0 0.0
    %1873 = vmatprep.subr.mxu0 0.0
    %1874 = vmatpush1.xpose.msra.mxu0 0.0
    %1875 = vmatprep.subr.mxu0 0.0
    %1876 = vmatpush1.xpose.msra.mxu0 0.0
    %1877 = vmatprep.subr.mxu0 0.0
    %1878 = vmatpush1.xpose.msra.mxu0 0.0
    %1879 = vmatprep.subr.mxu0 0.0
    %1880 = vmatpush1.xpose.msra.mxu0 0.0
    %1881 = vmatprep.subr.mxu0 0.0
    %1882 = vmatpush1.xpose.msra.mxu0 0.0
    %1883 = vmatprep.subr.mxu0 0.0
    %1884 = vmatpush1.xpose.msra.mxu0 0.0
    %1885 = vmatprep.subr.mxu0 0.0
    %1886 = vmatpush1.xpose.msra.mxu0 0.0
    %1887 = vmatprep.subr.mxu0 0.0
    %1888 = vmatpush1.xpose.msra.mxu0 0.0
    %1889 = vmatprep.subr.mxu0 0.0
    %1890 = vmatpush1.xpose.msra.mxu0 0.0
    %1891 = vmatprep.subr.mxu0 0.0
    %1892 = vmatpush1.xpose.msra.mxu0 0.0
    %1893 = vmatprep.subr.mxu0 0.0
    %1894 = vmatpush1.xpose.msra.mxu0 0.0
    %1895 = vmatprep.subr.mxu0 0.0
    %1896 = vmatpush1.xpose.msra.mxu0 0.0
    %1897 = vmatprep.subr.mxu0 0.0
    %1898 = vmatpush1.xpose.msra.mxu0 0.0
    %1899 = vmatprep.subr.mxu0 0.0
    %1900 = vmatpush1.xpose.msra.mxu0 0.0
    %1901 = vmatprep.mubr.f32.mxu0 0.0
    %1902 = vmatmul.mubr.f32.gmra.mrb[0].mxu0 %v1833
    %v1903 = vpop.f32.mrb[0].mxu0
    %v1904 = vadd.f32 0.0, %v1903
    %v1905 = vpop.f32.mrb[0].mxu0
    %1906 = vdwg.mxu0
    %v1907 = vmul.f32 %v1904, 0.35355338
    %v1908 = vsel %vm157, %v1907, -inf
    %1909 = vmax.xlane.f32.xlu0 %v1908
    %v1910 = vpop.xlane.xlu0 %1909
    %v1911 = vsub.f32 %v1907, %v1910
    %v1912 = vmul.f32 %v1911, 1.442695
    %v1913 = vpow.pop %v1912
    %v1914 = vsel %vm157, %v1913, 0.0
    %1915 = vadd.xlane.f32.xlu0 %v1914
    %v1916 = vpop.xlane.xlu0 %1915
    %v1917 = vrcp.pop %v1916
    %v1918 = vmul.f32 %v1913, %v1917
    %1919 = vrot.lane.b32.xlu0 %v151, 40
    %v1920 = vpop.permute.xlu0 %1919
    %v1923 = vsel %vm157, %v1918, 0
    %1925 = vmatprep.subr.mxu0 0.0
    %1926 = vmatpush1.msra.mxu0 %v1920
    %1927 = vmatprep.subr.mxu0 0.0
    %1928 = vmatpush1.msra.mxu0 0.0
    %1929 = vmatprep.subr.mxu0 0.0
    %1930 = vmatpush1.msra.mxu0 0.0
    %1931 = vmatprep.subr.mxu0 0.0
    %1932 = vmatpush1.msra.mxu0 0.0
    %1933 = vmatprep.subr.mxu0 0.0
    %1934 = vmatpush1.msra.mxu0 0.0
    %1935 = vmatprep.subr.mxu0 0.0
    %1936 = vmatpush1.msra.mxu0 0.0
    %1937 = vmatprep.subr.mxu0 0.0
    %1938 = vmatpush1.msra.mxu0 0.0
    %1939 = vmatprep.subr.mxu0 0.0
    %1940 = vmatpush1.msra.mxu0 0.0
    %1941 = vmatprep.subr.mxu0 0.0
    %1942 = vmatpush1.msra.mxu0 0.0
    %1943 = vmatprep.subr.mxu0 0.0
    %1944 = vmatpush1.msra.mxu0 0.0
    %1945 = vmatprep.subr.mxu0 0.0
    %1946 = vmatpush1.msra.mxu0 0.0
    %1947 = vmatprep.subr.mxu0 0.0
    %1948 = vmatpush1.msra.mxu0 0.0
    %1949 = vmatprep.subr.mxu0 0.0
    %1950 = vmatpush1.msra.mxu0 0.0
    %1951 = vmatprep.subr.mxu0 0.0
    %1952 = vmatpush1.msra.mxu0 0.0
    %1953 = vmatprep.subr.mxu0 0.0
    %1954 = vmatpush1.msra.mxu0 0.0
    %1955 = vmatprep.subr.mxu0 0.0
    %1956 = vmatpush1.msra.mxu0 0.0
    %1957 = vmatprep.subr.mxu0 0.0
    %1958 = vmatpush1.msra.mxu0 0.0
    %1959 = vmatprep.subr.mxu0 0.0
    %1960 = vmatpush1.msra.mxu0 0.0
    %1961 = vmatprep.subr.mxu0 0.0
    %1962 = vmatpush1.msra.mxu0 0.0
    %1963 = vmatprep.subr.mxu0 0.0
    %1964 = vmatpush1.msra.mxu0 0.0
    %1965 = vmatprep.subr.mxu0 0.0
    %1966 = vmatpush1.msra.mxu0 0.0
    %1967 = vmatprep.subr.mxu0 0.0
    %1968 = vmatpush1.msra.mxu0 0.0
    %1969 = vmatprep.subr.mxu0 0.0
    %1970 = vmatpush1.msra.mxu0 0.0
    %1971 = vmatprep.subr.mxu0 0.0
    %1972 = vmatpush1.msra.mxu0 0.0
    %1973 = vmatprep.subr.mxu0 0.0
    %1974 = vmatpush1.msra.mxu0 0.0
    %1975 = vmatprep.subr.mxu0 0.0
    %1976 = vmatpush1.msra.mxu0 0.0
    %1977 = vmatprep.subr.mxu0 0.0
    %1978 = vmatpush1.msra.mxu0 0.0
    %1979 = vmatprep.subr.mxu0 0.0
    %1980 = vmatpush1.msra.mxu0 0.0
    %1981 = vmatprep.subr.mxu0 0.0
    %1982 = vmatpush1.msra.mxu0 0.0
    %1983 = vmatprep.subr.mxu0 0.0
    %1984 = vmatpush1.msra.mxu0 0.0
    %1985 = vmatprep.subr.mxu0 0.0
    %1986 = vmatpush1.msra.mxu0 0.0
    %1987 = vmatprep.subr.mxu0 0.0
    %1988 = vmatpush1.msra.mxu0 0.0
    %1989 = vmatprep.mubr.f32.mxu0 0.0
    %1990 = vmatmul.mubr.f32.gmra.mrb[0].mxu0 %v1923
    %v1991 = vpop.f32.mrb[0].mxu0
    %v1992 = vadd.f32 0.0, %v1991
    %v1993 = vpop.f32.mrb[0].mxu0
    %1994 = vdwg.mxu0
    %v1996 = vsel %vm157, %v1992, 0
    %1998 = vmatprep.subr.mxu0 0.0
    %1999 = vmatpush1.msra.mxu0 %v45
    %2000 = vmatprep.subr.mxu0 0.0
    %2001 = vmatpush1.msra.mxu0 0.0
    %2002 = vmatprep.subr.mxu0 0.0
    %2003 = vmatpush1.msra.mxu0 0.0
    %2004 = vmatprep.subr.mxu0 0.0
    %2005 = vmatpush1.msra.mxu0 0.0
    %2006 = vmatprep.subr.mxu0 0.0
    %2007 = vmatpush1.msra.mxu0 0.0
    %2008 = vmatprep.subr.mxu0 0.0
    %2009 = vmatpush1.msra.mxu0 0.0
    %2010 = vmatprep.subr.mxu0 0.0
    %2011 = vmatpush1.msra.mxu0 0.0
    %2012 = vmatprep.subr.mxu0 0.0
    %2013 = vmatpush1.msra.mxu0 0.0
    %2014 = vmatprep.subr.mxu0 0.0
    %2015 = vmatpush1.msra.mxu0 0.0
    %2016 = vmatprep.subr.mxu0 0.0
    %2017 = vmatpush1.msra.mxu0 0.0
    %2018 = vmatprep.subr.mxu0 0.0
    %2019 = vmatpush1.msra.mxu0 0.0
    %2020 = vmatprep.subr.mxu0 0.0
    %2021 = vmatpush1.msra.mxu0 0.0
    %2022 = vmatprep.subr.mxu0 0.0
    %2023 = vmatpush1.msra.mxu0 0.0
    %2024 = vmatprep.subr.mxu0 0.0
    %2025 = vmatpush1.msra.mxu0 0.0
    %2026 = vmatprep.subr.mxu0 0.0
    %2027 = vmatpush1.msra.mxu0 0.0
    %2028 = vmatprep.subr.mxu0 0.0
    %2029 = vmatpush1.msra.mxu0 0.0
    %2030 = vmatprep.subr.mxu0 0.0
    %2031 = vmatpush1.msra.mxu0 0.0
    %2032 = vmatprep.subr.mxu0 0.0
    %2033 = vmatpush1.msra.mxu0 0.0
    %2034 = vmatprep.subr.mxu0 0.0
    %2035 = vmatpush1.msra.mxu0 0.0
    %2036 = vmatprep.subr.mxu0 0.0
    %2037 = vmatpush1.msra.mxu0 0.0
    %2038 = vmatprep.subr.mxu0 0.0
    %2039 = vmatpush1.msra.mxu0 0.0
    %2040 = vmatprep.subr.mxu0 0.0
    %2041 = vmatpush1.msra.mxu0 0.0
    %2042 = vmatprep.subr.mxu0 0.0
    %2043 = vmatpush1.msra.mxu0 0.0
    %2044 = vmatprep.subr.mxu0 0.0
    %2045 = vmatpush1.msra.mxu0 0.0
    %2046 = vmatprep.subr.mxu0 0.0
    %2047 = vmatpush1.msra.mxu0 0.0
    %2048 = vmatprep.subr.mxu0 0.0
    %2049 = vmatpush1.msra.mxu0 0.0
    %2050 = vmatprep.subr.mxu0 0.0
    %2051 = vmatpush1.msra.mxu0 0.0
    %2052 = vmatprep.subr.mxu0 0.0
    %2053 = vmatpush1.msra.mxu0 0.0
    %2054 = vmatprep.subr.mxu0 0.0
    %2055 = vmatpush1.msra.mxu0 0.0
    %2056 = vmatprep.subr.mxu0 0.0
    %2057 = vmatpush1.msra.mxu0 0.0
    %2058 = vmatprep.subr.mxu0 0.0
    %2059 = vmatpush1.msra.mxu0 0.0
    %2060 = vmatprep.subr.mxu0 0.0
    %2061 = vmatpush1.msra.mxu0 0.0
    %2062 = vmatprep.mubr.f32.mxu0 0.0
    %2063 = vmatmul.mubr.f32.gmra.mrb[0].mxu0 %v1996
    %v2064 = vpop.f32.mrb[0].mxu0
    %v2065 = vadd.f32 0.0, %v2064
    %v2066 = vpop.f32.mrb[0].mxu0
    %2067 = vdwg.mxu0
    %v2068 = vadd.f32 %v1828, %v2065
    %v2069 = vlaneseq
    %v2070 = vshrl.u32 %v2069, 7
    %v2071 = vsub.s32 0, %v2070
    %v2072 = vrot.slane %v60, %v2071
    %v2073 = vadd.f32 %v1111, %v2072
    %v2074 = vadd.f32 %v2068, %v2072
    %v2075 = vadd.f32 %v66, %v2073
    %v2076 = vadd.f32 %v67, %v2074
    %v2077 = vsel %vm72, %v2075, 0.0
    %2078 = vadd.xlane.f32.xlu0 %v2077
    %v2079 = vpop.xlane.xlu0 %2078
    %v2080 = vsel %vm72, %v2076, 0.0
    %2081 = vadd.xlane.f32.xlu0 %v2080
    %v2082 = vpop.xlane.xlu0 %2081
    %v2083 = vrcp.pop 32.0
    %v2084 = vmul.f32 %v2079, %v2083
    %v2085 = vmul.f32 %v2082, %v2083
    %v2086 = vsub.f32 %v2075, %v2084
    %v2087 = vsub.f32 %v2076, %v2085
    %v2088 = vmul.f32 %v2086, %v2086
    %v2089 = vmul.f32 %v2087, %v2087
    %v2090 = vsel %vm72, %v2088, 0.0
    %2091 = vadd.xlane.f32.xlu0 %v2090
    %v2092 = vpop.xlane.xlu0 %2091
    %v2093 = vsel %vm72, %v2089, 0.0
    %2094 = vadd.xlane.f32.xlu0 %v2093
    %v2095 = vpop.xlane.xlu0 %2094
    %v2096 = vmul.f32 %v2092, %v2083
    %v2097 = vmul.f32 %v2095, %v2083
    %v2098 = vadd.f32 %v2096, 1e-05
    %v2099 = vadd.f32 %v2097, 1e-05
    %v2100 = vrsqrt.pop %v2098
    %v2101 = vrsqrt.pop %v2099
    %v2102 = vmul.f32 %v2086, %v2100
    %v2103 = vmul.f32 %v2087, %v2101
    %v2104 = vlaneseq
    %v2105 = vshrl.u32 %v2104, 7
    %v2106 = vsub.s32 0, %v2105
    %v2107 = vrot.slane %v61, %v2106
    %v2108 = vmul.f32 %v2102, %v2107
    %v2109 = vmul.f32 %v2103, %v2107
    %v2110 = vlaneseq
    %v2111 = vshrl.u32 %v2110, 7
    %v2112 = vsub.s32 0, %v2111
    %v2113 = vrot.slane %v62, %v2112
    %v2114 = vadd.f32 %v2108, %v2113
    %v2115 = vadd.f32 %v2109, %v2113
    %v2116 = vlaneseq
    %v2117 = vshrl.u32 %v2116, 7
    %v2118 = vsub.s32 0, %v2117
    %v2119 = vrot.slane %v59, %v2118
    %v2121 = vsel %vm72, %v2114, 0
    %v2124 = vsel %vm72, %v2115, 0
    %2126 = vmatprep.subr.mxu0 0.0
    %2127 = vmatpush1.msra.mxu0 %v46
    %2128 = vmatprep.subr.mxu0 0.0
    %2129 = vmatpush1.msra.mxu0 %v47
    %2130 = vmatprep.subr.mxu0 0.0
    %2131 = vmatpush1.msra.mxu0 %v48
    %2132 = vmatprep.subr.mxu0 0.0
    %2133 = vmatpush1.msra.mxu0 %v49
    %2134 = vmatprep.subr.mxu0 0.0
    %2135 = vmatpush1.msra.mxu0 0.0
    %2136 = vmatprep.subr.mxu0 0.0
    %2137 = vmatpush1.msra.mxu0 0.0
    %2138 = vmatprep.subr.mxu0 0.0
    %2139 = vmatpush1.msra.mxu0 0.0
    %2140 = vmatprep.subr.mxu0 0.0
    %2141 = vmatpush1.msra.mxu0 0.0
    %2142 = vmatprep.subr.mxu0 0.0
    %2143 = vmatpush1.msra.mxu0 0.0
    %2144 = vmatprep.subr.mxu0 0.0
    %2145 = vmatpush1.msra.mxu0 0.0
    %2146 = vmatprep.subr.mxu0 0.0
    %2147 = vmatpush1.msra.mxu0 0.0
    %2148 = vmatprep.subr.mxu0 0.0
    %2149 = vmatpush1.msra.mxu0 0.0
    %2150 = vmatprep.subr.mxu0 0.0
    %2151 = vmatpush1.msra.mxu0 0.0
    %2152 = vmatprep.subr.mxu0 0.0
    %2153 = vmatpush1.msra.mxu0 0.0
    %2154 = vmatprep.subr.mxu0 0.0
    %2155 = vmatpush1.msra.mxu0 0.0
    %2156 = vmatprep.subr.mxu0 0.0
    %2157 = vmatpush1.msra.mxu0 0.0
    %2158 = vmatprep.subr.mxu0 0.0
    %2159 = vmatpush1.msra.mxu0 0.0
    %2160 = vmatprep.subr.mxu0 0.0
    %2161 = vmatpush1.msra.mxu0 0.0
    %2162 = vmatprep.subr.mxu0 0.0
    %2163 = vmatpush1.msra.mxu0 0.0
    %2164 = vmatprep.subr.mxu0 0.0
    %2165 = vmatpush1.msra.mxu0 0.0
    %2166 = vmatprep.subr.mxu0 0.0
    %2167 = vmatpush1.msra.mxu0 0.0
    %2168 = vmatprep.subr.mxu0 0.0
    %2169 = vmatpush1.msra.mxu0 0.0
    %2170 = vmatprep.subr.mxu0 0.0
    %2171 = vmatpush1.msra.mxu0 0.0
    %2172 = vmatprep.subr.mxu0 0.0
    %2173 = vmatpush1.msra.mxu0 0.0
    %2174 = vmatprep.subr.mxu0 0.0
    %2175 = vmatpush1.msra.mxu0 0.0
    %2176 = vmatprep.subr.mxu0 0.0
    %2177 = vmatpush1.msra.mxu0 0.0
    %2178 = vmatprep.subr.mxu0 0.0
    %2179 = vmatpush1.msra.mxu0 0.0
    %2180 = vmatprep.subr.mxu0 0.0
    %2181 = vmatpush1.msra.mxu0 0.0
    %2182 = vmatprep.subr.mxu0 0.0
    %2183 = vmatpush1.msra.mxu0 0.0
    %2184 = vmatprep.subr.mxu0 0.0
    %2185 = vmatpush1.msra.mxu0 0.0
    %2186 = vmatprep.subr.mxu0 0.0
    %2187 = vmatpush1.msra.mxu0 0.0
    %2188 = vmatprep.subr.mxu0 0.0
    %2189 = vmatpush1.msra.mxu0 0.0
    %2190 = vmatprep.mubr.f32.mxu0 0.0
    %2191 = vmatmul.mubr.f32.gmra.mrb[0].mxu0 %v2121
    %v2192 = vpop.f32.mrb[0].mxu0
    %v2193 = vadd.f32 %v2119, %v2192
    %v2194 = vpop.f32.mrb[0].mxu0
    %2195 = vmatprep.mubr.f32.mxu0 0.0
    %2196 = vmatmul.mubr.f32.gmra.mrb[0].mxu0 %v2124
    %v2197 = vpop.f32.mrb[0].mxu0
    %v2198 = vadd.f32 %v2119, %v2197
    %v2199 = vpop.f32.mrb[0].mxu0
    %2200 = vdwg.mxu0
    %v2201 = vmax.f32 %v2193, 0.0
    %v2202 = vmax.f32 %v2198, 0.0
    %v2203 = vlaneseq
    %v2204 = vshrl.u32 %v2203, 7
    %v2205 = vsub.s32 0, %v2204
    %v2206 = vrot.slane %v63, %v2205
    %vm2207 = vcmask 523264
    %v2209 = vsel %vm2207, %v2201, 0
    %v2212 = vsel %vm2207, %v2202, 0
    %2214 = vmatprep.subr.mxu0 0.0
    %2215 = vmatpush1.msra.mxu0 %v50
    %2216 = vmatprep.subr.mxu0 0.0
    %2217 = vmatpush1.msra.mxu0 %v51
    %2218 = vmatprep.subr.mxu0 0.0
    %2219 = vmatpush1.msra.mxu0 %v52
    %2220 = vmatprep.subr.mxu0 0.0
    %2221 = vmatpush1.msra.mxu0 %v53
    %2222 = vmatprep.subr.mxu0 0.0
    %2223 = vmatpush1.msra.mxu0 %v54
    %2224 = vmatprep.subr.mxu0 0.0
    %2225 = vmatpush1.msra.mxu0 %v55
    %2226 = vmatprep.subr.mxu0 0.0
    %2227 = vmatpush1.msra.mxu0 %v56
    %2228 = vmatprep.subr.mxu0 0.0
    %2229 = vmatpush1.msra.mxu0 %v57
    %2230 = vmatprep.subr.mxu0 0.0
    %2231 = vmatpush1.msra.mxu0 0.0
    %2232 = vmatprep.subr.mxu0 0.0
    %2233 = vmatpush1.msra.mxu0 0.0
    %2234 = vmatprep.subr.mxu0 0.0
    %2235 = vmatpush1.msra.mxu0 0.0
    %2236 = vmatprep.subr.mxu0 0.0
    %2237 = vmatpush1.msra.mxu0 0.0
    %2238 = vmatprep.subr.mxu0 0.0
    %2239 = vmatpush1.msra.mxu0 0.0
    %2240 = vmatprep.subr.mxu0 0.0
    %2241 = vmatpush1.msra.mxu0 0.0
    %2242 = vmatprep.subr.mxu0 0.0
    %2243 = vmatpush1.msra.mxu0 0.0
    %2244 = vmatprep.subr.mxu0 0.0
    %2245 = vmatpush1.msra.mxu0 0.0
    %2246 = vmatprep.subr.mxu0 0.0
    %2247 = vmatpush1.msra.mxu0 0.0
    %2248 = vmatprep.subr.mxu0 0.0
    %2249 = vmatpush1.msra.mxu0 0.0
    %2250 = vmatprep.subr.mxu0 0.0
    %2251 = vmatpush1.msra.mxu0 0.0
    %2252 = vmatprep.subr.mxu0 0.0
    %2253 = vmatpush1.msra.mxu0 0.0
    %2254 = vmatprep.subr.mxu0 0.0
    %2255 = vmatpush1.msra.mxu0 0.0
    %2256 = vmatprep.subr.mxu0 0.0
    %2257 = vmatpush1.msra.mxu0 0.0
    %2258 = vmatprep.subr.mxu0 0.0
    %2259 = vmatpush1.msra.mxu0 0.0
    %2260 = vmatprep.subr.mxu0 0.0
    %2261 = vmatpush1.msra.mxu0 0.0
    %2262 = vmatprep.subr.mxu0 0.0
    %2263 = vmatpush1.msra.mxu0 0.0
    %2264 = vmatprep.subr.mxu0 0.0
    %2265 = vmatpush1.msra.mxu0 0.0
    %2266 = vmatprep.subr.mxu0 0.0
    %2267 = vmatpush1.msra.mxu0 0.0
    %2268 = vmatprep.subr.mxu0 0.0
    %2269 = vmatpush1.msra.mxu0 0.0
    %2270 = vmatprep.subr.mxu0 0.0
    %2271 = vmatpush1.msra.mxu0 0.0
    %2272 = vmatprep.subr.mxu0 0.0
    %2273 = vmatpush1.msra.mxu0 0.0
    %2274 = vmatprep.subr.mxu0 0.0
    %2275 = vmatpush1.msra.mxu0 0.0
    %2276 = vmatprep.subr.mxu0 0.0
    %2277 = vmatpush1.msra.mxu0 0.0
    %2278 = vmatprep.mubr.f32.mxu0 0.0
    %2279 = vmatmul.mubr.f32.gmra.mrb[0].mxu0 %v2209
    %v2280 = vpop.f32.mrb[0].mxu0
    %v2281 = vadd.f32 %v2206, %v2280
    %v2282 = vpop.f32.mrb[0].mxu0
    %2283 = vmatprep.mubr.f32.mxu0 0.0
    %2284 = vmatmul.mubr.f32.gmra.mrb[0].mxu0 %v2212
    %v2285 = vpop.f32.mrb[0].mxu0
    %v2286 = vadd.f32 %v2206, %v2285
    %v2287 = vpop.f32.mrb[0].mxu0
    %2288 = vdwg.mxu0
    %v2289 = vadd.f32 %v2114, %v2281
    %v2290 = vadd.f32 %v2115, %v2286
    %v2291 = vsel %vm72, %v2289, 0.0
    %2292 = vadd.xlane.f32.xlu0 %v2291
    %v2293 = vpop.xlane.xlu0 %2292
    %v2294 = vsel %vm72, %v2290, 0.0
    %2295 = vadd.xlane.f32.xlu0 %v2294
    %v2296 = vpop.xlane.xlu0 %2295
    %v2297 = vmul.f32 %v2293, %v2083
    %v2298 = vmul.f32 %v2296, %v2083
    %v2299 = vsub.f32 %v2289, %v2297
    %v2300 = vsub.f32 %v2290, %v2298
    %v2301 = vmul.f32 %v2299, %v2299
    %v2302 = vmul.f32 %v2300, %v2300
    %v2303 = vsel %vm72, %v2301, 0.0
    %2304 = vadd.xlane.f32.xlu0 %v2303
    %v2305 = vpop.xlane.xlu0 %2304
    %v2306 = vsel %vm72, %v2302, 0.0
    %2307 = vadd.xlane.f32.xlu0 %v2306
    %v2308 = vpop.xlane.xlu0 %2307
    %v2309 = vmul.f32 %v2305, %v2083
    %v2310 = vmul.f32 %v2308, %v2083
    %v2311 = vadd.f32 %v2309, 1e-05
    %v2312 = vadd.f32 %v2310, 1e-05
    %v2313 = vrsqrt.pop %v2311
    %v2314 = vrsqrt.pop %v2312
    %v2315 = vmul.f32 %v2299, %v2313
    %v2316 = vmul.f32 %v2300, %v2314
    %v2317 = vlaneseq
    %v2318 = vshrl.u32 %v2317, 7
    %v2319 = vsub.s32 0, %v2318
    %v2320 = vrot.slane %v64, %v2319
    %v2321 = vmul.f32 %v2315, %v2320
    %v2322 = vmul.f32 %v2316, %v2320
    %v2323 = vlaneseq
    %v2324 = vshrl.u32 %v2323, 7
    %v2325 = vsub.s32 0, %v2324
    %v2326 = vrot.slane %v65, %v2325
    %v2327 = vadd.f32 %v2321, %v2326
    %v2328 = vadd.f32 %v2322, %v2326
    %v2330 = vsel %vm72, %v2327, 0
    %v2333 = vsel %vm72, %v2328, 0
    %2335 = vmatprep.subr.mxu0 0.0
    %2336 = vmatpush1.msra.mxu0 %v38
    %2337 = vmatprep.subr.mxu0 0.0
    %2338 = vmatpush1.msra.mxu0 %v39
    %2339 = vmatprep.subr.mxu0 0.0
    %2340 = vmatpush1.msra.mxu0 %v40
    %2341 = vmatprep.subr.mxu0 0.0
    %2342 = vmatpush1.msra.mxu0 %v41
    %2343 = vmatprep.subr.mxu0 0.0
    %2344 = vmatpush1.msra.mxu0 0.0
    %2345 = vmatprep.subr.mxu0 0.0
    %2346 = vmatpush1.msra.mxu0 0.0
    %2347 = vmatprep.subr.mxu0 0.0
    %2348 = vmatpush1.msra.mxu0 0.0
    %2349 = vmatprep.subr.mxu0 0.0
    %2350 = vmatpush1.msra.mxu0 0.0
    %2351 = vmatprep.subr.mxu0 0.0
    %2352 = vmatpush1.msra.mxu0 0.0
    %2353 = vmatprep.subr.mxu0 0.0
    %2354 = vmatpush1.msra.mxu0 0.0
    %2355 = vmatprep.subr.mxu0 0.0
    %2356 = vmatpush1.msra.mxu0 0.0
    %2357 = vmatprep.subr.mxu0 0.0
    %2358 = vmatpush1.msra.mxu0 0.0
    %2359 = vmatprep.subr.mxu0 0.0
    %2360 = vmatpush1.msra.mxu0 0.0
    %2361 = vmatprep.subr.mxu0 0.0
    %2362 = vmatpush1.msra.mxu0 0.0
    %2363 = vmatprep.subr.mxu0 0.0
    %2364 = vmatpush1.msra.mxu0 0.0
    %2365 = vmatprep.subr.mxu0 0.0
    %2366 = vmatpush1.msra.mxu0 0.0
    %2367 = vmatprep.subr.mxu0 0.0
    %2368 = vmatpush1.msra.mxu0 0.0
    %2369 = vmatprep.subr.mxu0 0.0
    %2370 = vmatpush1.msra.mxu0 0.0
    %2371 = vmatprep.subr.mxu0 0.0
    %2372 = vmatpush1.msra.mxu0 0.0
    %2373 = vmatprep.subr.mxu0 0.0
    %2374 = vmatpush1.msra.mxu0 0.0
    %2375 = vmatprep.subr.mxu0 0.0
    %2376 = vmatpush1.msra.mxu0 0.0
    %2377 = vmatprep.subr.mxu0 0.0
    %2378 = vmatpush1.msra.mxu0 0.0
    %2379 = vmatprep.subr.mxu0 0.0
    %2380 = vmatpush1.msra.mxu0 0.0
    %2381 = vmatprep.subr.mxu0 0.0
    %2382 = vmatpush1.msra.mxu0 0.0
    %2383 = vmatprep.subr.mxu0 0.0
    %2384 = vmatpush1.msra.mxu0 0.0
    %2385 = vmatprep.subr.mxu0 0.0
    %2386 = vmatpush1.msra.mxu0 0.0
    %2387 = vmatprep.subr.mxu0 0.0
    %2388 = vmatpush1.msra.mxu0 0.0
    %2389 = vmatprep.subr.mxu0 0.0
    %2390 = vmatpush1.msra.mxu0 0.0
    %2391 = vmatprep.subr.mxu0 0.0
    %2392 = vmatpush1.msra.mxu0 0.0
    %2393 = vmatprep.subr.mxu0 0.0
    %2394 = vmatpush1.msra.mxu0 0.0
    %2395 = vmatprep.subr.mxu0 0.0
    %2396 = vmatpush1.msra.mxu0 0.0
    %2397 = vmatprep.subr.mxu0 0.0
    %2398 = vmatpush1.msra.mxu0 0.0
    %2399 = vmatprep.mubr.f32.mxu0 0.0
    %2400 = vmatmul.mubr.f32.gmra.mrb[0].mxu0 %v2330
    %v2401 = vpop.f32.mrb[0].mxu0
    %v2402 = vadd.f32 %v71, %v2401
    %v2403 = vpop.f32.mrb[0].mxu0
    %2404 = vmatprep.mubr.f32.mxu0 0.0
    %2405 = vmatmul.mubr.f32.gmra.mrb[0].mxu0 %v2333
    %v2406 = vpop.f32.mrb[0].mxu0
    %v2407 = vadd.f32 %v71, %v2406
    %v2408 = vpop.f32.mrb[0].mxu0
    %2409 = vdwg.mxu0
    %2411 = vrot.lane.b32.xlu0 %v2402, 96
    %v2412 = vpop.permute.xlu0 %2411
    %v2413 = vsel %vm157, %v2402, 0
    %v2415 = vsel %vm157, %v2412, 0
    %2417 = vmatprep.subr.mxu0 0.0
    %2418 = vmatpush1.xpose.msra.mxu0 %v2415
    %2419 = vmatprep.subr.mxu0 0.0
    %2420 = vmatpush1.xpose.msra.mxu0 0.0
    %2421 = vmatprep.subr.mxu0 0.0
    %2422 = vmatpush1.xpose.msra.mxu0 0.0
    %2423 = vmatprep.subr.mxu0 0.0
    %2424 = vmatpush1.xpose.msra.mxu0 0.0
    %2425 = vmatprep.subr.mxu0 0.0
    %2426 = vmatpush1.xpose.msra.mxu0 0.0
    %2427 = vmatprep.subr.mxu0 0.0
    %2428 = vmatpush1.xpose.msra.mxu0 0.0
    %2429 = vmatprep.subr.mxu0 0.0
    %2430 = vmatpush1.xpose.msra.mxu0 0.0
    %2431 = vmatprep.subr.mxu0 0.0
    %2432 = vmatpush1.xpose.msra.mxu0 0.0
    %2433 = vmatprep.subr.mxu0 0.0
    %2434 = vmatpush1.xpose.msra.mxu0 0.0
    %2435 = vmatprep.subr.mxu0 0.0
    %2436 = vmatpush1.xpose.msra.mxu0 0.0
    %2437 = vmatprep.subr.mxu0 0.0
    %2438 = vmatpush1.xpose.msra.mxu0 0.0
    %2439 = vmatprep.subr.mxu0 0.0
    %2440 = vmatpush1.xpose.msra.mxu0 0.0
    %2441 = vmatprep.subr.mxu0 0.0
    %2442 = vmatpush1.xpose.msra.mxu0 0.0
    %2443 = vmatprep.subr.mxu0 0.0
    %2444 = vmatpush1.xpose.msra.mxu0 0.0
    %2445 = vmatprep.subr.mxu0 0.0
    %2446 = vmatpush1.xpose.msra.mxu0 0.0
    %2447 = vmatprep.subr.mxu0 0.0
    %2448 = vmatpush1.xpose.msra.mxu0 0.0
    %2449 = vmatprep.subr.mxu0 0.0
    %2450 = vmatpush1.xpose.msra.mxu0 0.0
    %2451 = vmatprep.subr.mxu0 0.0
    %2452 = vmatpush1.xpose.msra.mxu0 0.0
    %2453 = vmatprep.subr.mxu0 0.0
    %2454 = vmatpush1.xpose.msra.mxu0 0.0
    %2455 = vmatprep.subr.mxu0 0.0
    %2456 = vmatpush1.xpose.msra.mxu0 0.0
    %2457 = vmatprep.subr.mxu0 0.0
    %2458 = vmatpush1.xpose.msra.mxu0 0.0
    %2459 = vmatprep.subr.mxu0 0.0
    %2460 = vmatpush1.xpose.msra.mxu0 0.0
    %2461 = vmatprep.subr.mxu0 0.0
    %2462 = vmatpush1.xpose.msra.mxu0 0.0
    %2463 = vmatprep.subr.mxu0 0.0
    %2464 = vmatpush1.xpose.msra.mxu0 0.0
    %2465 = vmatprep.subr.mxu0 0.0
    %2466 = vmatpush1.xpose.msra.mxu0 0.0
    %2467 = vmatprep.subr.mxu0 0.0
    %2468 = vmatpush1.xpose.msra.mxu0 0.0
    %2469 = vmatprep.subr.mxu0 0.0
    %2470 = vmatpush1.xpose.msra.mxu0 0.0
    %2471 = vmatprep.subr.mxu0 0.0
    %2472 = vmatpush1.xpose.msra.mxu0 0.0
    %2473 = vmatprep.subr.mxu0 0.0
    %2474 = vmatpush1.xpose.msra.mxu0 0.0
    %2475 = vmatprep.subr.mxu0 0.0
    %2476 = vmatpush1.xpose.msra.mxu0 0.0
    %2477 = vmatprep.subr.mxu0 0.0
    %2478 = vmatpush1.xpose.msra.mxu0 0.0
    %2479 = vmatprep.subr.mxu0 0.0
    %2480 = vmatpush1.xpose.msra.mxu0 0.0
    %2481 = vmatprep.mubr.f32.mxu0 0.0
    %2482 = vmatmul.mubr.f32.gmra.mrb[0].mxu0 %v2413
    %v2483 = vpop.f32.mrb[0].mxu0
    %v2484 = vadd.f32 0.0, %v2483
    %v2485 = vpop.f32.mrb[0].mxu0
    %2486 = vdwg.mxu0
    %v2487 = vmul.f32 %v2484, 0.35355338
    %v2488 = vsel %vm157, %v2487, -inf
    %2489 = vmax.xlane.f32.xlu0 %v2488
    %v2490 = vpop.xlane.xlu0 %2489
    %v2491 = vsub.f32 %v2487, %v2490
    %v2492 = vmul.f32 %v2491, 1.442695
    %v2493 = vpow.pop %v2492
    %v2494 = vsel %vm157, %v2493, 0.0
    %2495 = vadd.xlane.f32.xlu0 %v2494
    %v2496 = vpop.xlane.xlu0 %2495
    %v2497 = vrcp.pop %v2496
    %v2498 = vmul.f32 %v2493, %v2497
    %2499 = vrot.lane.b32.xlu0 %v2402, 64
    %v2500 = vpop.permute.xlu0 %2499
    %v2503 = vsel %vm157, %v2498, 0
    %2505 = vmatprep.subr.mxu0 0.0
    %2506 = vmatpush1.msra.mxu0 %v2500
    %2507 = vmatprep.subr.mxu0 0.0
    %2508 = vmatpush1.msra.mxu0 0.0
    %2509 = vmatprep.subr.mxu0 0.0
    %2510 = vmatpush1.msra.mxu0 0.0
    %2511 = vmatprep.subr.mxu0 0.0
    %2512 = vmatpush1.msra.mxu0 0.0
    %2513 = vmatprep.subr.mxu0 0.0
    %2514 = vmatpush1.msra.mxu0 0.0
    %2515 = vmatprep.subr.mxu0 0.0
    %2516 = vmatpush1.msra.mxu0 0.0
    %2517 = vmatprep.subr.mxu0 0.0
    %2518 = vmatpush1.msra.mxu0 0.0
    %2519 = vmatprep.subr.mxu0 0.0
    %2520 = vmatpush1.msra.mxu0 0.0
    %2521 = vmatprep.subr.mxu0 0.0
    %2522 = vmatpush1.msra.mxu0 0.0
    %2523 = vmatprep.subr.mxu0 0.0
    %2524 = vmatpush1.msra.mxu0 0.0
    %2525 = vmatprep.subr.mxu0 0.0
    %2526 = vmatpush1.msra.mxu0 0.0
    %2527 = vmatprep.subr.mxu0 0.0
    %2528 = vmatpush1.msra.mxu0 0.0
    %2529 = vmatprep.subr.mxu0 0.0
    %2530 = vmatpush1.msra.mxu0 0.0
    %2531 = vmatprep.subr.mxu0 0.0
    %2532 = vmatpush1.msra.mxu0 0.0
    %2533 = vmatprep.subr.mxu0 0.0
    %2534 = vmatpush1.msra.mxu0 0.0
    %2535 = vmatprep.subr.mxu0 0.0
    %2536 = vmatpush1.msra.mxu0 0.0
    %2537 = vmatprep.subr.mxu0 0.0
    %2538 = vmatpush1.msra.mxu0 0.0
    %2539 = vmatprep.subr.mxu0 0.0
    %2540 = vmatpush1.msra.mxu0 0.0
    %2541 = vmatprep.subr.mxu0 0.0
    %2542 = vmatpush1.msra.mxu0 0.0
    %2543 = vmatprep.subr.mxu0 0.0
    %2544 = vmatpush1.msra.mxu0 0.0
    %2545 = vmatprep.subr.mxu0 0.0
    %2546 = vmatpush1.msra.mxu0 0.0
    %2547 = vmatprep.subr.mxu0 0.0
    %2548 = vmatpush1.msra.mxu0 0.0
    %2549 = vmatprep.subr.mxu0 0.0
    %2550 = vmatpush1.msra.mxu0 0.0
    %2551 = vmatprep.subr.mxu0 0.0
    %2552 = vmatpush1.msra.mxu0 0.0
    %2553 = vmatprep.subr.mxu0 0.0
    %2554 = vmatpush1.msra.mxu0 0.0
    %2555 = vmatprep.subr.mxu0 0.0
    %2556 = vmatpush1.msra.mxu0 0.0
    %2557 = vmatprep.subr.mxu0 0.0
    %2558 = vmatpush1.msra.mxu0 0.0
    %2559 = vmatprep.subr.mxu0 0.0
    %2560 = vmatpush1.msra.mxu0 0.0
    %2561 = vmatprep.subr.mxu0 0.0
    %2562 = vmatpush1.msra.mxu0 0.0
    %2563 = vmatprep.subr.mxu0 0.0
    %2564 = vmatpush1.msra.mxu0 0.0
    %2565 = vmatprep.subr.mxu0 0.0
    %2566 = vmatpush1.msra.mxu0 0.0
    %2567 = vmatprep.subr.mxu0 0.0
    %2568 = vmatpush1.msra.mxu0 0.0
    %2569 = vmatprep.mubr.f32.mxu0 0.0
    %2570 = vmatmul.mubr.f32.gmra.mrb[0].mxu0 %v2503
    %v2571 = vpop.f32.mrb[0].mxu0
    %v2572 = vadd.f32 0.0, %v2571
    %v2573 = vpop.f32.mrb[0].mxu0
    %2574 = vdwg.mxu0
    %2575 = vrot.lane.b32.xlu0 %v2402, 120
    %v2576 = vpop.permute.xlu0 %2575
    %2577 = vrot.lane.b32.xlu0 %v2402, 88
    %v2578 = vpop.permute.xlu0 %2577
    %v2579 = vsel %vm157, %v2576, 0
    %v2581 = vsel %vm157, %v2578, 0
    %2583 = vmatprep.subr.mxu0 0.0
    %2584 = vmatpush1.xpose.msra.mxu0 %v2581
    %2585 = vmatprep.subr.mxu0 0.0
    %2586 = vmatpush1.xpose.msra.mxu0 0.0
    %2587 = vmatprep.subr.mxu0 0.0
    %2588 = vmatpush1.xpose.msra.mxu0 0.0
    %2589 = vmatprep.subr.mxu0 0.0
    %2590 = vmatpush1.xpose.msra.mxu0 0.0
    %2591 = vmatprep.subr.mxu0 0.0
    %2592 = vmatpush1.xpose.msra.mxu0 0.0
    %2593 = vmatprep.subr.mxu0 0.0
    %2594 = vmatpush1.xpose.msra.mxu0 0.0
    %2595 = vmatprep.subr.mxu0 0.0
    %2596 = vmatpush1.xpose.msra.mxu0 0.0
    %2597 = vmatprep.subr.mxu0 0.0
    %2598 = vmatpush1.xpose.msra.mxu0 0.0
    %2599 = vmatprep.subr.mxu0 0.0
    %2600 = vmatpush1.xpose.msra.mxu0 0.0
    %2601 = vmatprep.subr.mxu0 0.0
    %2602 = vmatpush1.xpose.msra.mxu0 0.0
    %2603 = vmatprep.subr.mxu0 0.0
    %2604 = vmatpush1.xpose.msra.mxu0 0.0
    %2605 = vmatprep.subr.mxu0 0.0
    %2606 = vmatpush1.xpose.msra.mxu0 0.0
    %2607 = vmatprep.subr.mxu0 0.0
    %2608 = vmatpush1.xpose.msra.mxu0 0.0
    %2609 = vmatprep.subr.mxu0 0.0
    %2610 = vmatpush1.xpose.msra.mxu0 0.0
    %2611 = vmatprep.subr.mxu0 0.0
    %2612 = vmatpush1.xpose.msra.mxu0 0.0
    %2613 = vmatprep.subr.mxu0 0.0
    %2614 = vmatpush1.xpose.msra.mxu0 0.0
    %2615 = vmatprep.subr.mxu0 0.0
    %2616 = vmatpush1.xpose.msra.mxu0 0.0
    %2617 = vmatprep.subr.mxu0 0.0
    %2618 = vmatpush1.xpose.msra.mxu0 0.0
    %2619 = vmatprep.subr.mxu0 0.0
    %2620 = vmatpush1.xpose.msra.mxu0 0.0
    %2621 = vmatprep.subr.mxu0 0.0
    %2622 = vmatpush1.xpose.msra.mxu0 0.0
    %2623 = vmatprep.subr.mxu0 0.0
    %2624 = vmatpush1.xpose.msra.mxu0 0.0
    %2625 = vmatprep.subr.mxu0 0.0
    %2626 = vmatpush1.xpose.msra.mxu0 0.0
    %2627 = vmatprep.subr.mxu0 0.0
    %2628 = vmatpush1.xpose.msra.mxu0 0.0
    %2629 = vmatprep.subr.mxu0 0.0
    %2630 = vmatpush1.xpose.msra.mxu0 0.0
    %2631 = vmatprep.subr.mxu0 0.0
    %2632 = vmatpush1.xpose.msra.mxu0 0.0
    %2633 = vmatprep.subr.mxu0 0.0
    %2634 = vmatpush1.xpose.msra.mxu0 0.0
    %2635 = vmatprep.subr.mxu0 0.0
    %2636 = vmatpush1.xpose.msra.mxu0 0.0
    %2637 = vmatprep.subr.mxu0 0.0
    %2638 = vmatpush1.xpose.msra.mxu0 0.0
    %2639 = vmatprep.subr.mxu0 0.0
    %2640 = vmatpush1.xpose.msra.mxu0 0.0
    %2641 = vmatprep.subr.mxu0 0.0
    %2642 = vmatpush1.xpose.msra.mxu0 0.0
    %2643 = vmatprep.subr.mxu0 0.0
    %2644 = vmatpush1.xpose.msra.mxu0 0.0
    %2645 = vmatprep.subr.mxu0 0.0
    %2646 = vmatpush1.xpose.msra.mxu0 0.0
    %2647 = vmatprep.mubr.f32.mxu0 0.0
    %2648 = vmatmul.mubr.f32.gmra.mrb[0].mxu0 %v2579
    %v2649 = vpop.f32.mrb[0].mxu0
    %v2650 = vadd.f32 0.0, %v2649
    %v2651 = vpop.f32.mrb[0].mxu0
    %2652 = vdwg.mxu0
    %v2653 = vmul.f32 %v2650, 0.35355338
    %v2654 = vsel %vm157, %v2653, -inf
    %2655 = vmax.xlane.f32.xlu0 %v2654
    %v2656 = vpop.xlane.xlu0 %2655
    %v2657 = vsub.f32 %v2653, %v2656
    %v2658 = vmul.f32 %v2657, 1.442695
    %v2659 = vpow.pop %v2658
    %v2660 = vsel %vm157, %v2659, 0.0
    %2661 = vadd.xlane.f32.xlu0 %v2660
    %v2662 = vpop.xlane.xlu0 %2661
    %v2663 = vrcp.pop %v2662
    %v2664 = vmul.f32 %v2659, %v2663
    %2665 = vrot.lane.b32.xlu0 %v2402, 56
    %v2666 = vpop.permute.xlu0 %2665
    %v2669 = vsel %vm157, %v2664, 0
    %2671 = vmatprep.subr.mxu0 0.0
    %2672 = vmatpush1.msra.mxu0 %v2666
    %2673 = vmatprep.subr.mxu0 0.0
    %2674 = vmatpush1.msra.mxu0 0.0
    %2675 = vmatprep.subr.mxu0 0.0
    %2676 = vmatpush1.msra.mxu0 0.0
    %2677 = vmatprep.subr.mxu0 0.0
    %2678 = vmatpush1.msra.mxu0 0.0
    %2679 = vmatprep.subr.mxu0 0.0
    %2680 = vmatpush1.msra.mxu0 0.0
    %2681 = vmatprep.subr.mxu0 0.0
    %2682 = vmatpush1.msra.mxu0 0.0
    %2683 = vmatprep.subr.mxu0 0.0
    %2684 = vmatpush1.msra.mxu0 0.0
    %2685 = vmatprep.subr.mxu0 0.0
    %2686 = vmatpush1.msra.mxu0 0.0
    %2687 = vmatprep.subr.mxu0 0.0
    %2688 = vmatpush1.msra.mxu0 0.0
    %2689 = vmatprep.subr.mxu0 0.0
    %2690 = vmatpush1.msra.mxu0 0.0
    %2691 = vmatprep.subr.mxu0 0.0
    %2692 = vmatpush1.msra.mxu0 0.0
    %2693 = vmatprep.subr.mxu0 0.0
    %2694 = vmatpush1.msra.mxu0 0.0
    %2695 = vmatprep.subr.mxu0 0.0
    %2696 = vmatpush1.msra.mxu0 0.0
    %2697 = vmatprep.subr.mxu0 0.0
    %2698 = vmatpush1.msra.mxu0 0.0
    %2699 = vmatprep.subr.mxu0 0.0
    %2700 = vmatpush1.msra.mxu0 0.0
    %2701 = vmatprep.subr.mxu0 0.0
    %2702 = vmatpush1.msra.mxu0 0.0
    %2703 = vmatprep.subr.mxu0 0.0
    %2704 = vmatpush1.msra.mxu0 0.0
    %2705 = vmatprep.subr.mxu0 0.0
    %2706 = vmatpush1.msra.mxu0 0.0
    %2707 = vmatprep.subr.mxu0 0.0
    %2708 = vmatpush1.msra.mxu0 0.0
    %2709 = vmatprep.subr.mxu0 0.0
    %2710 = vmatpush1.msra.mxu0 0.0
    %2711 = vmatprep.subr.mxu0 0.0
    %2712 = vmatpush1.msra.mxu0 0.0
    %2713 = vmatprep.subr.mxu0 0.0
    %2714 = vmatpush1.msra.mxu0 0.0
    %2715 = vmatprep.subr.mxu0 0.0
    %2716 = vmatpush1.msra.mxu0 0.0
    %2717 = vmatprep.subr.mxu0 0.0
    %2718 = vmatpush1.msra.mxu0 0.0
    %2719 = vmatprep.subr.mxu0 0.0
    %2720 = vmatpush1.msra.mxu0 0.0
    %2721 = vmatprep.subr.mxu0 0.0
    %2722 = vmatpush1.msra.mxu0 0.0
    %2723 = vmatprep.subr.mxu0 0.0
    %2724 = vmatpush1.msra.mxu0 0.0
    %2725 = vmatprep.subr.mxu0 0.0
    %2726 = vmatpush1.msra.mxu0 0.0
    %2727 = vmatprep.subr.mxu0 0.0
    %2728 = vmatpush1.msra.mxu0 0.0
    %2729 = vmatprep.subr.mxu0 0.0
    %2730 = vmatpush1.msra.mxu0 0.0
    %2731 = vmatprep.subr.mxu0 0.0
    %2732 = vmatpush1.msra.mxu0 0.0
    %2733 = vmatprep.subr.mxu0 0.0
    %2734 = vmatpush1.msra.mxu0 0.0
    %2735 = vmatprep.mubr.f32.mxu0 0.0
    %2736 = vmatmul.mubr.f32.gmra.mrb[0].mxu0 %v2669
    %v2737 = vpop.f32.mrb[0].mxu0
    %v2738 = vadd.f32 0.0, %v2737
    %v2739 = vpop.f32.mrb[0].mxu0
    %2740 = vdwg.mxu0
    %v2742 = vsel %vm157, %v2738, 0
    %2744 = vmatprep.subr.mxu0 0.0
    %2745 = vmatpush1.msra.mxu0 %v43
    %2746 = vmatprep.subr.mxu0 0.0
    %2747 = vmatpush1.msra.mxu0 0.0
    %2748 = vmatprep.subr.mxu0 0.0
    %2749 = vmatpush1.msra.mxu0 0.0
    %2750 = vmatprep.subr.mxu0 0.0
    %2751 = vmatpush1.msra.mxu0 0.0
    %2752 = vmatprep.subr.mxu0 0.0
    %2753 = vmatpush1.msra.mxu0 0.0
    %2754 = vmatprep.subr.mxu0 0.0
    %2755 = vmatpush1.msra.mxu0 0.0
    %2756 = vmatprep.subr.mxu0 0.0
    %2757 = vmatpush1.msra.mxu0 0.0
    %2758 = vmatprep.subr.mxu0 0.0
    %2759 = vmatpush1.msra.mxu0 0.0
    %2760 = vmatprep.subr.mxu0 0.0
    %2761 = vmatpush1.msra.mxu0 0.0
    %2762 = vmatprep.subr.mxu0 0.0
    %2763 = vmatpush1.msra.mxu0 0.0
    %2764 = vmatprep.subr.mxu0 0.0
    %2765 = vmatpush1.msra.mxu0 0.0
    %2766 = vmatprep.subr.mxu0 0.0
    %2767 = vmatpush1.msra.mxu0 0.0
    %2768 = vmatprep.subr.mxu0 0.0
    %2769 = vmatpush1.msra.mxu0 0.0
    %2770 = vmatprep.subr.mxu0 0.0
    %2771 = vmatpush1.msra.mxu0 0.0
    %2772 = vmatprep.subr.mxu0 0.0
    %2773 = vmatpush1.msra.mxu0 0.0
    %2774 = vmatprep.subr.mxu0 0.0
    %2775 = vmatpush1.msra.mxu0 0.0
    %2776 = vmatprep.subr.mxu0 0.0
    %2777 = vmatpush1.msra.mxu0 0.0
    %2778 = vmatprep.subr.mxu0 0.0
    %2779 = vmatpush1.msra.mxu0 0.0
    %2780 = vmatprep.subr.mxu0 0.0
    %2781 = vmatpush1.msra.mxu0 0.0
    %2782 = vmatprep.subr.mxu0 0.0
    %2783 = vmatpush1.msra.mxu0 0.0
    %2784 = vmatprep.subr.mxu0 0.0
    %2785 = vmatpush1.msra.mxu0 0.0
    %2786 = vmatprep.subr.mxu0 0.0
    %2787 = vmatpush1.msra.mxu0 0.0
    %2788 = vmatprep.subr.mxu0 0.0
    %2789 = vmatpush1.msra.mxu0 0.0
    %2790 = vmatprep.subr.mxu0 0.0
    %2791 = vmatpush1.msra.mxu0 0.0
    %2792 = vmatprep.subr.mxu0 0.0
    %2793 = vmatpush1.msra.mxu0 0.0
    %2794 = vmatprep.subr.mxu0 0.0
    %2795 = vmatpush1.msra.mxu0 0.0
    %2796 = vmatprep.subr.mxu0 0.0
    %2797 = vmatpush1.msra.mxu0 0.0
    %2798 = vmatprep.subr.mxu0 0.0
    %2799 = vmatpush1.msra.mxu0 0.0
    %2800 = vmatprep.subr.mxu0 0.0
    %2801 = vmatpush1.msra.mxu0 0.0
    %2802 = vmatprep.subr.mxu0 0.0
    %2803 = vmatpush1.msra.mxu0 0.0
    %2804 = vmatprep.subr.mxu0 0.0
    %2805 = vmatpush1.msra.mxu0 0.0
    %2806 = vmatprep.subr.mxu0 0.0
    %2807 = vmatpush1.msra.mxu0 0.0
    %2808 = vmatprep.mubr.f32.mxu0 0.0
    %2809 = vmatmul.mubr.f32.gmra.mrb[0].mxu0 %v2742
    %v2810 = vpop.f32.mrb[0].mxu0
    %v2811 = vadd.f32 0.0, %v2810
    %v2812 = vpop.f32.mrb[0].mxu0
    %2813 = vdwg.mxu0
    %v2815 = vsel %vm157, %v2572, 0
    %2817 = vmatprep.subr.mxu0 0.0
    %2818 = vmatpush1.msra.mxu0 %v42
    %2819 = vmatprep.subr.mxu0 0.0
    %2820 = vmatpush1.msra.mxu0 0.0
    %2821 = vmatprep.subr.mxu0 0.0
    %2822 = vmatpush1.msra.mxu0 0.0
    %2823 = vmatprep.subr.mxu0 0.0
    %2824 = vmatpush1.msra.mxu0 0.0
    %2825 = vmatprep.subr.mxu0 0.0
    %2826 = vmatpush1.msra.mxu0 0.0
    %2827 = vmatprep.subr.mxu0 0.0
    %2828 = vmatpush1.msra.mxu0 0.0
    %2829 = vmatprep.subr.mxu0 0.0
    %2830 = vmatpush1.msra.mxu0 0.0
    %2831 = vmatprep.subr.mxu0 0.0
    %2832 = vmatpush1.msra.mxu0 0.0
    %2833 = vmatprep.subr.mxu0 0.0
    %2834 = vmatpush1.msra.mxu0 0.0
    %2835 = vmatprep.subr.mxu0 0.0
    %2836 = vmatpush1.msra.mxu0 0.0
    %2837 = vmatprep.subr.mxu0 0.0
    %2838 = vmatpush1.msra.mxu0 0.0
    %2839 = vmatprep.subr.mxu0 0.0
    %2840 = vmatpush1.msra.mxu0 0.0
    %2841 = vmatprep.subr.mxu0 0.0
    %2842 = vmatpush1.msra.mxu0 0.0
    %2843 = vmatprep.subr.mxu0 0.0
    %2844 = vmatpush1.msra.mxu0 0.0
    %2845 = vmatprep.subr.mxu0 0.0
    %2846 = vmatpush1.msra.mxu0 0.0
    %2847 = vmatprep.subr.mxu0 0.0
    %2848 = vmatpush1.msra.mxu0 0.0
    %2849 = vmatprep.subr.mxu0 0.0
    %2850 = vmatpush1.msra.mxu0 0.0
    %2851 = vmatprep.subr.mxu0 0.0
    %2852 = vmatpush1.msra.mxu0 0.0
    %2853 = vmatprep.subr.mxu0 0.0
    %2854 = vmatpush1.msra.mxu0 0.0
    %2855 = vmatprep.subr.mxu0 0.0
    %2856 = vmatpush1.msra.mxu0 0.0
    %2857 = vmatprep.subr.mxu0 0.0
    %2858 = vmatpush1.msra.mxu0 0.0
    %2859 = vmatprep.subr.mxu0 0.0
    %2860 = vmatpush1.msra.mxu0 0.0
    %2861 = vmatprep.subr.mxu0 0.0
    %2862 = vmatpush1.msra.mxu0 0.0
    %2863 = vmatprep.subr.mxu0 0.0
    %2864 = vmatpush1.msra.mxu0 0.0
    %2865 = vmatprep.subr.mxu0 0.0
    %2866 = vmatpush1.msra.mxu0 0.0
    %2867 = vmatprep.subr.mxu0 0.0
    %2868 = vmatpush1.msra.mxu0 0.0
    %2869 = vmatprep.subr.mxu0 0.0
    %2870 = vmatpush1.msra.mxu0 0.0
    %2871 = vmatprep.subr.mxu0 0.0
    %2872 = vmatpush1.msra.mxu0 0.0
    %2873 = vmatprep.subr.mxu0 0.0
    %2874 = vmatpush1.msra.mxu0 0.0
    %2875 = vmatprep.subr.mxu0 0.0
    %2876 = vmatpush1.msra.mxu0 0.0
    %2877 = vmatprep.subr.mxu0 0.0
    %2878 = vmatpush1.msra.mxu0 0.0
    %2879 = vmatprep.subr.mxu0 0.0
    %2880 = vmatpush1.msra.mxu0 0.0
    %2881 = vmatprep.mubr.f32.mxu0 0.0
    %2882 = vmatmul.mubr.f32.gmra.mrb[0].mxu0 %v2815
    %v2883 = vpop.f32.mrb[0].mxu0
    %v2884 = vadd.f32 %v2811, %v2883
    %v2885 = vpop.f32.mrb[0].mxu0
    %2886 = vdwg.mxu0
    %2887 = vrot.lane.b32.xlu0 %v2402, 112
    %v2888 = vpop.permute.xlu0 %2887
    %2889 = vrot.lane.b32.xlu0 %v2402, 80
    %v2890 = vpop.permute.xlu0 %2889
    %v2891 = vsel %vm157, %v2888, 0
    %v2893 = vsel %vm157, %v2890, 0
    %2895 = vmatprep.subr.mxu0 0.0
    %2896 = vmatpush1.xpose.msra.mxu0 %v2893
    %2897 = vmatprep.subr.mxu0 0.0
    %2898 = vmatpush1.xpose.msra.mxu0 0.0
    %2899 = vmatprep.subr.mxu0 0.0
    %2900 = vmatpush1.xpose.msra.mxu0 0.0
    %2901 = vmatprep.subr.mxu0 0.0
    %2902 = vmatpush1.xpose.msra.mxu0 0.0
    %2903 = vmatprep.subr.mxu0 0.0
    %2904 = vmatpush1.xpose.msra.mxu0 0.0
    %2905 = vmatprep.subr.mxu0 0.0
    %2906 = vmatpush1.xpose.msra.mxu0 0.0
    %2907 = vmatprep.subr.mxu0 0.0
    %2908 = vmatpush1.xpose.msra.mxu0 0.0
    %2909 = vmatprep.subr.mxu0 0.0
    %2910 = vmatpush1.xpose.msra.mxu0 0.0
    %2911 = vmatprep.subr.mxu0 0.0
    %2912 = vmatpush1.xpose.msra.mxu0 0.0
    %2913 = vmatprep.subr.mxu0 0.0
    %2914 = vmatpush1.xpose.msra.mxu0 0.0
    %2915 = vmatprep.subr.mxu0 0.0
    %2916 = vmatpush1.xpose.msra.mxu0 0.0
    %2917 = vmatprep.subr.mxu0 0.0
    %2918 = vmatpush1.xpose.msra.mxu0 0.0
    %2919 = vmatprep.subr.mxu0 0.0
    %2920 = vmatpush1.xpose.msra.mxu0 0.0
    %2921 = vmatprep.subr.mxu0 0.0
    %2922 = vmatpush1.xpose.msra.mxu0 0.0
    %2923 = vmatprep.subr.mxu0 0.0
    %2924 = vmatpush1.xpose.msra.mxu0 0.0
    %2925 = vmatprep.subr.mxu0 0.0
    %2926 = vmatpush1.xpose.msra.mxu0 0.0
    %2927 = vmatprep.subr.mxu0 0.0
    %2928 = vmatpush1.xpose.msra.mxu0 0.0
    %2929 = vmatprep.subr.mxu0 0.0
    %2930 = vmatpush1.xpose.msra.mxu0 0.0
    %2931 = vmatprep.subr.mxu0 0.0
    %2932 = vmatpush1.xpose.msra.mxu0 0.0
    %2933 = vmatprep.subr.mxu0 0.0
    %2934 = vmatpush1.xpose.msra.mxu0 0.0
    %2935 = vmatprep.subr.mxu0 0.0
    %2936 = vmatpush1.xpose.msra.mxu0 0.0
    %2937 = vmatprep.subr.mxu0 0.0
    %2938 = vmatpush1.xpose.msra.mxu0 0.0
    %2939 = vmatprep.subr.mxu0 0.0
    %2940 = vmatpush1.xpose.msra.mxu0 0.0
    %2941 = vmatprep.subr.mxu0 0.0
    %2942 = vmatpush1.xpose.msra.mxu0 0.0
    %2943 = vmatprep.subr.mxu0 0.0
    %2944 = vmatpush1.xpose.msra.mxu0 0.0
    %2945 = vmatprep.subr.mxu0 0.0
    %2946 = vmatpush1.xpose.msra.mxu0 0.0
    %2947 = vmatprep.subr.mxu0 0.0
    %2948 = vmatpush1.xpose.msra.mxu0 0.0
    %2949 = vmatprep.subr.mxu0 0.0
    %2950 = vmatpush1.xpose.msra.mxu0 0.0
    %2951 = vmatprep.subr.mxu0 0.0
    %2952 = vmatpush1.xpose.msra.mxu0 0.0
    %2953 = vmatprep.subr.mxu0 0.0
    %2954 = vmatpush1.xpose.msra.mxu0 0.0
    %2955 = vmatprep.subr.mxu0 0.0
    %2956 = vmatpush1.xpose.msra.mxu0 0.0
    %2957 = vmatprep.subr.mxu0 0.0
    %2958 = vmatpush1.xpose.msra.mxu0 0.0
    %2959 = vmatprep.mubr.f32.mxu0 0.0
    %2960 = vmatmul.mubr.f32.gmra.mrb[0].mxu0 %v2891
    %v2961 = vpop.f32.mrb[0].mxu0
    %v2962 = vadd.f32 0.0, %v2961
    %v2963 = vpop.f32.mrb[0].mxu0
    %2964 = vdwg.mxu0
    %v2965 = vmul.f32 %v2962, 0.35355338
    %v2966 = vsel %vm157, %v2965, -inf
    %2967 = vmax.xlane.f32.xlu0 %v2966
    %v2968 = vpop.xlane.xlu0 %2967
    %v2969 = vsub.f32 %v2965, %v2968
    %v2970 = vmul.f32 %v2969, 1.442695
    %v2971 = vpow.pop %v2970
    %v2972 = vsel %vm157, %v2971, 0.0
    %2973 = vadd.xlane.f32.xlu0 %v2972
    %v2974 = vpop.xlane.xlu0 %2973
    %v2975 = vrcp.pop %v2974
    %v2976 = vmul.f32 %v2971, %v2975
    %2977 = vrot.lane.b32.xlu0 %v2402, 48
    %v2978 = vpop.permute.xlu0 %2977
    %v2981 = vsel %vm157, %v2976, 0
    %2983 = vmatprep.subr.mxu0 0.0
    %2984 = vmatpush1.msra.mxu0 %v2978
    %2985 = vmatprep.subr.mxu0 0.0
    %2986 = vmatpush1.msra.mxu0 0.0
    %2987 = vmatprep.subr.mxu0 0.0
    %2988 = vmatpush1.msra.mxu0 0.0
    %2989 = vmatprep.subr.mxu0 0.0
    %2990 = vmatpush1.msra.mxu0 0.0
    %2991 = vmatprep.subr.mxu0 0.0
    %2992 = vmatpush1.msra.mxu0 0.0
    %2993 = vmatprep.subr.mxu0 0.0
    %2994 = vmatpush1.msra.mxu0 0.0
    %2995 = vmatprep.subr.mxu0 0.0
    %2996 = vmatpush1.msra.mxu0 0.0
    %2997 = vmatprep.subr.mxu0 0.0
    %2998 = vmatpush1.msra.mxu0 0.0
    %2999 = vmatprep.subr.mxu0 0.0
    %3000 = vmatpush1.msra.mxu0 0.0
    %3001 = vmatprep.subr.mxu0 0.0
    %3002 = vmatpush1.msra.mxu0 0.0
    %3003 = vmatprep.subr.mxu0 0.0
    %3004 = vmatpush1.msra.mxu0 0.0
    %3005 = vmatprep.subr.mxu0 0.0
    %3006 = vmatpush1.msra.mxu0 0.0
    %3007 = vmatprep.subr.mxu0 0.0
    %3008 = vmatpush1.msra.mxu0 0.0
    %3009 = vmatprep.subr.mxu0 0.0
    %3010 = vmatpush1.msra.mxu0 0.0
    %3011 = vmatprep.subr.mxu0 0.0
    %3012 = vmatpush1.msra.mxu0 0.0
    %3013 = vmatprep.subr.mxu0 0.0
    %3014 = vmatpush1.msra.mxu0 0.0
    %3015 = vmatprep.subr.mxu0 0.0
    %3016 = vmatpush1.msra.mxu0 0.0
    %3017 = vmatprep.subr.mxu0 0.0
    %3018 = vmatpush1.msra.mxu0 0.0
    %3019 = vmatprep.subr.mxu0 0.0
    %3020 = vmatpush1.msra.mxu0 0.0
    %3021 = vmatprep.subr.mxu0 0.0
    %3022 = vmatpush1.msra.mxu0 0.0
    %3023 = vmatprep.subr.mxu0 0.0
    %3024 = vmatpush1.msra.mxu0 0.0
    %3025 = vmatprep.subr.mxu0 0.0
    %3026 = vmatpush1.msra.mxu0 0.0
    %3027 = vmatprep.subr.mxu0 0.0
    %3028 = vmatpush1.msra.mxu0 0.0
    %3029 = vmatprep.subr.mxu0 0.0
    %3030 = vmatpush1.msra.mxu0 0.0
    %3031 = vmatprep.subr.mxu0 0.0
    %3032 = vmatpush1.msra.mxu0 0.0
    %3033 = vmatprep.subr.mxu0 0.0
    %3034 = vmatpush1.msra.mxu0 0.0
    %3035 = vmatprep.subr.mxu0 0.0
    %3036 = vmatpush1.msra.mxu0 0.0
    %3037 = vmatprep.subr.mxu0 0.0
    %3038 = vmatpush1.msra.mxu0 0.0
    %3039 = vmatprep.subr.mxu0 0.0
    %3040 = vmatpush1.msra.mxu0 0.0
    %3041 = vmatprep.subr.mxu0 0.0
    %3042 = vmatpush1.msra.mxu0 0.0
    %3043 = vmatprep.subr.mxu0 0.0
    %3044 = vmatpush1.msra.mxu0 0.0
    %3045 = vmatprep.subr.mxu0 0.0
    %3046 = vmatpush1.msra.mxu0 0.0
    %3047 = vmatprep.mubr.f32.mxu0 0.0
    %3048 = vmatmul.mubr.f32.gmra.mrb[0].mxu0 %v2981
    %v3049 = vpop.f32.mrb[0].mxu0
    %v3050 = vadd.f32 0.0, %v3049
    %v3051 = vpop.f32.mrb[0].mxu0
    %3052 = vdwg.mxu0
    %v3054 = vsel %vm157, %v3050, 0
    %3056 = vmatprep.subr.mxu0 0.0
    %3057 = vmatpush1.msra.mxu0 %v44
    %3058 = vmatprep.subr.mxu0 0.0
    %3059 = vmatpush1.msra.mxu0 0.0
    %3060 = vmatprep.subr.mxu0 0.0
    %3061 = vmatpush1.msra.mxu0 0.0
    %3062 = vmatprep.subr.mxu0 0.0
    %3063 = vmatpush1.msra.mxu0 0.0
    %3064 = vmatprep.subr.mxu0 0.0
    %3065 = vmatpush1.msra.mxu0 0.0
    %3066 = vmatprep.subr.mxu0 0.0
    %3067 = vmatpush1.msra.mxu0 0.0
    %3068 = vmatprep.subr.mxu0 0.0
    %3069 = vmatpush1.msra.mxu0 0.0
    %3070 = vmatprep.subr.mxu0 0.0
    %3071 = vmatpush1.msra.mxu0 0.0
    %3072 = vmatprep.subr.mxu0 0.0
    %3073 = vmatpush1.msra.mxu0 0.0
    %3074 = vmatprep.subr.mxu0 0.0
    %3075 = vmatpush1.msra.mxu0 0.0
    %3076 = vmatprep.subr.mxu0 0.0
    %3077 = vmatpush1.msra.mxu0 0.0
    %3078 = vmatprep.subr.mxu0 0.0
    %3079 = vmatpush1.msra.mxu0 0.0
    %3080 = vmatprep.subr.mxu0 0.0
    %3081 = vmatpush1.msra.mxu0 0.0
    %3082 = vmatprep.subr.mxu0 0.0
    %3083 = vmatpush1.msra.mxu0 0.0
    %3084 = vmatprep.subr.mxu0 0.0
    %3085 = vmatpush1.msra.mxu0 0.0
    %3086 = vmatprep.subr.mxu0 0.0
    %3087 = vmatpush1.msra.mxu0 0.0
    %3088 = vmatprep.subr.mxu0 0.0
    %3089 = vmatpush1.msra.mxu0 0.0
    %3090 = vmatprep.subr.mxu0 0.0
    %3091 = vmatpush1.msra.mxu0 0.0
    %3092 = vmatprep.subr.mxu0 0.0
    %3093 = vmatpush1.msra.mxu0 0.0
    %3094 = vmatprep.subr.mxu0 0.0
    %3095 = vmatpush1.msra.mxu0 0.0
    %3096 = vmatprep.subr.mxu0 0.0
    %3097 = vmatpush1.msra.mxu0 0.0
    %3098 = vmatprep.subr.mxu0 0.0
    %3099 = vmatpush1.msra.mxu0 0.0
    %3100 = vmatprep.subr.mxu0 0.0
    %3101 = vmatpush1.msra.mxu0 0.0
    %3102 = vmatprep.subr.mxu0 0.0
    %3103 = vmatpush1.msra.mxu0 0.0
    %3104 = vmatprep.subr.mxu0 0.0
    %3105 = vmatpush1.msra.mxu0 0.0
    %3106 = vmatprep.subr.mxu0 0.0
    %3107 = vmatpush1.msra.mxu0 0.0
    %3108 = vmatprep.subr.mxu0 0.0
    %3109 = vmatpush1.msra.mxu0 0.0
    %3110 = vmatprep.subr.mxu0 0.0
    %3111 = vmatpush1.msra.mxu0 0.0
    %3112 = vmatprep.subr.mxu0 0.0
    %3113 = vmatpush1.msra.mxu0 0.0
    %3114 = vmatprep.subr.mxu0 0.0
    %3115 = vmatpush1.msra.mxu0 0.0
    %3116 = vmatprep.subr.mxu0 0.0
    %3117 = vmatpush1.msra.mxu0 0.0
    %3118 = vmatprep.subr.mxu0 0.0
    %3119 = vmatpush1.msra.mxu0 0.0
    %3120 = vmatprep.mubr.f32.mxu0 0.0
    %3121 = vmatmul.mubr.f32.gmra.mrb[0].mxu0 %v3054
    %v3122 = vpop.f32.mrb[0].mxu0
    %v3123 = vadd.f32 0.0, %v3122
    %v3124 = vpop.f32.mrb[0].mxu0
    %3125 = vdwg.mxu0
    %v3126 = vadd.f32 %v2884, %v3123
    %3127 = vrot.lane.b32.xlu0 %v2402, 104
    %v3128 = vpop.permute.xlu0 %3127
    %3129 = vrot.lane.b32.xlu0 %v2402, 72
    %v3130 = vpop.permute.xlu0 %3129
    %v3131 = vsel %vm157, %v3128, 0
    %v3133 = vsel %vm157, %v3130, 0
    %3135 = vmatprep.subr.mxu0 0.0
    %3136 = vmatpush1.xpose.msra.mxu0 %v3133
    %3137 = vmatprep.subr.mxu0 0.0
    %3138 = vmatpush1.xpose.msra.mxu0 0.0
    %3139 = vmatprep.subr.mxu0 0.0
    %3140 = vmatpush1.xpose.msra.mxu0 0.0
    %3141 = vmatprep.subr.mxu0 0.0
    %3142 = vmatpush1.xpose.msra.mxu0 0.0
    %3143 = vmatprep.subr.mxu0 0.0
    %3144 = vmatpush1.xpose.msra.mxu0 0.0
    %3145 = vmatprep.subr.mxu0 0.0
    %3146 = vmatpush1.xpose.msra.mxu0 0.0
    %3147 = vmatprep.subr.mxu0 0.0
    %3148 = vmatpush1.xpose.msra.mxu0 0.0
    %3149 = vmatprep.subr.mxu0 0.0
    %3150 = vmatpush1.xpose.msra.mxu0 0.0
    %3151 = vmatprep.subr.mxu0 0.0
    %3152 = vmatpush1.xpose.msra.mxu0 0.0
    %3153 = vmatprep.subr.mxu0 0.0
    %3154 = vmatpush1.xpose.msra.mxu0 0.0
    %3155 = vmatprep.subr.mxu0 0.0
    %3156 = vmatpush1.xpose.msra.mxu0 0.0
    %3157 = vmatprep.subr.mxu0 0.0
    %3158 = vmatpush1.xpose.msra.mxu0 0.0
    %3159 = vmatprep.subr.mxu0 0.0
    %3160 = vmatpush1.xpose.msra.mxu0 0.0
    %3161 = vmatprep.subr.mxu0 0.0
    %3162 = vmatpush1.xpose.msra.mxu0 0.0
    %3163 = vmatprep.subr.mxu0 0.0
    %3164 = vmatpush1.xpose.msra.mxu0 0.0
    %3165 = vmatprep.subr.mxu0 0.0
    %3166 = vmatpush1.xpose.msra.mxu0 0.0
    %3167 = vmatprep.subr.mxu0 0.0
    %3168 = vmatpush1.xpose.msra.mxu0 0.0
    %3169 = vmatprep.subr.mxu0 0.0
    %3170 = vmatpush1.xpose.msra.mxu0 0.0
    %3171 = vmatprep.subr.mxu0 0.0
    %3172 = vmatpush1.xpose.msra.mxu0 0.0
    %3173 = vmatprep.subr.mxu0 0.0
    %3174 = vmatpush1.xpose.msra.mxu0 0.0
    %3175 = vmatprep.subr.mxu0 0.0
    %3176 = vmatpush1.xpose.msra.mxu0 0.0
    %3177 = vmatprep.subr.mxu0 0.0
    %3178 = vmatpush1.xpose.msra.mxu0 0.0
    %3179 = vmatprep.subr.mxu0 0.0
    %3180 = vmatpush1.xpose.msra.mxu0 0.0
    %3181 = vmatprep.subr.mxu0 0.0
    %3182 = vmatpush1.xpose.msra.mxu0 0.0
    %3183 = vmatprep.subr.mxu0 0.0
    %3184 = vmatpush1.xpose.msra.mxu0 0.0
    %3185 = vmatprep.subr.mxu0 0.0
    %3186 = vmatpush1.xpose.msra.mxu0 0.0
    %3187 = vmatprep.subr.mxu0 0.0
    %3188 = vmatpush1.xpose.msra.mxu0 0.0
    %3189 = vmatprep.subr.mxu0 0.0
    %3190 = vmatpush1.xpose.msra.mxu0 0.0
    %3191 = vmatprep.subr.mxu0 0.0
    %3192 = vmatpush1.xpose.msra.mxu0 0.0
    %3193 = vmatprep.subr.mxu0 0.0
    %3194 = vmatpush1.xpose.msra.mxu0 0.0
    %3195 = vmatprep.subr.mxu0 0.0
    %3196 = vmatpush1.xpose.msra.mxu0 0.0
    %3197 = vmatprep.subr.mxu0 0.0
    %3198 = vmatpush1.xpose.msra.mxu0 0.0
    %3199 = vmatprep.mubr.f32.mxu0 0.0
    %3200 = vmatmul.mubr.f32.gmra.mrb[0].mxu0 %v3131
    %v3201 = vpop.f32.mrb[0].mxu0
    %v3202 = vadd.f32 0.0, %v3201
    %v3203 = vpop.f32.mrb[0].mxu0
    %3204 = vdwg.mxu0
    %v3205 = vmul.f32 %v3202, 0.35355338
    %v3206 = vsel %vm157, %v3205, -inf
    %3207 = vmax.xlane.f32.xlu0 %v3206
    %v3208 = vpop.xlane.xlu0 %3207
    %v3209 = vsub.f32 %v3205, %v3208
    %v3210 = vmul.f32 %v3209, 1.442695
    %v3211 = vpow.pop %v3210
    %v3212 = vsel %vm157, %v3211, 0.0
    %3213 = vadd.xlane.f32.xlu0 %v3212
    %v3214 = vpop.xlane.xlu0 %3213
    %v3215 = vrcp.pop %v3214
    %v3216 = vmul.f32 %v3211, %v3215
    %3217 = vrot.lane.b32.xlu0 %v2402, 40
    %v3218 = vpop.permute.xlu0 %3217
    %v3221 = vsel %vm157, %v3216, 0
    %3223 = vmatprep.subr.mxu0 0.0
    %3224 = vmatpush1.msra.mxu0 %v3218
    %3225 = vmatprep.subr.mxu0 0.0
    %3226 = vmatpush1.msra.mxu0 0.0
    %3227 = vmatprep.subr.mxu0 0.0
    %3228 = vmatpush1.msra.mxu0 0.0
    %3229 = vmatprep.subr.mxu0 0.0
    %3230 = vmatpush1.msra.mxu0 0.0
    %3231 = vmatprep.subr.mxu0 0.0
    %3232 = vmatpush1.msra.mxu0 0.0
    %3233 = vmatprep.subr.mxu0 0.0
    %3234 = vmatpush1.msra.mxu0 0.0
    %3235 = vmatprep.subr.mxu0 0.0
    %3236 = vmatpush1.msra.mxu0 0.0
    %3237 = vmatprep.subr.mxu0 0.0
    %3238 = vmatpush1.msra.mxu0 0.0
    %3239 = vmatprep.subr.mxu0 0.0
    %3240 = vmatpush1.msra.mxu0 0.0
    %3241 = vmatprep.subr.mxu0 0.0
    %3242 = vmatpush1.msra.mxu0 0.0
    %3243 = vmatprep.subr.mxu0 0.0
    %3244 = vmatpush1.msra.mxu0 0.0
    %3245 = vmatprep.subr.mxu0 0.0
    %3246 = vmatpush1.msra.mxu0 0.0
    %3247 = vmatprep.subr.mxu0 0.0
    %3248 = vmatpush1.msra.mxu0 0.0
    %3249 = vmatprep.subr.mxu0 0.0
    %3250 = vmatpush1.msra.mxu0 0.0
    %3251 = vmatprep.subr.mxu0 0.0
    %3252 = vmatpush1.msra.mxu0 0.0
    %3253 = vmatprep.subr.mxu0 0.0
    %3254 = vmatpush1.msra.mxu0 0.0
    %3255 = vmatprep.subr.mxu0 0.0
    %3256 = vmatpush1.msra.mxu0 0.0
    %3257 = vmatprep.subr.mxu0 0.0
    %3258 = vmatpush1.msra.mxu0 0.0
    %3259 = vmatprep.subr.mxu0 0.0
    %3260 = vmatpush1.msra.mxu0 0.0
    %3261 = vmatprep.subr.mxu0 0.0
    %3262 = vmatpush1.msra.mxu0 0.0
    %3263 = vmatprep.subr.mxu0 0.0
    %3264 = vmatpush1.msra.mxu0 0.0
    %3265 = vmatprep.subr.mxu0 0.0
    %3266 = vmatpush1.msra.mxu0 0.0
    %3267 = vmatprep.subr.mxu0 0.0
    %3268 = vmatpush1.msra.mxu0 0.0
    %3269 = vmatprep.subr.mxu0 0.0
    %3270 = vmatpush1.msra.mxu0 0.0
    %3271 = vmatprep.subr.mxu0 0.0
    %3272 = vmatpush1.msra.mxu0 0.0
    %3273 = vmatprep.subr.mxu0 0.0
    %3274 = vmatpush1.msra.mxu0 0.0
    %3275 = vmatprep.subr.mxu0 0.0
    %3276 = vmatpush1.msra.mxu0 0.0
    %3277 = vmatprep.subr.mxu0 0.0
    %3278 = vmatpush1.msra.mxu0 0.0
    %3279 = vmatprep.subr.mxu0 0.0
    %3280 = vmatpush1.msra.mxu0 0.0
    %3281 = vmatprep.subr.mxu0 0.0
    %3282 = vmatpush1.msra.mxu0 0.0
    %3283 = vmatprep.subr.mxu0 0.0
    %3284 = vmatpush1.msra.mxu0 0.0
    %3285 = vmatprep.subr.mxu0 0.0
    %3286 = vmatpush1.msra.mxu0 0.0
    %3287 = vmatprep.mubr.f32.mxu0 0.0
    %3288 = vmatmul.mubr.f32.gmra.mrb[0].mxu0 %v3221
    %v3289 = vpop.f32.mrb[0].mxu0
    %v3290 = vadd.f32 0.0, %v3289
    %v3291 = vpop.f32.mrb[0].mxu0
    %3292 = vdwg.mxu0
    %v3294 = vsel %vm157, %v3290, 0
    %3296 = vmatprep.subr.mxu0 0.0
    %3297 = vmatpush1.msra.mxu0 %v45
    %3298 = vmatprep.subr.mxu0 0.0
    %3299 = vmatpush1.msra.mxu0 0.0
    %3300 = vmatprep.subr.mxu0 0.0
    %3301 = vmatpush1.msra.mxu0 0.0
    %3302 = vmatprep.subr.mxu0 0.0
    %3303 = vmatpush1.msra.mxu0 0.0
    %3304 = vmatprep.subr.mxu0 0.0
    %3305 = vmatpush1.msra.mxu0 0.0
    %3306 = vmatprep.subr.mxu0 0.0
    %3307 = vmatpush1.msra.mxu0 0.0
    %3308 = vmatprep.subr.mxu0 0.0
    %3309 = vmatpush1.msra.mxu0 0.0
    %3310 = vmatprep.subr.mxu0 0.0
    %3311 = vmatpush1.msra.mxu0 0.0
    %3312 = vmatprep.subr.mxu0 0.0
    %3313 = vmatpush1.msra.mxu0 0.0
    %3314 = vmatprep.subr.mxu0 0.0
    %3315 = vmatpush1.msra.mxu0 0.0
    %3316 = vmatprep.subr.mxu0 0.0
    %3317 = vmatpush1.msra.mxu0 0.0
    %3318 = vmatprep.subr.mxu0 0.0
    %3319 = vmatpush1.msra.mxu0 0.0
    %3320 = vmatprep.subr.mxu0 0.0
    %3321 = vmatpush1.msra.mxu0 0.0
    %3322 = vmatprep.subr.mxu0 0.0
    %3323 = vmatpush1.msra.mxu0 0.0
    %3324 = vmatprep.subr.mxu0 0.0
    %3325 = vmatpush1.msra.mxu0 0.0
    %3326 = vmatprep.subr.mxu0 0.0
    %3327 = vmatpush1.msra.mxu0 0.0
    %3328 = vmatprep.subr.mxu0 0.0
    %3329 = vmatpush1.msra.mxu0 0.0
    %3330 = vmatprep.subr.mxu0 0.0
    %3331 = vmatpush1.msra.mxu0 0.0
    %3332 = vmatprep.subr.mxu0 0.0
    %3333 = vmatpush1.msra.mxu0 0.0
    %3334 = vmatprep.subr.mxu0 0.0
    %3335 = vmatpush1.msra.mxu0 0.0
    %3336 = vmatprep.subr.mxu0 0.0
    %3337 = vmatpush1.msra.mxu0 0.0
    %3338 = vmatprep.subr.mxu0 0.0
    %3339 = vmatpush1.msra.mxu0 0.0
    %3340 = vmatprep.subr.mxu0 0.0
    %3341 = vmatpush1.msra.mxu0 0.0
    %3342 = vmatprep.subr.mxu0 0.0
    %3343 = vmatpush1.msra.mxu0 0.0
    %3344 = vmatprep.subr.mxu0 0.0
    %3345 = vmatpush1.msra.mxu0 0.0
    %3346 = vmatprep.subr.mxu0 0.0
    %3347 = vmatpush1.msra.mxu0 0.0
    %3348 = vmatprep.subr.mxu0 0.0
    %3349 = vmatpush1.msra.mxu0 0.0
    %3350 = vmatprep.subr.mxu0 0.0
    %3351 = vmatpush1.msra.mxu0 0.0
    %3352 = vmatprep.subr.mxu0 0.0
    %3353 = vmatpush1.msra.mxu0 0.0
    %3354 = vmatprep.subr.mxu0 0.0
    %3355 = vmatpush1.msra.mxu0 0.0
    %3356 = vmatprep.subr.mxu0 0.0
    %3357 = vmatpush1.msra.mxu0 0.0
    %3358 = vmatprep.subr.mxu0 0.0
    %3359 = vmatpush1.msra.mxu0 0.0
    %3360 = vmatprep.mubr.f32.mxu0 0.0
    %3361 = vmatmul.mubr.f32.gmra.mrb[0].mxu0 %v3294
    %v3362 = vpop.f32.mrb[0].mxu0
    %v3363 = vadd.f32 0.0, %v3362
    %v3364 = vpop.f32.mrb[0].mxu0
    %3365 = vdwg.mxu0
    %v3366 = vadd.f32 %v3126, %v3363
    %3368 = vrot.lane.b32.xlu0 %v2407, 96
    %v3369 = vpop.permute.xlu0 %3368
    %v3370 = vsel %vm157, %v2407, 0
    %v3372 = vsel %vm157, %v3369, 0
    %3374 = vmatprep.subr.mxu0 0.0
    %3375 = vmatpush1.xpose.msra.mxu0 %v3372
    %3376 = vmatprep.subr.mxu0 0.0
    %3377 = vmatpush1.xpose.msra.mxu0 0.0
    %3378 = vmatprep.subr.mxu0 0.0
    %3379 = vmatpush1.xpose.msra.mxu0 0.0
    %3380 = vmatprep.subr.mxu0 0.0
    %3381 = vmatpush1.xpose.msra.mxu0 0.0
    %3382 = vmatprep.subr.mxu0 0.0
    %3383 = vmatpush1.xpose.msra.mxu0 0.0
    %3384 = vmatprep.subr.mxu0 0.0
    %3385 = vmatpush1.xpose.msra.mxu0 0.0
    %3386 = vmatprep.subr.mxu0 0.0
    %3387 = vmatpush1.xpose.msra.mxu0 0.0
    %3388 = vmatprep.subr.mxu0 0.0
    %3389 = vmatpush1.xpose.msra.mxu0 0.0
    %3390 = vmatprep.subr.mxu0 0.0
    %3391 = vmatpush1.xpose.msra.mxu0 0.0
    %3392 = vmatprep.subr.mxu0 0.0
    %3393 = vmatpush1.xpose.msra.mxu0 0.0
    %3394 = vmatprep.subr.mxu0 0.0
    %3395 = vmatpush1.xpose.msra.mxu0 0.0
    %3396 = vmatprep.subr.mxu0 0.0
    %3397 = vmatpush1.xpose.msra.mxu0 0.0
    %3398 = vmatprep.subr.mxu0 0.0
    %3399 = vmatpush1.xpose.msra.mxu0 0.0
    %3400 = vmatprep.subr.mxu0 0.0
    %3401 = vmatpush1.xpose.msra.mxu0 0.0
    %3402 = vmatprep.subr.mxu0 0.0
    %3403 = vmatpush1.xpose.msra.mxu0 0.0
    %3404 = vmatprep.subr.mxu0 0.0
    %3405 = vmatpush1.xpose.msra.mxu0 0.0
    %3406 = vmatprep.subr.mxu0 0.0
    %3407 = vmatpush1.xpose.msra.mxu0 0.0
    %3408 = vmatprep.subr.mxu0 0.0
    %3409 = vmatpush1.xpose.msra.mxu0 0.0
    %3410 = vmatprep.subr.mxu0 0.0
    %3411 = vmatpush1.xpose.msra.mxu0 0.0
    %3412 = vmatprep.subr.mxu0 0.0
    %3413 = vmatpush1.xpose.msra.mxu0 0.0
    %3414 = vmatprep.subr.mxu0 0.0
    %3415 = vmatpush1.xpose.msra.mxu0 0.0
    %3416 = vmatprep.subr.mxu0 0.0
    %3417 = vmatpush1.xpose.msra.mxu0 0.0
    %3418 = vmatprep.subr.mxu0 0.0
    %3419 = vmatpush1.xpose.msra.mxu0 0.0
    %3420 = vmatprep.subr.mxu0 0.0
    %3421 = vmatpush1.xpose.msra.mxu0 0.0
    %3422 = vmatprep.subr.mxu0 0.0
    %3423 = vmatpush1.xpose.msra.mxu0 0.0
    %3424 = vmatprep.subr.mxu0 0.0
    %3425 = vmatpush1.xpose.msra.mxu0 0.0
    %3426 = vmatprep.subr.mxu0 0.0
    %3427 = vmatpush1.xpose.msra.mxu0 0.0
    %3428 = vmatprep.subr.mxu0 0.0
    %3429 = vmatpush1.xpose.msra.mxu0 0.0
    %3430 = vmatprep.subr.mxu0 0.0
    %3431 = vmatpush1.xpose.msra.mxu0 0.0
    %3432 = vmatprep.subr.mxu0 0.0
    %3433 = vmatpush1.xpose.msra.mxu0 0.0
    %3434 = vmatprep.subr.mxu0 0.0
    %3435 = vmatpush1.xpose.msra.mxu0 0.0
    %3436 = vmatprep.subr.mxu0 0.0
    %3437 = vmatpush1.xpose.msra.mxu0 0.0
    %3438 = vmatprep.mubr.f32.mxu0 0.0
    %3439 = vmatmul.mubr.f32.gmra.mrb[0].mxu0 %v3370
    %v3440 = vpop.f32.mrb[0].mxu0
    %v3441 = vadd.f32 0.0, %v3440
    %v3442 = vpop.f32.mrb[0].mxu0
    %3443 = vdwg.mxu0
    %v3444 = vmul.f32 %v3441, 0.35355338
    %v3445 = vsel %vm157, %v3444, -inf
    %3446 = vmax.xlane.f32.xlu0 %v3445
    %v3447 = vpop.xlane.xlu0 %3446
    %v3448 = vsub.f32 %v3444, %v3447
    %v3449 = vmul.f32 %v3448, 1.442695
    %v3450 = vpow.pop %v3449
    %v3451 = vsel %vm157, %v3450, 0.0
    %3452 = vadd.xlane.f32.xlu0 %v3451
    %v3453 = vpop.xlane.xlu0 %3452
    %v3454 = vrcp.pop %v3453
    %v3455 = vmul.f32 %v3450, %v3454
    %3456 = vrot.lane.b32.xlu0 %v2407, 64
    %v3457 = vpop.permute.xlu0 %3456
    %v3460 = vsel %vm157, %v3455, 0
    %3462 = vmatprep.subr.mxu0 0.0
    %3463 = vmatpush1.msra.mxu0 %v3457
    %3464 = vmatprep.subr.mxu0 0.0
    %3465 = vmatpush1.msra.mxu0 0.0
    %3466 = vmatprep.subr.mxu0 0.0
    %3467 = vmatpush1.msra.mxu0 0.0
    %3468 = vmatprep.subr.mxu0 0.0
    %3469 = vmatpush1.msra.mxu0 0.0
    %3470 = vmatprep.subr.mxu0 0.0
    %3471 = vmatpush1.msra.mxu0 0.0
    %3472 = vmatprep.subr.mxu0 0.0
    %3473 = vmatpush1.msra.mxu0 0.0
    %3474 = vmatprep.subr.mxu0 0.0
    %3475 = vmatpush1.msra.mxu0 0.0
    %3476 = vmatprep.subr.mxu0 0.0
    %3477 = vmatpush1.msra.mxu0 0.0
    %3478 = vmatprep.subr.mxu0 0.0
    %3479 = vmatpush1.msra.mxu0 0.0
    %3480 = vmatprep.subr.mxu0 0.0
    %3481 = vmatpush1.msra.mxu0 0.0
    %3482 = vmatprep.subr.mxu0 0.0
    %3483 = vmatpush1.msra.mxu0 0.0
    %3484 = vmatprep.subr.mxu0 0.0
    %3485 = vmatpush1.msra.mxu0 0.0
    %3486 = vmatprep.subr.mxu0 0.0
    %3487 = vmatpush1.msra.mxu0 0.0
    %3488 = vmatprep.subr.mxu0 0.0
    %3489 = vmatpush1.msra.mxu0 0.0
    %3490 = vmatprep.subr.mxu0 0.0
    %3491 = vmatpush1.msra.mxu0 0.0
    %3492 = vmatprep.subr.mxu0 0.0
    %3493 = vmatpush1.msra.mxu0 0.0
    %3494 = vmatprep.subr.mxu0 0.0
    %3495 = vmatpush1.msra.mxu0 0.0
    %3496 = vmatprep.subr.mxu0 0.0
    %3497 = vmatpush1.msra.mxu0 0.0
    %3498 = vmatprep.subr.mxu0 0.0
    %3499 = vmatpush1.msra.mxu0 0.0
    %3500 = vmatprep.subr.mxu0 0.0
    %3501 = vmatpush1.msra.mxu0 0.0
    %3502 = vmatprep.subr.mxu0 0.0
    %3503 = vmatpush1.msra.mxu0 0.0
    %3504 = vmatprep.subr.mxu0 0.0
    %3505 = vmatpush1.msra.mxu0 0.0
    %3506 = vmatprep.subr.mxu0 0.0
    %3507 = vmatpush1.msra.mxu0 0.0
    %3508 = vmatprep.subr.mxu0 0.0
    %3509 = vmatpush1.msra.mxu0 0.0
    %3510 = vmatprep.subr.mxu0 0.0
    %3511 = vmatpush1.msra.mxu0 0.0
    %3512 = vmatprep.subr.mxu0 0.0
    %3513 = vmatpush1.msra.mxu0 0.0
    %3514 = vmatprep.subr.mxu0 0.0
    %3515 = vmatpush1.msra.mxu0 0.0
    %3516 = vmatprep.subr.mxu0 0.0
    %3517 = vmatpush1.msra.mxu0 0.0
    %3518 = vmatprep.subr.mxu0 0.0
    %3519 = vmatpush1.msra.mxu0 0.0
    %3520 = vmatprep.subr.mxu0 0.0
    %3521 = vmatpush1.msra.mxu0 0.0
    %3522 = vmatprep.subr.mxu0 0.0
    %3523 = vmatpush1.msra.mxu0 0.0
    %3524 = vmatprep.subr.mxu0 0.0
    %3525 = vmatpush1.msra.mxu0 0.0
    %3526 = vmatprep.mubr.f32.mxu0 0.0
    %3527 = vmatmul.mubr.f32.gmra.mrb[0].mxu0 %v3460
    %v3528 = vpop.f32.mrb[0].mxu0
    %v3529 = vadd.f32 0.0, %v3528
    %v3530 = vpop.f32.mrb[0].mxu0
    %3531 = vdwg.mxu0
    %3532 = vrot.lane.b32.xlu0 %v2407, 120
    %v3533 = vpop.permute.xlu0 %3532
    %3534 = vrot.lane.b32.xlu0 %v2407, 88
    %v3535 = vpop.permute.xlu0 %3534
    %v3536 = vsel %vm157, %v3533, 0
    %v3538 = vsel %vm157, %v3535, 0
    %3540 = vmatprep.subr.mxu0 0.0
    %3541 = vmatpush1.xpose.msra.mxu0 %v3538
    %3542 = vmatprep.subr.mxu0 0.0
    %3543 = vmatpush1.xpose.msra.mxu0 0.0
    %3544 = vmatprep.subr.mxu0 0.0
    %3545 = vmatpush1.xpose.msra.mxu0 0.0
    %3546 = vmatprep.subr.mxu0 0.0
    %3547 = vmatpush1.xpose.msra.mxu0 0.0
    %3548 = vmatprep.subr.mxu0 0.0
    %3549 = vmatpush1.xpose.msra.mxu0 0.0
    %3550 = vmatprep.subr.mxu0 0.0
    %3551 = vmatpush1.xpose.msra.mxu0 0.0
    %3552 = vmatprep.subr.mxu0 0.0
    %3553 = vmatpush1.xpose.msra.mxu0 0.0
    %3554 = vmatprep.subr.mxu0 0.0
    %3555 = vmatpush1.xpose.msra.mxu0 0.0
    %3556 = vmatprep.subr.mxu0 0.0
    %3557 = vmatpush1.xpose.msra.mxu0 0.0
    %3558 = vmatprep.subr.mxu0 0.0
    %3559 = vmatpush1.xpose.msra.mxu0 0.0
    %3560 = vmatprep.subr.mxu0 0.0
    %3561 = vmatpush1.xpose.msra.mxu0 0.0
    %3562 = vmatprep.subr.mxu0 0.0
    %3563 = vmatpush1.xpose.msra.mxu0 0.0
    %3564 = vmatprep.subr.mxu0 0.0
    %3565 = vmatpush1.xpose.msra.mxu0 0.0
    %3566 = vmatprep.subr.mxu0 0.0
    %3567 = vmatpush1.xpose.msra.mxu0 0.0
    %3568 = vmatprep.subr.mxu0 0.0
    %3569 = vmatpush1.xpose.msra.mxu0 0.0
    %3570 = vmatprep.subr.mxu0 0.0
    %3571 = vmatpush1.xpose.msra.mxu0 0.0
    %3572 = vmatprep.subr.mxu0 0.0
    %3573 = vmatpush1.xpose.msra.mxu0 0.0
    %3574 = vmatprep.subr.mxu0 0.0
    %3575 = vmatpush1.xpose.msra.mxu0 0.0
    %3576 = vmatprep.subr.mxu0 0.0
    %3577 = vmatpush1.xpose.msra.mxu0 0.0
    %3578 = vmatprep.subr.mxu0 0.0
    %3579 = vmatpush1.xpose.msra.mxu0 0.0
    %3580 = vmatprep.subr.mxu0 0.0
    %3581 = vmatpush1.xpose.msra.mxu0 0.0
    %3582 = vmatprep.subr.mxu0 0.0
    %3583 = vmatpush1.xpose.msra.mxu0 0.0
    %3584 = vmatprep.subr.mxu0 0.0
    %3585 = vmatpush1.xpose.msra.mxu0 0.0
    %3586 = vmatprep.subr.mxu0 0.0
    %3587 = vmatpush1.xpose.msra.mxu0 0.0
    %3588 = vmatprep.subr.mxu0 0.0
    %3589 = vmatpush1.xpose.msra.mxu0 0.0
    %3590 = vmatprep.subr.mxu0 0.0
    %3591 = vmatpush1.xpose.msra.mxu0 0.0
    %3592 = vmatprep.subr.mxu0 0.0
    %3593 = vmatpush1.xpose.msra.mxu0 0.0
    %3594 = vmatprep.subr.mxu0 0.0
    %3595 = vmatpush1.xpose.msra.mxu0 0.0
    %3596 = vmatprep.subr.mxu0 0.0
    %3597 = vmatpush1.xpose.msra.mxu0 0.0
    %3598 = vmatprep.subr.mxu0 0.0
    %3599 = vmatpush1.xpose.msra.mxu0 0.0
    %3600 = vmatprep.subr.mxu0 0.0
    %3601 = vmatpush1.xpose.msra.mxu0 0.0
    %3602 = vmatprep.subr.mxu0 0.0
    %3603 = vmatpush1.xpose.msra.mxu0 0.0
    %3604 = vmatprep.mubr.f32.mxu0 0.0
    %3605 = vmatmul.mubr.f32.gmra.mrb[0].mxu0 %v3536
    %v3606 = vpop.f32.mrb[0].mxu0
    %v3607 = vadd.f32 0.0, %v3606
    %v3608 = vpop.f32.mrb[0].mxu0
    %3609 = vdwg.mxu0
    %v3610 = vmul.f32 %v3607, 0.35355338
    %v3611 = vsel %vm157, %v3610, -inf
    %3612 = vmax.xlane.f32.xlu0 %v3611
    %v3613 = vpop.xlane.xlu0 %3612
    %v3614 = vsub.f32 %v3610, %v3613
    %v3615 = vmul.f32 %v3614, 1.442695
    %v3616 = vpow.pop %v3615
    %v3617 = vsel %vm157, %v3616, 0.0
    %3618 = vadd.xlane.f32.xlu0 %v3617
    %v3619 = vpop.xlane.xlu0 %3618
    %v3620 = vrcp.pop %v3619
    %v3621 = vmul.f32 %v3616, %v3620
    %3622 = vrot.lane.b32.xlu0 %v2407, 56
    %v3623 = vpop.permute.xlu0 %3622
    %v3626 = vsel %vm157, %v3621, 0
    %3628 = vmatprep.subr.mxu0 0.0
    %3629 = vmatpush1.msra.mxu0 %v3623
    %3630 = vmatprep.subr.mxu0 0.0
    %3631 = vmatpush1.msra.mxu0 0.0
    %3632 = vmatprep.subr.mxu0 0.0
    %3633 = vmatpush1.msra.mxu0 0.0
    %3634 = vmatprep.subr.mxu0 0.0
    %3635 = vmatpush1.msra.mxu0 0.0
    %3636 = vmatprep.subr.mxu0 0.0
    %3637 = vmatpush1.msra.mxu0 0.0
    %3638 = vmatprep.subr.mxu0 0.0
    %3639 = vmatpush1.msra.mxu0 0.0
    %3640 = vmatprep.subr.mxu0 0.0
    %3641 = vmatpush1.msra.mxu0 0.0
    %3642 = vmatprep.subr.mxu0 0.0
    %3643 = vmatpush1.msra.mxu0 0.0
    %3644 = vmatprep.subr.mxu0 0.0
    %3645 = vmatpush1.msra.mxu0 0.0
    %3646 = vmatprep.subr.mxu0 0.0
    %3647 = vmatpush1.msra.mxu0 0.0
    %3648 = vmatprep.subr.mxu0 0.0
    %3649 = vmatpush1.msra.mxu0 0.0
    %3650 = vmatprep.subr.mxu0 0.0
    %3651 = vmatpush1.msra.mxu0 0.0
    %3652 = vmatprep.subr.mxu0 0.0
    %3653 = vmatpush1.msra.mxu0 0.0
    %3654 = vmatprep.subr.mxu0 0.0
    %3655 = vmatpush1.msra.mxu0 0.0
    %3656 = vmatprep.subr.mxu0 0.0
    %3657 = vmatpush1.msra.mxu0 0.0
    %3658 = vmatprep.subr.mxu0 0.0
    %3659 = vmatpush1.msra.mxu0 0.0
    %3660 = vmatprep.subr.mxu0 0.0
    %3661 = vmatpush1.msra.mxu0 0.0
    %3662 = vmatprep.subr.mxu0 0.0
    %3663 = vmatpush1.msra.mxu0 0.0
    %3664 = vmatprep.subr.mxu0 0.0
    %3665 = vmatpush1.msra.mxu0 0.0
    %3666 = vmatprep.subr.mxu0 0.0
    %3667 = vmatpush1.msra.mxu0 0.0
    %3668 = vmatprep.subr.mxu0 0.0
    %3669 = vmatpush1.msra.mxu0 0.0
    %3670 = vmatprep.subr.mxu0 0.0
    %3671 = vmatpush1.msra.mxu0 0.0
    %3672 = vmatprep.subr.mxu0 0.0
    %3673 = vmatpush1.msra.mxu0 0.0
    %3674 = vmatprep.subr.mxu0 0.0
    %3675 = vmatpush1.msra.mxu0 0.0
    %3676 = vmatprep.subr.mxu0 0.0
    %3677 = vmatpush1.msra.mxu0 0.0
    %3678 = vmatprep.subr.mxu0 0.0
    %3679 = vmatpush1.msra.mxu0 0.0
    %3680 = vmatprep.subr.mxu0 0.0
    %3681 = vmatpush1.msra.mxu0 0.0
    %3682 = vmatprep.subr.mxu0 0.0
    %3683 = vmatpush1.msra.mxu0 0.0
    %3684 = vmatprep.subr.mxu0 0.0
    %3685 = vmatpush1.msra.mxu0 0.0
    %3686 = vmatprep.subr.mxu0 0.0
    %3687 = vmatpush1.msra.mxu0 0.0
    %3688 = vmatprep.subr.mxu0 0.0
    %3689 = vmatpush1.msra.mxu0 0.0
    %3690 = vmatprep.subr.mxu0 0.0
    %3691 = vmatpush1.msra.mxu0 0.0
    %3692 = vmatprep.mubr.f32.mxu0 0.0
    %3693 = vmatmul.mubr.f32.gmra.mrb[0].mxu0 %v3626
    %v3694 = vpop.f32.mrb[0].mxu0
    %v3695 = vadd.f32 0.0, %v3694
    %v3696 = vpop.f32.mrb[0].mxu0
    %3697 = vdwg.mxu0
    %v3699 = vsel %vm157, %v3695, 0
    %3701 = vmatprep.subr.mxu0 0.0
    %3702 = vmatpush1.msra.mxu0 %v43
    %3703 = vmatprep.subr.mxu0 0.0
    %3704 = vmatpush1.msra.mxu0 0.0
    %3705 = vmatprep.subr.mxu0 0.0
    %3706 = vmatpush1.msra.mxu0 0.0
    %3707 = vmatprep.subr.mxu0 0.0
    %3708 = vmatpush1.msra.mxu0 0.0
    %3709 = vmatprep.subr.mxu0 0.0
    %3710 = vmatpush1.msra.mxu0 0.0
    %3711 = vmatprep.subr.mxu0 0.0
    %3712 = vmatpush1.msra.mxu0 0.0
    %3713 = vmatprep.subr.mxu0 0.0
    %3714 = vmatpush1.msra.mxu0 0.0
    %3715 = vmatprep.subr.mxu0 0.0
    %3716 = vmatpush1.msra.mxu0 0.0
    %3717 = vmatprep.subr.mxu0 0.0
    %3718 = vmatpush1.msra.mxu0 0.0
    %3719 = vmatprep.subr.mxu0 0.0
    %3720 = vmatpush1.msra.mxu0 0.0
    %3721 = vmatprep.subr.mxu0 0.0
    %3722 = vmatpush1.msra.mxu0 0.0
    %3723 = vmatprep.subr.mxu0 0.0
    %3724 = vmatpush1.msra.mxu0 0.0
    %3725 = vmatprep.subr.mxu0 0.0
    %3726 = vmatpush1.msra.mxu0 0.0
    %3727 = vmatprep.subr.mxu0 0.0
    %3728 = vmatpush1.msra.mxu0 0.0
    %3729 = vmatprep.subr.mxu0 0.0
    %3730 = vmatpush1.msra.mxu0 0.0
    %3731 = vmatprep.subr.mxu0 0.0
    %3732 = vmatpush1.msra.mxu0 0.0
    %3733 = vmatprep.subr.mxu0 0.0
    %3734 = vmatpush1.msra.mxu0 0.0
    %3735 = vmatprep.subr.mxu0 0.0
    %3736 = vmatpush1.msra.mxu0 0.0
    %3737 = vmatprep.subr.mxu0 0.0
    %3738 = vmatpush1.msra.mxu0 0.0
    %3739 = vmatprep.subr.mxu0 0.0
    %3740 = vmatpush1.msra.mxu0 0.0
    %3741 = vmatprep.subr.mxu0 0.0
    %3742 = vmatpush1.msra.mxu0 0.0
    %3743 = vmatprep.subr.mxu0 0.0
    %3744 = vmatpush1.msra.mxu0 0.0
    %3745 = vmatprep.subr.mxu0 0.0
    %3746 = vmatpush1.msra.mxu0 0.0
    %3747 = vmatprep.subr.mxu0 0.0
    %3748 = vmatpush1.msra.mxu0 0.0
    %3749 = vmatprep.subr.mxu0 0.0
    %3750 = vmatpush1.msra.mxu0 0.0
    %3751 = vmatprep.subr.mxu0 0.0
    %3752 = vmatpush1.msra.mxu0 0.0
    %3753 = vmatprep.subr.mxu0 0.0
    %3754 = vmatpush1.msra.mxu0 0.0
    %3755 = vmatprep.subr.mxu0 0.0
    %3756 = vmatpush1.msra.mxu0 0.0
    %3757 = vmatprep.subr.mxu0 0.0
    %3758 = vmatpush1.msra.mxu0 0.0
    %3759 = vmatprep.subr.mxu0 0.0
    %3760 = vmatpush1.msra.mxu0 0.0
    %3761 = vmatprep.subr.mxu0 0.0
    %3762 = vmatpush1.msra.mxu0 0.0
    %3763 = vmatprep.subr.mxu0 0.0
    %3764 = vmatpush1.msra.mxu0 0.0
    %3765 = vmatprep.mubr.f32.mxu0 0.0
    %3766 = vmatmul.mubr.f32.gmra.mrb[0].mxu0 %v3699
    %v3767 = vpop.f32.mrb[0].mxu0
    %v3768 = vadd.f32 0.0, %v3767
    %v3769 = vpop.f32.mrb[0].mxu0
    %3770 = vdwg.mxu0
    %v3772 = vsel %vm157, %v3529, 0
    %3774 = vmatprep.subr.mxu0 0.0
    %3775 = vmatpush1.msra.mxu0 %v42
    %3776 = vmatprep.subr.mxu0 0.0
    %3777 = vmatpush1.msra.mxu0 0.0
    %3778 = vmatprep.subr.mxu0 0.0
    %3779 = vmatpush1.msra.mxu0 0.0
    %3780 = vmatprep.subr.mxu0 0.0
    %3781 = vmatpush1.msra.mxu0 0.0
    %3782 = vmatprep.subr.mxu0 0.0
    %3783 = vmatpush1.msra.mxu0 0.0
    %3784 = vmatprep.subr.mxu0 0.0
    %3785 = vmatpush1.msra.mxu0 0.0
    %3786 = vmatprep.subr.mxu0 0.0
    %3787 = vmatpush1.msra.mxu0 0.0
    %3788 = vmatprep.subr.mxu0 0.0
    %3789 = vmatpush1.msra.mxu0 0.0
    %3790 = vmatprep.subr.mxu0 0.0
    %3791 = vmatpush1.msra.mxu0 0.0
    %3792 = vmatprep.subr.mxu0 0.0
    %3793 = vmatpush1.msra.mxu0 0.0
    %3794 = vmatprep.subr.mxu0 0.0
    %3795 = vmatpush1.msra.mxu0 0.0
    %3796 = vmatprep.subr.mxu0 0.0
    %3797 = vmatpush1.msra.mxu0 0.0
    %3798 = vmatprep.subr.mxu0 0.0
    %3799 = vmatpush1.msra.mxu0 0.0
    %3800 = vmatprep.subr.mxu0 0.0
    %3801 = vmatpush1.msra.mxu0 0.0
    %3802 = vmatprep.subr.mxu0 0.0
    %3803 = vmatpush1.msra.mxu0 0.0
    %3804 = vmatprep.subr.mxu0 0.0
    %3805 = vmatpush1.msra.mxu0 0.0
    %3806 = vmatprep.subr.mxu0 0.0
    %3807 = vmatpush1.msra.mxu0 0.0
    %3808 = vmatprep.subr.mxu0 0.0
    %3809 = vmatpush1.msra.mxu0 0.0
    %3810 = vmatprep.subr.mxu0 0.0
    %3811 = vmatpush1.msra.mxu0 0.0
    %3812 = vmatprep.subr.mxu0 0.0
    %3813 = vmatpush1.msra.mxu0 0.0
    %3814 = vmatprep.subr.mxu0 0.0
    %3815 = vmatpush1.msra.mxu0 0.0
    %3816 = vmatprep.subr.mxu0 0.0
    %3817 = vmatpush1.msra.mxu0 0.0
    %3818 = vmatprep.subr.mxu0 0.0
    %3819 = vmatpush1.msra.mxu0 0.0
    %3820 = vmatprep.subr.mxu0 0.0
    %3821 = vmatpush1.msra.mxu0 0.0
    %3822 = vmatprep.subr.mxu0 0.0
    %3823 = vmatpush1.msra.mxu0 0.0
    %3824 = vmatprep.subr.mxu0 0.0
    %3825 = vmatpush1.msra.mxu0 0.0
    %3826 = vmatprep.subr.mxu0 0.0
    %3827 = vmatpush1.msra.mxu0 0.0
    %3828 = vmatprep.subr.mxu0 0.0
    %3829 = vmatpush1.msra.mxu0 0.0
    %3830 = vmatprep.subr.mxu0 0.0
    %3831 = vmatpush1.msra.mxu0 0.0
    %3832 = vmatprep.subr.mxu0 0.0
    %3833 = vmatpush1.msra.mxu0 0.0
    %3834 = vmatprep.subr.mxu0 0.0
    %3835 = vmatpush1.msra.mxu0 0.0
    %3836 = vmatprep.subr.mxu0 0.0
    %3837 = vmatpush1.msra.mxu0 0.0
    %3838 = vmatprep.mubr.f32.mxu0 0.0
    %3839 = vmatmul.mubr.f32.gmra.mrb[0].mxu0 %v3772
    %v3840 = vpop.f32.mrb[0].mxu0
    %v3841 = vadd.f32 %v3768, %v3840
    %v3842 = vpop.f32.mrb[0].mxu0
    %3843 = vdwg.mxu0
    %3844 = vrot.lane.b32.xlu0 %v2407, 112
    %v3845 = vpop.permute.xlu0 %3844
    %3846 = vrot.lane.b32.xlu0 %v2407, 80
    %v3847 = vpop.permute.xlu0 %3846
    %v3848 = vsel %vm157, %v3845, 0
    %v3850 = vsel %vm157, %v3847, 0
    %3852 = vmatprep.subr.mxu0 0.0
    %3853 = vmatpush1.xpose.msra.mxu0 %v3850
    %3854 = vmatprep.subr.mxu0 0.0
    %3855 = vmatpush1.xpose.msra.mxu0 0.0
    %3856 = vmatprep.subr.mxu0 0.0
    %3857 = vmatpush1.xpose.msra.mxu0 0.0
    %3858 = vmatprep.subr.mxu0 0.0
    %3859 = vmatpush1.xpose.msra.mxu0 0.0
    %3860 = vmatprep.subr.mxu0 0.0
    %3861 = vmatpush1.xpose.msra.mxu0 0.0
    %3862 = vmatprep.subr.mxu0 0.0
    %3863 = vmatpush1.xpose.msra.mxu0 0.0
    %3864 = vmatprep.subr.mxu0 0.0
    %3865 = vmatpush1.xpose.msra.mxu0 0.0
    %3866 = vmatprep.subr.mxu0 0.0
    %3867 = vmatpush1.xpose.msra.mxu0 0.0
    %3868 = vmatprep.subr.mxu0 0.0
    %3869 = vmatpush1.xpose.msra.mxu0 0.0
    %3870 = vmatprep.subr.mxu0 0.0
    %3871 = vmatpush1.xpose.msra.mxu0 0.0
    %3872 = vmatprep.subr.mxu0 0.0
    %3873 = vmatpush1.xpose.msra.mxu0 0.0
    %3874 = vmatprep.subr.mxu0 0.0
    %3875 = vmatpush1.xpose.msra.mxu0 0.0
    %3876 = vmatprep.subr.mxu0 0.0
    %3877 = vmatpush1.xpose.msra.mxu0 0.0
    %3878 = vmatprep.subr.mxu0 0.0
    %3879 = vmatpush1.xpose.msra.mxu0 0.0
    %3880 = vmatprep.subr.mxu0 0.0
    %3881 = vmatpush1.xpose.msra.mxu0 0.0
    %3882 = vmatprep.subr.mxu0 0.0
    %3883 = vmatpush1.xpose.msra.mxu0 0.0
    %3884 = vmatprep.subr.mxu0 0.0
    %3885 = vmatpush1.xpose.msra.mxu0 0.0
    %3886 = vmatprep.subr.mxu0 0.0
    %3887 = vmatpush1.xpose.msra.mxu0 0.0
    %3888 = vmatprep.subr.mxu0 0.0
    %3889 = vmatpush1.xpose.msra.mxu0 0.0
    %3890 = vmatprep.subr.mxu0 0.0
    %3891 = vmatpush1.xpose.msra.mxu0 0.0
    %3892 = vmatprep.subr.mxu0 0.0
    %3893 = vmatpush1.xpose.msra.mxu0 0.0
    %3894 = vmatprep.subr.mxu0 0.0
    %3895 = vmatpush1.xpose.msra.mxu0 0.0
    %3896 = vmatprep.subr.mxu0 0.0
    %3897 = vmatpush1.xpose.msra.mxu0 0.0
    %3898 = vmatprep.subr.mxu0 0.0
    %3899 = vmatpush1.xpose.msra.mxu0 0.0
    %3900 = vmatprep.subr.mxu0 0.0
    %3901 = vmatpush1.xpose.msra.mxu0 0.0
    %3902 = vmatprep.subr.mxu0 0.0
    %3903 = vmatpush1.xpose.msra.mxu0 0.0
    %3904 = vmatprep.subr.mxu0 0.0
    %3905 = vmatpush1.xpose.msra.mxu0 0.0
    %3906 = vmatprep.subr.mxu0 0.0
    %3907 = vmatpush1.xpose.msra.mxu0 0.0
    %3908 = vmatprep.subr.mxu0 0.0
    %3909 = vmatpush1.xpose.msra.mxu0 0.0
    %3910 = vmatprep.subr.mxu0 0.0
    %3911 = vmatpush1.xpose.msra.mxu0 0.0
    %3912 = vmatprep.subr.mxu0 0.0
    %3913 = vmatpush1.xpose.msra.mxu0 0.0
    %3914 = vmatprep.subr.mxu0 0.0
    %3915 = vmatpush1.xpose.msra.mxu0 0.0
    %3916 = vmatprep.mubr.f32.mxu0 0.0
    %3917 = vmatmul.mubr.f32.gmra.mrb[0].mxu0 %v3848
    %v3918 = vpop.f32.mrb[0].mxu0
    %v3919 = vadd.f32 0.0, %v3918
    %v3920 = vpop.f32.mrb[0].mxu0
    %3921 = vdwg.mxu0
    %v3922 = vmul.f32 %v3919, 0.35355338
    %v3923 = vsel %vm157, %v3922, -inf
    %3924 = vmax.xlane.f32.xlu0 %v3923
    %v3925 = vpop.xlane.xlu0 %3924
    %v3926 = vsub.f32 %v3922, %v3925
    %v3927 = vmul.f32 %v3926, 1.442695
    %v3928 = vpow.pop %v3927
    %v3929 = vsel %vm157, %v3928, 0.0
    %3930 = vadd.xlane.f32.xlu0 %v3929
    %v3931 = vpop.xlane.xlu0 %3930
    %v3932 = vrcp.pop %v3931
    %v3933 = vmul.f32 %v3928, %v3932
    %3934 = vrot.lane.b32.xlu0 %v2407, 48
    %v3935 = vpop.permute.xlu0 %3934
    %v3938 = vsel %vm157, %v3933, 0
    %3940 = vmatprep.subr.mxu0 0.0
    %3941 = vmatpush1.msra.mxu0 %v3935
    %3942 = vmatprep.subr.mxu0 0.0
    %3943 = vmatpush1.msra.mxu0 0.0
    %3944 = vmatprep.subr.mxu0 0.0
    %3945 = vmatpush1.msra.mxu0 0.0
    %3946 = vmatprep.subr.mxu0 0.0
    %3947 = vmatpush1.msra.mxu0 0.0
    %3948 = vmatprep.subr.mxu0 0.0
    %3949 = vmatpush1.msra.mxu0 0.0
    %3950 = vmatprep.subr.mxu0 0.0
    %3951 = vmatpush1.msra.mxu0 0.0
    %3952 = vmatprep.subr.mxu0 0.0
    %3953 = vmatpush1.msra.mxu0 0.0
    %3954 = vmatprep.subr.mxu0 0.0
    %3955 = vmatpush1.msra.mxu0 0.0
    %3956 = vmatprep.subr.mxu0 0.0
    %3957 = vmatpush1.msra.mxu0 0.0
    %3958 = vmatprep.subr.mxu0 0.0
    %3959 = vmatpush1.msra.mxu0 0.0
    %3960 = vmatprep.subr.mxu0 0.0
    %3961 = vmatpush1.msra.mxu0 0.0
    %3962 = vmatprep.subr.mxu0 0.0
    %3963 = vmatpush1.msra.mxu0 0.0
    %3964 = vmatprep.subr.mxu0 0.0
    %3965 = vmatpush1.msra.mxu0 0.0
    %3966 = vmatprep.subr.mxu0 0.0
    %3967 = vmatpush1.msra.mxu0 0.0
    %3968 = vmatprep.subr.mxu0 0.0
    %3969 = vmatpush1.msra.mxu0 0.0
    %3970 = vmatprep.subr.mxu0 0.0
    %3971 = vmatpush1.msra.mxu0 0.0
    %3972 = vmatprep.subr.mxu0 0.0
    %3973 = vmatpush1.msra.mxu0 0.0
    %3974 = vmatprep.subr.mxu0 0.0
    %3975 = vmatpush1.msra.mxu0 0.0
    %3976 = vmatprep.subr.mxu0 0.0
    %3977 = vmatpush1.msra.mxu0 0.0
    %3978 = vmatprep.subr.mxu0 0.0
    %3979 = vmatpush1.msra.mxu0 0.0
    %3980 = vmatprep.subr.mxu0 0.0
    %3981 = vmatpush1.msra.mxu0 0.0
    %3982 = vmatprep.subr.mxu0 0.0
    %3983 = vmatpush1.msra.mxu0 0.0
    %3984 = vmatprep.subr.mxu0 0.0
    %3985 = vmatpush1.msra.mxu0 0.0
    %3986 = vmatprep.subr.mxu0 0.0
    %3987 = vmatpush1.msra.mxu0 0.0
    %3988 = vmatprep.subr.mxu0 0.0
    %3989 = vmatpush1.msra.mxu0 0.0
    %3990 = vmatprep.subr.mxu0 0.0
    %3991 = vmatpush1.msra.mxu0 0.0
    %3992 = vmatprep.subr.mxu0 0.0
    %3993 = vmatpush1.msra.mxu0 0.0
    %3994 = vmatprep.subr.mxu0 0.0
    %3995 = vmatpush1.msra.mxu0 0.0
    %3996 = vmatprep.subr.mxu0 0.0
    %3997 = vmatpush1.msra.mxu0 0.0
    %3998 = vmatprep.subr.mxu0 0.0
    %3999 = vmatpush1.msra.mxu0 0.0
    %4000 = vmatprep.subr.mxu0 0.0
    %4001 = vmatpush1.msra.mxu0 0.0
    %4002 = vmatprep.subr.mxu0 0.0
    %4003 = vmatpush1.msra.mxu0 0.0
    %4004 = vmatprep.mubr.f32.mxu0 0.0
    %4005 = vmatmul.mubr.f32.gmra.mrb[0].mxu0 %v3938
    %v4006 = vpop.f32.mrb[0].mxu0
    %v4007 = vadd.f32 0.0, %v4006
    %v4008 = vpop.f32.mrb[0].mxu0
    %4009 = vdwg.mxu0
    %v4011 = vsel %vm157, %v4007, 0
    %4013 = vmatprep.subr.mxu0 0.0
    %4014 = vmatpush1.msra.mxu0 %v44
    %4015 = vmatprep.subr.mxu0 0.0
    %4016 = vmatpush1.msra.mxu0 0.0
    %4017 = vmatprep.subr.mxu0 0.0
    %4018 = vmatpush1.msra.mxu0 0.0
    %4019 = vmatprep.subr.mxu0 0.0
    %4020 = vmatpush1.msra.mxu0 0.0
    %4021 = vmatprep.subr.mxu0 0.0
    %4022 = vmatpush1.msra.mxu0 0.0
    %4023 = vmatprep.subr.mxu0 0.0
    %4024 = vmatpush1.msra.mxu0 0.0
    %4025 = vmatprep.subr.mxu0 0.0
    %4026 = vmatpush1.msra.mxu0 0.0
    %4027 = vmatprep.subr.mxu0 0.0
    %4028 = vmatpush1.msra.mxu0 0.0
    %4029 = vmatprep.subr.mxu0 0.0
    %4030 = vmatpush1.msra.mxu0 0.0
    %4031 = vmatprep.subr.mxu0 0.0
    %4032 = vmatpush1.msra.mxu0 0.0
    %4033 = vmatprep.subr.mxu0 0.0
    %4034 = vmatpush1.msra.mxu0 0.0
    %4035 = vmatprep.subr.mxu0 0.0
    %4036 = vmatpush1.msra.mxu0 0.0
    %4037 = vmatprep.subr.mxu0 0.0
    %4038 = vmatpush1.msra.mxu0 0.0
    %4039 = vmatprep.subr.mxu0 0.0
    %4040 = vmatpush1.msra.mxu0 0.0
    %4041 = vmatprep.subr.mxu0 0.0
    %4042 = vmatpush1.msra.mxu0 0.0
    %4043 = vmatprep.subr.mxu0 0.0
    %4044 = vmatpush1.msra.mxu0 0.0
    %4045 = vmatprep.subr.mxu0 0.0
    %4046 = vmatpush1.msra.mxu0 0.0
    %4047 = vmatprep.subr.mxu0 0.0
    %4048 = vmatpush1.msra.mxu0 0.0
    %4049 = vmatprep.subr.mxu0 0.0
    %4050 = vmatpush1.msra.mxu0 0.0
    %4051 = vmatprep.subr.mxu0 0.0
    %4052 = vmatpush1.msra.mxu0 0.0
    %4053 = vmatprep.subr.mxu0 0.0
    %4054 = vmatpush1.msra.mxu0 0.0
    %4055 = vmatprep.subr.mxu0 0.0
    %4056 = vmatpush1.msra.mxu0 0.0
    %4057 = vmatprep.subr.mxu0 0.0
    %4058 = vmatpush1.msra.mxu0 0.0
    %4059 = vmatprep.subr.mxu0 0.0
    %4060 = vmatpush1.msra.mxu0 0.0
    %4061 = vmatprep.subr.mxu0 0.0
    %4062 = vmatpush1.msra.mxu0 0.0
    %4063 = vmatprep.subr.mxu0 0.0
    %4064 = vmatpush1.msra.mxu0 0.0
    %4065 = vmatprep.subr.mxu0 0.0
    %4066 = vmatpush1.msra.mxu0 0.0
    %4067 = vmatprep.subr.mxu0 0.0
    %4068 = vmatpush1.msra.mxu0 0.0
    %4069 = vmatprep.subr.mxu0 0.0
    %4070 = vmatpush1.msra.mxu0 0.0
    %4071 = vmatprep.subr.mxu0 0.0
    %4072 = vmatpush1.msra.mxu0 0.0
    %4073 = vmatprep.subr.mxu0 0.0
    %4074 = vmatpush1.msra.mxu0 0.0
    %4075 = vmatprep.subr.mxu0 0.0
    %4076 = vmatpush1.msra.mxu0 0.0
    %4077 = vmatprep.mubr.f32.mxu0 0.0
    %4078 = vmatmul.mubr.f32.gmra.mrb[0].mxu0 %v4011
    %v4079 = vpop.f32.mrb[0].mxu0
    %v4080 = vadd.f32 0.0, %v4079
    %v4081 = vpop.f32.mrb[0].mxu0
    %4082 = vdwg.mxu0
    %v4083 = vadd.f32 %v3841, %v4080
    %4084 = vrot.lane.b32.xlu0 %v2407, 104
    %v4085 = vpop.permute.xlu0 %4084
    %4086 = vrot.lane.b32.xlu0 %v2407, 72
    %v4087 = vpop.permute.xlu0 %4086
    %v4088 = vsel %vm157, %v4085, 0
    %v4090 = vsel %vm157, %v4087, 0
    %4092 = vmatprep.subr.mxu0 0.0
    %4093 = vmatpush1.xpose.msra.mxu0 %v4090
    %4094 = vmatprep.subr.mxu0 0.0
    %4095 = vmatpush1.xpose.msra.mxu0 0.0
    %4096 = vmatprep.subr.mxu0 0.0
    %4097 = vmatpush1.xpose.msra.mxu0 0.0
    %4098 = vmatprep.subr.mxu0 0.0
    %4099 = vmatpush1.xpose.msra.mxu0 0.0
    %4100 = vmatprep.subr.mxu0 0.0
    %4101 = vmatpush1.xpose.msra.mxu0 0.0
    %4102 = vmatprep.subr.mxu0 0.0
    %4103 = vmatpush1.xpose.msra.mxu0 0.0
    %4104 = vmatprep.subr.mxu0 0.0
    %4105 = vmatpush1.xpose.msra.mxu0 0.0
    %4106 = vmatprep.subr.mxu0 0.0
    %4107 = vmatpush1.xpose.msra.mxu0 0.0
    %4108 = vmatprep.subr.mxu0 0.0
    %4109 = vmatpush1.xpose.msra.mxu0 0.0
    %4110 = vmatprep.subr.mxu0 0.0
    %4111 = vmatpush1.xpose.msra.mxu0 0.0
    %4112 = vmatprep.subr.mxu0 0.0
    %4113 = vmatpush1.xpose.msra.mxu0 0.0
    %4114 = vmatprep.subr.mxu0 0.0
    %4115 = vmatpush1.xpose.msra.mxu0 0.0
    %4116 = vmatprep.subr.mxu0 0.0
    %4117 = vmatpush1.xpose.msra.mxu0 0.0
    %4118 = vmatprep.subr.mxu0 0.0
    %4119 = vmatpush1.xpose.msra.mxu0 0.0
    %4120 = vmatprep.subr.mxu0 0.0
    %4121 = vmatpush1.xpose.msra.mxu0 0.0
    %4122 = vmatprep.subr.mxu0 0.0
    %4123 = vmatpush1.xpose.msra.mxu0 0.0
    %4124 = vmatprep.subr.mxu0 0.0
    %4125 = vmatpush1.xpose.msra.mxu0 0.0
    %4126 = vmatprep.subr.mxu0 0.0
    %4127 = vmatpush1.xpose.msra.mxu0 0.0
    %4128 = vmatprep.subr.mxu0 0.0
    %4129 = vmatpush1.xpose.msra.mxu0 0.0
    %4130 = vmatprep.subr.mxu0 0.0
    %4131 = vmatpush1.xpose.msra.mxu0 0.0
    %4132 = vmatprep.subr.mxu0 0.0
    %4133 = vmatpush1.xpose.msra.mxu0 0.0
    %4134 = vmatprep.subr.mxu0 0.0
    %4135 = vmatpush1.xpose.msra.mxu0 0.0
    %4136 = vmatprep.subr.mxu0 0.0
    %4137 = vmatpush1.xpose.msra.mxu0 0.0
    %4138 = vmatprep.subr.mxu0 0.0
    %4139 = vmatpush1.xpose.msra.mxu0 0.0
    %4140 = vmatprep.subr.mxu0 0.0
    %4141 = vmatpush1.xpose.msra.mxu0 0.0
    %4142 = vmatprep.subr.mxu0 0.0
    %4143 = vmatpush1.xpose.msra.mxu0 0.0
    %4144 = vmatprep.subr.mxu0 0.0
    %4145 = vmatpush1.xpose.msra.mxu0 0.0
    %4146 = vmatprep.subr.mxu0 0.0
    %4147 = vmatpush1.xpose.msra.mxu0 0.0
    %4148 = vmatprep.subr.mxu0 0.0
    %4149 = vmatpush1.xpose.msra.mxu0 0.0
    %4150 = vmatprep.subr.mxu0 0.0
    %4151 = vmatpush1.xpose.msra.mxu0 0.0
    %4152 = vmatprep.subr.mxu0 0.0
    %4153 = vmatpush1.xpose.msra.mxu0 0.0
    %4154 = vmatprep.subr.mxu0 0.0
    %4155 = vmatpush1.xpose.msra.mxu0 0.0
    %4156 = vmatprep.mubr.f32.mxu0 0.0
    %4157 = vmatmul.mubr.f32.gmra.mrb[0].mxu0 %v4088
    %v4158 = vpop.f32.mrb[0].mxu0
    %v4159 = vadd.f32 0.0, %v4158
    %v4160 = vpop.f32.mrb[0].mxu0
    %4161 = vdwg.mxu0
    %v4162 = vmul.f32 %v4159, 0.35355338
    %v4163 = vsel %vm157, %v4162, -inf
    %4164 = vmax.xlane.f32.xlu0 %v4163
    %v4165 = vpop.xlane.xlu0 %4164
    %v4166 = vsub.f32 %v4162, %v4165
    %v4167 = vmul.f32 %v4166, 1.442695
    %v4168 = vpow.pop %v4167
    %v4169 = vsel %vm157, %v4168, 0.0
    %4170 = vadd.xlane.f32.xlu0 %v4169
    %v4171 = vpop.xlane.xlu0 %4170
    %v4172 = vrcp.pop %v4171
    %v4173 = vmul.f32 %v4168, %v4172
    %4174 = vrot.lane.b32.xlu0 %v2407, 40
    %v4175 = vpop.permute.xlu0 %4174
    %v4178 = vsel %vm157, %v4173, 0
    %4180 = vmatprep.subr.mxu0 0.0
    %4181 = vmatpush1.msra.mxu0 %v4175
    %4182 = vmatprep.subr.mxu0 0.0
    %4183 = vmatpush1.msra.mxu0 0.0
    %4184 = vmatprep.subr.mxu0 0.0
    %4185 = vmatpush1.msra.mxu0 0.0
    %4186 = vmatprep.subr.mxu0 0.0
    %4187 = vmatpush1.msra.mxu0 0.0
    %4188 = vmatprep.subr.mxu0 0.0
    %4189 = vmatpush1.msra.mxu0 0.0
    %4190 = vmatprep.subr.mxu0 0.0
    %4191 = vmatpush1.msra.mxu0 0.0
    %4192 = vmatprep.subr.mxu0 0.0
    %4193 = vmatpush1.msra.mxu0 0.0
    %4194 = vmatprep.subr.mxu0 0.0
    %4195 = vmatpush1.msra.mxu0 0.0
    %4196 = vmatprep.subr.mxu0 0.0
    %4197 = vmatpush1.msra.mxu0 0.0
    %4198 = vmatprep.subr.mxu0 0.0
    %4199 = vmatpush1.msra.mxu0 0.0
    %4200 = vmatprep.subr.mxu0 0.0
    %4201 = vmatpush1.msra.mxu0 0.0
    %4202 = vmatprep.subr.mxu0 0.0
    %4203 = vmatpush1.msra.mxu0 0.0
    %4204 = vmatprep.subr.mxu0 0.0
    %4205 = vmatpush1.msra.mxu0 0.0
    %4206 = vmatprep.subr.mxu0 0.0
    %4207 = vmatpush1.msra.mxu0 0.0
    %4208 = vmatprep.subr.mxu0 0.0
    %4209 = vmatpush1.msra.mxu0 0.0
    %4210 = vmatprep.subr.mxu0 0.0
    %4211 = vmatpush1.msra.mxu0 0.0
    %4212 = vmatprep.subr.mxu0 0.0
    %4213 = vmatpush1.msra.mxu0 0.0
    %4214 = vmatprep.subr.mxu0 0.0
    %4215 = vmatpush1.msra.mxu0 0.0
    %4216 = vmatprep.subr.mxu0 0.0
    %4217 = vmatpush1.msra.mxu0 0.0
    %4218 = vmatprep.subr.mxu0 0.0
    %4219 = vmatpush1.msra.mxu0 0.0
    %4220 = vmatprep.subr.mxu0 0.0
    %4221 = vmatpush1.msra.mxu0 0.0
    %4222 = vmatprep.subr.mxu0 0.0
    %4223 = vmatpush1.msra.mxu0 0.0
    %4224 = vmatprep.subr.mxu0 0.0
    %4225 = vmatpush1.msra.mxu0 0.0
    %4226 = vmatprep.subr.mxu0 0.0
    %4227 = vmatpush1.msra.mxu0 0.0
    %4228 = vmatprep.subr.mxu0 0.0
    %4229 = vmatpush1.msra.mxu0 0.0
    %4230 = vmatprep.subr.mxu0 0.0
    %4231 = vmatpush1.msra.mxu0 0.0
    %4232 = vmatprep.subr.mxu0 0.0
    %4233 = vmatpush1.msra.mxu0 0.0
    %4234 = vmatprep.subr.mxu0 0.0
    %4235 = vmatpush1.msra.mxu0 0.0
    %4236 = vmatprep.subr.mxu0 0.0
    %4237 = vmatpush1.msra.mxu0 0.0
    %4238 = vmatprep.subr.mxu0 0.0
    %4239 = vmatpush1.msra.mxu0 0.0
    %4240 = vmatprep.subr.mxu0 0.0
    %4241 = vmatpush1.msra.mxu0 0.0
    %4242 = vmatprep.subr.mxu0 0.0
    %4243 = vmatpush1.msra.mxu0 0.0
    %4244 = vmatprep.mubr.f32.mxu0 0.0
    %4245 = vmatmul.mubr.f32.gmra.mrb[0].mxu0 %v4178
    %v4246 = vpop.f32.mrb[0].mxu0
    %v4247 = vadd.f32 0.0, %v4246
    %v4248 = vpop.f32.mrb[0].mxu0
    %4249 = vdwg.mxu0
    %v4251 = vsel %vm157, %v4247, 0
    %4253 = vmatprep.subr.mxu0 0.0
    %4254 = vmatpush1.msra.mxu0 %v45
    %4255 = vmatprep.subr.mxu0 0.0
    %4256 = vmatpush1.msra.mxu0 0.0
    %4257 = vmatprep.subr.mxu0 0.0
    %4258 = vmatpush1.msra.mxu0 0.0
    %4259 = vmatprep.subr.mxu0 0.0
    %4260 = vmatpush1.msra.mxu0 0.0
    %4261 = vmatprep.subr.mxu0 0.0
    %4262 = vmatpush1.msra.mxu0 0.0
    %4263 = vmatprep.subr.mxu0 0.0
    %4264 = vmatpush1.msra.mxu0 0.0
    %4265 = vmatprep.subr.mxu0 0.0
    %4266 = vmatpush1.msra.mxu0 0.0
    %4267 = vmatprep.subr.mxu0 0.0
    %4268 = vmatpush1.msra.mxu0 0.0
    %4269 = vmatprep.subr.mxu0 0.0
    %4270 = vmatpush1.msra.mxu0 0.0
    %4271 = vmatprep.subr.mxu0 0.0
    %4272 = vmatpush1.msra.mxu0 0.0
    %4273 = vmatprep.subr.mxu0 0.0
    %4274 = vmatpush1.msra.mxu0 0.0
    %4275 = vmatprep.subr.mxu0 0.0
    %4276 = vmatpush1.msra.mxu0 0.0
    %4277 = vmatprep.subr.mxu0 0.0
    %4278 = vmatpush1.msra.mxu0 0.0
    %4279 = vmatprep.subr.mxu0 0.0
    %4280 = vmatpush1.msra.mxu0 0.0
    %4281 = vmatprep.subr.mxu0 0.0
    %4282 = vmatpush1.msra.mxu0 0.0
    %4283 = vmatprep.subr.mxu0 0.0
    %4284 = vmatpush1.msra.mxu0 0.0
    %4285 = vmatprep.subr.mxu0 0.0
    %4286 = vmatpush1.msra.mxu0 0.0
    %4287 = vmatprep.subr.mxu0 0.0
    %4288 = vmatpush1.msra.mxu0 0.0
    %4289 = vmatprep.subr.mxu0 0.0
    %4290 = vmatpush1.msra.mxu0 0.0
    %4291 = vmatprep.subr.mxu0 0.0
    %4292 = vmatpush1.msra.mxu0 0.0
    %4293 = vmatprep.subr.mxu0 0.0
    %4294 = vmatpush1.msra.mxu0 0.0
    %4295 = vmatprep.subr.mxu0 0.0
    %4296 = vmatpush1.msra.mxu0 0.0
    %4297 = vmatprep.subr.mxu0 0.0
    %4298 = vmatpush1.msra.mxu0 0.0
    %4299 = vmatprep.subr.mxu0 0.0
    %4300 = vmatpush1.msra.mxu0 0.0
    %4301 = vmatprep.subr.mxu0 0.0
    %4302 = vmatpush1.msra.mxu0 0.0
    %4303 = vmatprep.subr.mxu0 0.0
    %4304 = vmatpush1.msra.mxu0 0.0
    %4305 = vmatprep.subr.mxu0 0.0
    %4306 = vmatpush1.msra.mxu0 0.0
    %4307 = vmatprep.subr.mxu0 0.0
    %4308 = vmatpush1.msra.mxu0 0.0
    %4309 = vmatprep.subr.mxu0 0.0
    %4310 = vmatpush1.msra.mxu0 0.0
    %4311 = vmatprep.subr.mxu0 0.0
    %4312 = vmatpush1.msra.mxu0 0.0
    %4313 = vmatprep.subr.mxu0 0.0
    %4314 = vmatpush1.msra.mxu0 0.0
    %4315 = vmatprep.subr.mxu0 0.0
    %4316 = vmatpush1.msra.mxu0 0.0
    %4317 = vmatprep.mubr.f32.mxu0 0.0
    %4318 = vmatmul.mubr.f32.gmra.mrb[0].mxu0 %v4251
    %v4319 = vpop.f32.mrb[0].mxu0
    %v4320 = vadd.f32 0.0, %v4319
    %v4321 = vpop.f32.mrb[0].mxu0
    %4322 = vdwg.mxu0
    %v4323 = vadd.f32 %v4083, %v4320
    %v4324 = vadd.f32 %v3366, %v2072
    %v4325 = vadd.f32 %v4323, %v2072
    %v4326 = vadd.f32 %v2327, %v4324
    %v4327 = vadd.f32 %v2328, %v4325
    %v4328 = vsel %vm72, %v4326, 0.0
    %4329 = vadd.xlane.f32.xlu0 %v4328
    %v4330 = vpop.xlane.xlu0 %4329
    %v4331 = vsel %vm72, %v4327, 0.0
    %4332 = vadd.xlane.f32.xlu0 %v4331
    %v4333 = vpop.xlane.xlu0 %4332
    %v4334 = vmul.f32 %v4330, %v2083
    %v4335 = vmul.f32 %v4333, %v2083
    %v4336 = vsub.f32 %v4326, %v4334
    %v4337 = vsub.f32 %v4327, %v4335
    %v4338 = vmul.f32 %v4336, %v4336
    %v4339 = vmul.f32 %v4337, %v4337
    %v4340 = vsel %vm72, %v4338, 0.0
    %4341 = vadd.xlane.f32.xlu0 %v4340
    %v4342 = vpop.xlane.xlu0 %4341
    %v4343 = vsel %vm72, %v4339, 0.0
    %4344 = vadd.xlane.f32.xlu0 %v4343
    %v4345 = vpop.xlane.xlu0 %4344
    %v4346 = vmul.f32 %v4342, %v2083
    %v4347 = vmul.f32 %v4345, %v2083
    %v4348 = vadd.f32 %v4346, 1e-05
    %v4349 = vadd.f32 %v4347, 1e-05
    %v4350 = vrsqrt.pop %v4348
    %v4351 = vrsqrt.pop %v4349
    %v4352 = vmul.f32 %v4336, %v4350
    %v4353 = vmul.f32 %v4337, %v4351
    %v4354 = vmul.f32 %v4352, %v2107
    %v4355 = vmul.f32 %v4353, %v2107
    %v4356 = vadd.f32 %v4354, %v2113
    %v4357 = vadd.f32 %v4355, %v2113
    %v4359 = vsel %vm72, %v4356, 0
    %v4362 = vsel %vm72, %v4357, 0
    %4364 = vmatprep.subr.mxu0 0.0
    %4365 = vmatpush1.msra.mxu0 %v46
    %4366 = vmatprep.subr.mxu0 0.0
    %4367 = vmatpush1.msra.mxu0 %v47
    %4368 = vmatprep.subr.mxu0 0.0
    %4369 = vmatpush1.msra.mxu0 %v48
    %4370 = vmatprep.subr.mxu0 0.0
    %4371 = vmatpush1.msra.mxu0 %v49
    %4372 = vmatprep.subr.mxu0 0.0
    %4373 = vmatpush1.msra.mxu0 0.0
    %4374 = vmatprep.subr.mxu0 0.0
    %4375 = vmatpush1.msra.mxu0 0.0
    %4376 = vmatprep.subr.mxu0 0.0
    %4377 = vmatpush1.msra.mxu0 0.0
    %4378 = vmatprep.subr.mxu0 0.0
    %4379 = vmatpush1.msra.mxu0 0.0
    %4380 = vmatprep.subr.mxu0 0.0
    %4381 = vmatpush1.msra.mxu0 0.0
    %4382 = vmatprep.subr.mxu0 0.0
    %4383 = vmatpush1.msra.mxu0 0.0
    %4384 = vmatprep.subr.mxu0 0.0
    %4385 = vmatpush1.msra.mxu0 0.0
    %4386 = vmatprep.subr.mxu0 0.0
    %4387 = vmatpush1.msra.mxu0 0.0
    %4388 = vmatprep.subr.mxu0 0.0
    %4389 = vmatpush1.msra.mxu0 0.0
    %4390 = vmatprep.subr.mxu0 0.0
    %4391 = vmatpush1.msra.mxu0 0.0
    %4392 = vmatprep.subr.mxu0 0.0
    %4393 = vmatpush1.msra.mxu0 0.0
    %4394 = vmatprep.subr.mxu0 0.0
    %4395 = vmatpush1.msra.mxu0 0.0
    %4396 = vmatprep.subr.mxu0 0.0
    %4397 = vmatpush1.msra.mxu0 0.0
    %4398 = vmatprep.subr.mxu0 0.0
    %4399 = vmatpush1.msra.mxu0 0.0
    %4400 = vmatprep.subr.mxu0 0.0
    %4401 = vmatpush1.msra.mxu0 0.0
    %4402 = vmatprep.subr.mxu0 0.0
    %4403 = vmatpush1.msra.mxu0 0.0
    %4404 = vmatprep.subr.mxu0 0.0
    %4405 = vmatpush1.msra.mxu0 0.0
    %4406 = vmatprep.subr.mxu0 0.0
    %4407 = vmatpush1.msra.mxu0 0.0
    %4408 = vmatprep.subr.mxu0 0.0
    %4409 = vmatpush1.msra.mxu0 0.0
    %4410 = vmatprep.subr.mxu0 0.0
    %4411 = vmatpush1.msra.mxu0 0.0
    %4412 = vmatprep.subr.mxu0 0.0
    %4413 = vmatpush1.msra.mxu0 0.0
    %4414 = vmatprep.subr.mxu0 0.0
    %4415 = vmatpush1.msra.mxu0 0.0
    %4416 = vmatprep.subr.mxu0 0.0
    %4417 = vmatpush1.msra.mxu0 0.0
    %4418 = vmatprep.subr.mxu0 0.0
    %4419 = vmatpush1.msra.mxu0 0.0
    %4420 = vmatprep.subr.mxu0 0.0
    %4421 = vmatpush1.msra.mxu0 0.0
    %4422 = vmatprep.subr.mxu0 0.0
    %4423 = vmatpush1.msra.mxu0 0.0
    %4424 = vmatprep.subr.mxu0 0.0
    %4425 = vmatpush1.msra.mxu0 0.0
    %4426 = vmatprep.subr.mxu0 0.0
    %4427 = vmatpush1.msra.mxu0 0.0
    %4428 = vmatprep.mubr.f32.mxu0 0.0
    %4429 = vmatmul.mubr.f32.gmra.mrb[0].mxu0 %v4359
    %v4430 = vpop.f32.mrb[0].mxu0
    %v4431 = vadd.f32 %v2119, %v4430
    %v4432 = vpop.f32.mrb[0].mxu0
    %4433 = vmatprep.mubr.f32.mxu0 0.0
    %4434 = vmatmul.mubr.f32.gmra.mrb[0].mxu0 %v4362
    %v4435 = vpop.f32.mrb[0].mxu0
    %v4436 = vadd.f32 %v2119, %v4435
    %v4437 = vpop.f32.mrb[0].mxu0
    %4438 = vdwg.mxu0
    %v4439 = vmax.f32 %v4431, 0.0
    %v4440 = vmax.f32 %v4436, 0.0
    %v4442 = vsel %vm2207, %v4439, 0
    %v4445 = vsel %vm2207, %v4440, 0
    %4447 = vmatprep.subr.mxu0 0.0
    %4448 = vmatpush1.msra.mxu0 %v50
    %4449 = vmatprep.subr.mxu0 0.0
    %4450 = vmatpush1.msra.mxu0 %v51
    %4451 = vmatprep.subr.mxu0 0.0
    %4452 = vmatpush1.msra.mxu0 %v52
    %4453 = vmatprep.subr.mxu0 0.0
    %4454 = vmatpush1.msra.mxu0 %v53
    %4455 = vmatprep.subr.mxu0 0.0
    %4456 = vmatpush1.msra.mxu0 %v54
    %4457 = vmatprep.subr.mxu0 0.0
    %4458 = vmatpush1.msra.mxu0 %v55
    %4459 = vmatprep.subr.mxu0 0.0
    %4460 = vmatpush1.msra.mxu0 %v56
    %4461 = vmatprep.subr.mxu0 0.0
    %4462 = vmatpush1.msra.mxu0 %v57
    %4463 = vmatprep.subr.mxu0 0.0
    %4464 = vmatpush1.msra.mxu0 0.0
    %4465 = vmatprep.subr.mxu0 0.0
    %4466 = vmatpush1.msra.mxu0 0.0
    %4467 = vmatprep.subr.mxu0 0.0
    %4468 = vmatpush1.msra.mxu0 0.0
    %4469 = vmatprep.subr.mxu0 0.0
    %4470 = vmatpush1.msra.mxu0 0.0
    %4471 = vmatprep.subr.mxu0 0.0
    %4472 = vmatpush1.msra.mxu0 0.0
    %4473 = vmatprep.subr.mxu0 0.0
    %4474 = vmatpush1.msra.mxu0 0.0
    %4475 = vmatprep.subr.mxu0 0.0
    %4476 = vmatpush1.msra.mxu0 0.0
    %4477 = vmatprep.subr.mxu0 0.0
    %4478 = vmatpush1.msra.mxu0 0.0
    %4479 = vmatprep.subr.mxu0 0.0
    %4480 = vmatpush1.msra.mxu0 0.0
    %4481 = vmatprep.subr.mxu0 0.0
    %4482 = vmatpush1.msra.mxu0 0.0
    %4483 = vmatprep.subr.mxu0 0.0
    %4484 = vmatpush1.msra.mxu0 0.0
    %4485 = vmatprep.subr.mxu0 0.0
    %4486 = vmatpush1.msra.mxu0 0.0
    %4487 = vmatprep.subr.mxu0 0.0
    %4488 = vmatpush1.msra.mxu0 0.0
    %4489 = vmatprep.subr.mxu0 0.0
    %4490 = vmatpush1.msra.mxu0 0.0
    %4491 = vmatprep.subr.mxu0 0.0
    %4492 = vmatpush1.msra.mxu0 0.0
    %4493 = vmatprep.subr.mxu0 0.0
    %4494 = vmatpush1.msra.mxu0 0.0
    %4495 = vmatprep.subr.mxu0 0.0
    %4496 = vmatpush1.msra.mxu0 0.0
    %4497 = vmatprep.subr.mxu0 0.0
    %4498 = vmatpush1.msra.mxu0 0.0
    %4499 = vmatprep.subr.mxu0 0.0
    %4500 = vmatpush1.msra.mxu0 0.0
    %4501 = vmatprep.subr.mxu0 0.0
    %4502 = vmatpush1.msra.mxu0 0.0
    %4503 = vmatprep.subr.mxu0 0.0
    %4504 = vmatpush1.msra.mxu0 0.0
    %4505 = vmatprep.subr.mxu0 0.0
    %4506 = vmatpush1.msra.mxu0 0.0
    %4507 = vmatprep.subr.mxu0 0.0
    %4508 = vmatpush1.msra.mxu0 0.0
    %4509 = vmatprep.subr.mxu0 0.0
    %4510 = vmatpush1.msra.mxu0 0.0
    %4511 = vmatprep.mubr.f32.mxu0 0.0
    %4512 = vmatmul.mubr.f32.gmra.mrb[0].mxu0 %v4442
    %v4513 = vpop.f32.mrb[0].mxu0
    %v4514 = vadd.f32 %v2206, %v4513
    %v4515 = vpop.f32.mrb[0].mxu0
    %4516 = vmatprep.mubr.f32.mxu0 0.0
    %4517 = vmatmul.mubr.f32.gmra.mrb[0].mxu0 %v4445
    %v4518 = vpop.f32.mrb[0].mxu0
    %v4519 = vadd.f32 %v2206, %v4518
    %v4520 = vpop.f32.mrb[0].mxu0
    %4521 = vdwg.mxu0
    %v4522 = vadd.f32 %v4356, %v4514
    %v4523 = vadd.f32 %v4357, %v4519
    %v4524 = vsel %vm72, %v4522, 0.0
    %4525 = vadd.xlane.f32.xlu0 %v4524
    %v4526 = vpop.xlane.xlu0 %4525
    %v4527 = vsel %vm72, %v4523, 0.0
    %4528 = vadd.xlane.f32.xlu0 %v4527
    %v4529 = vpop.xlane.xlu0 %4528
    %v4530 = vmul.f32 %v4526, %v2083
    %v4531 = vmul.f32 %v4529, %v2083
    %v4532 = vsub.f32 %v4522, %v4530
    %v4533 = vsub.f32 %v4523, %v4531
    %v4534 = vmul.f32 %v4532, %v4532
    %v4535 = vmul.f32 %v4533, %v4533
    %v4536 = vsel %vm72, %v4534, 0.0
    %4537 = vadd.xlane.f32.xlu0 %v4536
    %v4538 = vpop.xlane.xlu0 %4537
    %v4539 = vsel %vm72, %v4535, 0.0
    %4540 = vadd.xlane.f32.xlu0 %v4539
    %v4541 = vpop.xlane.xlu0 %4540
    %v4542 = vmul.f32 %v4538, %v2083
    %v4543 = vmul.f32 %v4541, %v2083
    %v4544 = vadd.f32 %v4542, 1e-05
    %v4545 = vadd.f32 %v4543, 1e-05
    %v4546 = vrsqrt.pop %v4544
    %v4547 = vrsqrt.pop %v4545
    %v4548 = vmul.f32 %v4532, %v4546
    %v4549 = vmul.f32 %v4533, %v4547
    %v4550 = vmul.f32 %v4548, %v2320
    %v4551 = vmul.f32 %v4549, %v2320
    %v4552 = vadd.f32 %v4550, %v2326
    %v4553 = vadd.f32 %v4551, %v2326
    %4554 = vst.msk [vmem:[#allocation5] sm:$0xff] %vm72, %v4552
    %4555 = vst.msk [vmem:[#allocation5 + $0x8] sm:$0xff] %vm72, %v4553
    // Predicated region
    $region30: #{tpu_custom_call.1} parent=1 // pred_check
      _
    $region31: #{tpu_custom_call.1} parent=1 // pred_check_branch
      %4557 = sbr.rel (0) target = $region33
    $region32: #{tpu_custom_call.1} parent=1 // pred_region
      %s4559 = ssub.s32 256, 256
      %4560 = vsyncadd [#allocation4], %s4559
      %s4561 = sshll.u32 [#allocation5], 4
      %s4562 = int_to_ptr.vmem [resolvable:$true] %s4561
      %4567 = dma.vmem_to_hbm [thread:$0]  %s4562, 256, %s6, [#allocation4], 128, 128, 8
    $region33: #{tpu_custom_call.1} parent=1 // pred_fallthru
      _
    // Predicated region
    $region34: #{tpu_custom_call.1} parent=1 // pred_check
      _
    $region35: #{tpu_custom_call.1} parent=1 // pred_check_branch
      %4569 = sbr.rel (0) target = $region37
    $region36: #{tpu_custom_call.1} parent=1 // pred_region
      %4570 = dma.done [#allocation4], 256
    $region37: #{tpu_custom_call.1} parent=1 // pred_fallthru
      _
    %4571 = vsyncpa [#allocation3], 1
    %4572 = vsyncpa [#allocation4], 1

</llo_original>
